<compile_context>
chip_gen: v7x
topology: tpu7x:2x2x1
jax: 0.10.0
libtpu: 0.0.40
codegen_flags: <defaults>
</compile_context>

<pallas_src>
import functools

import jax
import jax.numpy as jnp
from jax import lax
from jax.experimental import pallas as pl
from jax.experimental.pallas import tpu as pltpu


_VMEM = pl.BlockSpec(memory_space=pltpu.MemorySpace.VMEM)


# -----------------------------------------------------------------------------
# Fused kernel: BiLSTM recurrence + (self & "before") attention + max-pool
# -----------------------------------------------------------------------------

def _encoder_kernel(xp_f_ref, xp_b_ref, len_ref, whh_ref, o_ref,
                    lstm_f, lstm_b, *, hidden, scale):
  """Everything fused; LSTM states never leave VMEM.

  xp_f_ref / xp_b_ref: (T, B, 4H)  precomputed X@W_ih + b per direction
  len_ref:             (B, 1) int32 sequence lengths
  whh_ref:             (2H, 8H)    block-diagonal [W_hh_f 0; 0 W_hh_b]
  o_ref:               (B, 4H)     [max_t before_attn | max_t self_attn]
  lstm_f / lstm_b:     (B, T, H)   batch-major hidden-state scratch (VMEM)
  """
  T, B, _ = xp_f_ref.shape
  H = hidden
  D = 2 * H

  whh = whh_ref[...]                      # loop-invariant weight load (2H, 8H)
  len_vec = len_ref[...]                  # (B, 1) int32, loaded once

  def cell(gates, c):                     # PyTorch gate order (i, f, g, o)
    i = jax.nn.sigmoid(gates[:, 0 * H:1 * H])
    f = jax.nn.sigmoid(gates[:, 1 * H:2 * H])
    g = jnp.tanh(gates[:, 2 * H:3 * H])
    o = jax.nn.sigmoid(gates[:, 3 * H:4 * H])
    c_new = f * c + i * g
    return o * jnp.tanh(c_new), c_new

  def step(t, carry):
    hf, cf, hb, cb = carry                # (B, H) each -- live in vregs
    tr = T - 1 - t
    m_t = (len_vec > t).astype(jnp.float32)     # (B, 1)
    m_r = (len_vec > tr).astype(jnp.float32)

    # one fused MXU op for both directions (block-diagonal recurrent weights)
    gates = jnp.dot(jnp.concatenate([hf, hb], axis=-1), whh,
                    preferred_element_type=jnp.float32)          # (B, 8H)
    gates_f = gates[:, :4 * H] + xp_f_ref[t]
    gates_b = gates[:, 4 * H:] + xp_b_ref[tr]

    hf_n, cf_n = cell(gates_f, cf)
    hb_n, cb_n = cell(gates_b, cb)

    # forward: state needs no gating (padding is a suffix); outputs are zeroed.
    lstm_f[:, pl.ds(t, 1), :] = (hf_n * m_t)[:, None, :]
    # backward: mask-gated state so it "starts" at the last valid token.
    lstm_b[:, pl.ds(tr, 1), :] = (m_r * hb_n)[:, None, :]
    hb_n = m_r * hb_n + (1.0 - m_r) * hb
    cb_n = m_r * cb_n + (1.0 - m_r) * cb
    return hf_n, cf_n, hb_n, cb_n

  zeros = jnp.zeros((B, H), jnp.float32)
  lax.fori_loop(0, T, step, (zeros, zeros, zeros, zeros), unroll=(T <= 16))

  # ---------------- attention (self + "before") fused into one batched pass ---
  L = jnp.concatenate([lstm_f[...], lstm_b[...]], axis=-1)       # (B, T, D)
  lq = L * scale                                                 # scale folded into Q
  # "before": Q[b] = L[b+1], K=V = L[b]; batch row B-1 is the zero append.
  q_before = jnp.concatenate([lq[1:], jnp.zeros((1, T, D), jnp.float32)], axis=0)
  q = jnp.concatenate([lq, q_before], axis=0)                    # (2B, T, D)
  kv = jnp.concatenate([L, L], axis=0)                           # (2B, T, D)

  s = jnp.einsum('ctd,csd->cts', q, kv,
                 preferred_element_type=jnp.float32)             # (2B, T, T)
  s = s - jnp.max(s, axis=-1, keepdims=True)
  p = jnp.exp(s)
  p = p * pl.reciprocal(jnp.sum(p, axis=-1, keepdims=True), approx=True)
  ctx = jnp.einsum('cts,csd->ctd', p, kv,
                   preferred_element_type=jnp.float32)           # (2B, T, D)

  pooled = jnp.max(ctx, axis=1)                                  # (2B, D)
  pooled_self = pooled[:B]
  pooled_before = pooled[B:]
  # the reference appends a zero (T, D) slab for the last sentence -> pooled 0
  row = lax.broadcasted_iota(jnp.int32, (B, 1), 0)
  pooled_before = jnp.where(row < B - 1, pooled_before, 0.0)

  # single lane-dense store of the whole pooled output
  o_ref[...] = jnp.concatenate([pooled_before, pooled_self], axis=-1)


# -----------------------------------------------------------------------------
# Model forward (Multi_Attention_Encoder)
# -----------------------------------------------------------------------------

@functools.partial(jax.jit, static_argnames=("embedding_dim",))
def multi_attention_encoder(params, sentence, lengths, *, embedding_dim):
  """sentence: (B, T) int32 token ids; lengths: (B,) int32.  Returns (B, 4H)."""
  embeds = params['word_vec'][sentence].astype(jnp.float32)      # (B, T, E)
  B, T, _ = embeds.shape
  w_ih_f, w_hh_f, b_f = params['word_lstm_f']
  w_ih_b, w_hh_b, b_b = params['word_lstm_b']
  H = w_hh_f.shape[0]

  # hoisted input projections: transpose only the SMALL (B,T,E) embeds tensor,
  # then one big matmul per direction producing the (T, B, 4H) gate tensors.
  embeds_tm = jnp.transpose(embeds, (1, 0, 2))                   # (T, B, E)
  xp_f = jnp.einsum('tbe,eg->tbg', embeds_tm, w_ih_f,
                    preferred_element_type=jnp.float32) + b_f[None, None, :]
  xp_b = jnp.einsum('tbe,eg->tbg', embeds_tm, w_ih_b,
                    preferred_element_type=jnp.float32) + b_b[None, None, :]

  # block-diagonal recurrent weight -> single MXU op per timestep in the kernel
  zpad = jnp.zeros((H, 4 * H), jnp.float32)
  whh_blk = jnp.concatenate(
      [jnp.concatenate([w_hh_f, zpad], axis=1),
       jnp.concatenate([zpad, w_hh_b], axis=1)], axis=0)         # (2H, 8H)

  len_col = lengths.astype(jnp.int32)[:, None]                   # (B, 1)

  model_dim = 2 * embedding_dim                                  # as in reference
  scale = 1.0 / float(model_dim) ** 0.5
  D = 2 * H

  # NOTE: the reference also computes after_attention_out, but it is never used
  # for the returned max_pooling_out -> dead code, not computed here.
  return pl.pallas_call(
      functools.partial(_encoder_kernel, hidden=H, scale=scale),
      out_shape=jax.ShapeDtypeStruct((B, 2 * D), jnp.float32),
      in_specs=[_VMEM, _VMEM, _VMEM, _VMEM],
      out_specs=_VMEM,
      scratch_shapes=[pltpu.VMEM((B, T, H), jnp.float32),
                      pltpu.VMEM((B, T, H), jnp.float32)],
      compiler_params=pltpu.CompilerParams(
          vmem_limit_bytes=32 * 1024 * 1024),
  )(xp_f, xp_b, len_col, whh_blk)


# -----------------------------------------------------------------------------
# Deterministic parameter init
# -----------------------------------------------------------------------------

def init_params(key, vocab, E, H):
  keys = jax.random.split(key, 7)

  def n(k, shape, scale=0.1):
    return jax.random.normal(k, shape, jnp.float32) * scale

  return {
      'word_vec': n(keys[0], (vocab, E), 0.5),
      # bidirectional LSTM, hidden H, PyTorch gate order (i, f, g, o)
      'word_lstm_f': (n(keys[1], (E, 4 * H)), n(keys[2], (H, 4 * H)),
                      n(keys[3], (4 * H,))),
      'word_lstm_b': (n(keys[4], (E, 4 * H)), n(keys[5], (H, 4 * H)),
                      n(keys[6], (4 * H,))),
  }


# -----------------------------------------------------------------------------
# Main
# -----------------------------------------------------------------------------

if __name__ == "__main__":
  embedding_dim = 8
  hidden_dim = 8
  vocab_size = 50
  num_sentences = 5     # batch of sentences
  max_len = 7           # == max(lengths)

  key = jax.random.PRNGKey(0)
  k_params, k_sent = jax.random.split(key, 2)
  params = init_params(k_params, vocab_size, embedding_dim, hidden_dim)

  sentence = jax.random.randint(k_sent, (num_sentences, max_len), 0, vocab_size,
                                dtype=jnp.int32)
  lengths = jnp.array([7, 5, 6, 3, 7], dtype=jnp.int32)

  max_pooling_out = multi_attention_encoder(
      params, sentence, lengths, embedding_dim=embedding_dim)
  jax.block_until_ready(max_pooling_out)

  assert max_pooling_out.shape == (num_sentences, 4 * hidden_dim)
  assert bool(jnp.all(jnp.isfinite(max_pooling_out)))
  print("KERNEL_OK")
</pallas_src>

<mosaic_0001>
module attributes {stable_mosaic.version = 11 : i64} {
  func.func @_encoder_kernel(%arg0: memref<7x5x32xf32, #tpu.memory_space<vmem>>, %arg1: memref<7x5x32xf32, #tpu.memory_space<vmem>>, %arg2: memref<5x1xi32, #tpu.memory_space<vmem>>, %arg3: memref<16x64xf32, #tpu.memory_space<vmem>>, %arg4: memref<5x32xf32, #tpu.memory_space<vmem>>, %arg5: memref<5x7x8xf32, #tpu.memory_space<vmem>>, %arg6: memref<5x7x8xf32, #tpu.memory_space<vmem>>) attributes {dimension_semantics = [], scalar_prefetch = 0 : i64, scratch_operands = 2 : i64, tpu.core_type = #tpu.core_type<tc>} {
    %c0 = arith.constant 0 : index
    %c0_0 = arith.constant 0 : index
    %0 = vector.load %arg3[%c0, %c0_0] : memref<16x64xf32, #tpu.memory_space<vmem>>, vector<16x64xf32>
    %c0_1 = arith.constant 0 : index
    %c0_2 = arith.constant 0 : index
    %1 = vector.load %arg2[%c0_1, %c0_2] : memref<5x1xi32, #tpu.memory_space<vmem>>, vector<5x1xi32>
    %cst = arith.constant 0.000000e+00 : f32
    %2 = vector.broadcast %cst : f32 to vector<5x8xf32>
    %c0_i32 = arith.constant 0 : i32
    %c6_i32 = arith.constant 6 : i32
    %3 = arith.subi %c6_i32, %c0_i32 : i32
    %4 = vector.broadcast %c0_i32 : i32 to vector<5x1xi32>
    %5 = arith.cmpi sgt, %1, %4 : vector<5x1xi32>
    %6 = arith.extui %5 : vector<5x1xi1> to vector<5x1xi32>
    %7 = arith.sitofp %6 : vector<5x1xi32> to vector<5x1xf32>
    %8 = vector.broadcast %3 : i32 to vector<5x1xi32>
    %9 = arith.cmpi sgt, %1, %8 : vector<5x1xi32>
    %10 = arith.extui %9 : vector<5x1xi1> to vector<5x1xi32>
    %11 = arith.sitofp %10 : vector<5x1xi32> to vector<5x1xf32>
    %12 = tpu.concatenate %2, %2 in 1 : vector<5x8xf32>, vector<5x8xf32> -> vector<5x16xf32>
    %cst_3 = arith.constant dense<0.000000e+00> : vector<5x64xf32>
    %13 = tpu.matmul %12, %0, %cst_3 {dimension_numbers = #tpu.dot_dimension_numbers<[1], [0], [0], [1], [0, 0, 1, 1], [], []>} : vector<5x16xf32>, vector<16x64xf32>, vector<5x64xf32> -> vector<5x64xf32>
    %14 = vector.extract_strided_slice %13 {offsets = [0, 0], sizes = [5, 32], strides = [1, 1]} : vector<5x64xf32> to vector<5x32xf32>
    %15 = arith.index_cast %c0_i32 : i32 to index
    %c0_4 = arith.constant 0 : index
    %c0_5 = arith.constant 0 : index
    %16 = vector.load %arg0[%15, %c0_4, %c0_5] : memref<7x5x32xf32, #tpu.memory_space<vmem>>, vector<1x5x32xf32>
    %17 = vector.shape_cast %16 : vector<1x5x32xf32> to vector<5x32xf32>
    %18 = arith.addf %14, %17 : vector<5x32xf32>
    %19 = vector.extract_strided_slice %13 {offsets = [0, 32], sizes = [5, 32], strides = [1, 1]} : vector<5x64xf32> to vector<5x32xf32>
    %20 = arith.index_cast %3 : i32 to index
    %c0_6 = arith.constant 0 : index
    %c0_7 = arith.constant 0 : index
    %21 = vector.load %arg1[%20, %c0_6, %c0_7] : memref<7x5x32xf32, #tpu.memory_space<vmem>>, vector<1x5x32xf32>
    %22 = vector.shape_cast %21 : vector<1x5x32xf32> to vector<5x32xf32>
    %23 = arith.addf %19, %22 : vector<5x32xf32>
    %24 = vector.extract_strided_slice %18 {offsets = [0, 0], sizes = [5, 8], strides = [1, 1]} : vector<5x32xf32> to vector<5x8xf32>
    %25 = arith.negf %24 : vector<5x8xf32>
    %26 = math.exp %25 : vector<5x8xf32>
    %cst_8 = arith.constant 1.000000e+00 : f32
    %27 = vector.broadcast %cst_8 : f32 to vector<5x8xf32>
    %28 = arith.addf %27, %26 : vector<5x8xf32>
    %29 = arith.divf %27, %28 : vector<5x8xf32>
    %30 = vector.extract_strided_slice %18 {offsets = [0, 8], sizes = [5, 8], strides = [1, 1]} : vector<5x32xf32> to vector<5x8xf32>
    %31 = arith.negf %30 : vector<5x8xf32>
    %32 = math.exp %31 : vector<5x8xf32>
    %cst_9 = arith.constant 1.000000e+00 : f32
    %33 = vector.broadcast %cst_9 : f32 to vector<5x8xf32>
    %34 = arith.addf %33, %32 : vector<5x8xf32>
    %35 = arith.divf %33, %34 : vector<5x8xf32>
    %36 = vector.extract_strided_slice %18 {offsets = [0, 16], sizes = [5, 8], strides = [1, 1]} : vector<5x32xf32> to vector<5x8xf32>
    %37 = math.tanh %36 : vector<5x8xf32>
    %38 = vector.extract_strided_slice %18 {offsets = [0, 24], sizes = [5, 8], strides = [1, 1]} : vector<5x32xf32> to vector<5x8xf32>
    %39 = arith.negf %38 : vector<5x8xf32>
    %40 = math.exp %39 : vector<5x8xf32>
    %cst_10 = arith.constant 1.000000e+00 : f32
    %41 = vector.broadcast %cst_10 : f32 to vector<5x8xf32>
    %42 = arith.addf %41, %40 : vector<5x8xf32>
    %43 = arith.divf %41, %42 : vector<5x8xf32>
    %44 = arith.mulf %35, %2 : vector<5x8xf32>
    %45 = arith.mulf %29, %37 : vector<5x8xf32>
    %46 = arith.addf %44, %45 : vector<5x8xf32>
    %47 = math.tanh %46 : vector<5x8xf32>
    %48 = arith.mulf %43, %47 : vector<5x8xf32>
    %49 = vector.extract_strided_slice %23 {offsets = [0, 0], sizes = [5, 8], strides = [1, 1]} : vector<5x32xf32> to vector<5x8xf32>
    %50 = arith.negf %49 : vector<5x8xf32>
    %51 = math.exp %50 : vector<5x8xf32>
    %cst_11 = arith.constant 1.000000e+00 : f32
    %52 = vector.broadcast %cst_11 : f32 to vector<5x8xf32>
    %53 = arith.addf %52, %51 : vector<5x8xf32>
    %54 = arith.divf %52, %53 : vector<5x8xf32>
    %55 = vector.extract_strided_slice %23 {offsets = [0, 8], sizes = [5, 8], strides = [1, 1]} : vector<5x32xf32> to vector<5x8xf32>
    %56 = arith.negf %55 : vector<5x8xf32>
    %57 = math.exp %56 : vector<5x8xf32>
    %cst_12 = arith.constant 1.000000e+00 : f32
    %58 = vector.broadcast %cst_12 : f32 to vector<5x8xf32>
    %59 = arith.addf %58, %57 : vector<5x8xf32>
    %60 = arith.divf %58, %59 : vector<5x8xf32>
    %61 = vector.extract_strided_slice %23 {offsets = [0, 16], sizes = [5, 8], strides = [1, 1]} : vector<5x32xf32> to vector<5x8xf32>
    %62 = math.tanh %61 : vector<5x8xf32>
    %63 = vector.extract_strided_slice %23 {offsets = [0, 24], sizes = [5, 8], strides = [1, 1]} : vector<5x32xf32> to vector<5x8xf32>
    %64 = arith.negf %63 : vector<5x8xf32>
    %65 = math.exp %64 : vector<5x8xf32>
    %cst_13 = arith.constant 1.000000e+00 : f32
    %66 = vector.broadcast %cst_13 : f32 to vector<5x8xf32>
    %67 = arith.addf %66, %65 : vector<5x8xf32>
    %68 = arith.divf %66, %67 : vector<5x8xf32>
    %69 = arith.mulf %60, %2 : vector<5x8xf32>
    %70 = arith.mulf %54, %62 : vector<5x8xf32>
    %71 = arith.addf %69, %70 : vector<5x8xf32>
    %72 = math.tanh %71 : vector<5x8xf32>
    %73 = arith.mulf %68, %72 : vector<5x8xf32>
    %74 = vector.broadcast %7 : vector<5x1xf32> to vector<5x8xf32>
    %75 = arith.mulf %48, %74 : vector<5x8xf32>
    %76 = vector.shape_cast %75 : vector<5x8xf32> to vector<5x1x8xf32>
    %c0_14 = arith.constant 0 : index
    %77 = arith.index_cast %c0_i32 : i32 to index
    %c0_15 = arith.constant 0 : index
    %78 = vector.load %arg5[%c0_14, %77, %c0_15] : memref<5x7x8xf32, #tpu.memory_space<vmem>>, vector<5x1x8xf32>
    tpu.vector_store %arg5[%c0_14, %77, %c0_15], %76 {strides = array<i32>} : memref<5x7x8xf32, #tpu.memory_space<vmem>>, vector<5x1x8xf32>,
    %79 = vector.broadcast %11 : vector<5x1xf32> to vector<5x8xf32>
    %80 = arith.mulf %79, %73 : vector<5x8xf32>
    %81 = vector.shape_cast %80 : vector<5x8xf32> to vector<5x1x8xf32>
    %c0_16 = arith.constant 0 : index
    %82 = arith.index_cast %3 : i32 to index
    %c0_17 = arith.constant 0 : index
    %83 = vector.load %arg6[%c0_16, %82, %c0_17] : memref<5x7x8xf32, #tpu.memory_space<vmem>>, vector<5x1x8xf32>
    tpu.vector_store %arg6[%c0_16, %82, %c0_17], %81 {strides = array<i32>} : memref<5x7x8xf32, #tpu.memory_space<vmem>>, vector<5x1x8xf32>,
    %84 = vector.broadcast %11 : vector<5x1xf32> to vector<5x8xf32>
    %85 = arith.mulf %84, %73 : vector<5x8xf32>
    %cst_18 = arith.constant 1.000000e+00 : f32
    %86 = vector.broadcast %cst_18 : f32 to vector<5x1xf32>
    %87 = arith.subf %86, %11 : vector<5x1xf32>
    %88 = vector.broadcast %87 : vector<5x1xf32> to vector<5x8xf32>
    %89 = arith.mulf %88, %2 : vector<5x8xf32>
    %90 = arith.addf %85, %89 : vector<5x8xf32>
    %91 = vector.broadcast %11 : vector<5x1xf32> to vector<5x8xf32>
    %92 = arith.mulf %91, %71 : vector<5x8xf32>
    %cst_19 = arith.constant 1.000000e+00 : f32
    %93 = vector.broadcast %cst_19 : f32 to vector<5x1xf32>
    %94 = arith.subf %93, %11 : vector<5x1xf32>
    %95 = vector.broadcast %94 : vector<5x1xf32> to vector<5x8xf32>
    %96 = arith.mulf %95, %2 : vector<5x8xf32>
    %97 = arith.addf %92, %96 : vector<5x8xf32>
    %c1_i32 = arith.constant 1 : i32
    %c6_i32_20 = arith.constant 6 : i32
    %98 = arith.subi %c6_i32_20, %c1_i32 : i32
    %99 = vector.broadcast %c1_i32 : i32 to vector<5x1xi32>
    %100 = arith.cmpi sgt, %1, %99 : vector<5x1xi32>
    %101 = arith.extui %100 : vector<5x1xi1> to vector<5x1xi32>
    %102 = arith.sitofp %101 : vector<5x1xi32> to vector<5x1xf32>
    %103 = vector.broadcast %98 : i32 to vector<5x1xi32>
    %104 = arith.cmpi sgt, %1, %103 : vector<5x1xi32>
    %105 = arith.extui %104 : vector<5x1xi1> to vector<5x1xi32>
    %106 = arith.sitofp %105 : vector<5x1xi32> to vector<5x1xf32>
    %107 = tpu.concatenate %48, %90 in 1 : vector<5x8xf32>, vector<5x8xf32> -> vector<5x16xf32>
    %cst_21 = arith.constant dense<0.000000e+00> : vector<5x64xf32>
    %108 = tpu.matmul %107, %0, %cst_21 {dimension_numbers = #tpu.dot_dimension_numbers<[1], [0], [0], [1], [0, 0, 1, 1], [], []>} : vector<5x16xf32>, vector<16x64xf32>, vector<5x64xf32> -> vector<5x64xf32>
    %109 = vector.extract_strided_slice %108 {offsets = [0, 0], sizes = [5, 32], strides = [1, 1]} : vector<5x64xf32> to vector<5x32xf32>
    %110 = arith.index_cast %c1_i32 : i32 to index
    %c0_22 = arith.constant 0 : index
    %c0_23 = arith.constant 0 : index
    %111 = vector.load %arg0[%110, %c0_22, %c0_23] : memref<7x5x32xf32, #tpu.memory_space<vmem>>, vector<1x5x32xf32>
    %112 = vector.shape_cast %111 : vector<1x5x32xf32> to vector<5x32xf32>
    %113 = arith.addf %109, %112 : vector<5x32xf32>
    %114 = vector.extract_strided_slice %108 {offsets = [0, 32], sizes = [5, 32], strides = [1, 1]} : vector<5x64xf32> to vector<5x32xf32>
    %115 = arith.index_cast %98 : i32 to index
    %c0_24 = arith.constant 0 : index
    %c0_25 = arith.constant 0 : index
    %116 = vector.load %arg1[%115, %c0_24, %c0_25] : memref<7x5x32xf32, #tpu.memory_space<vmem>>, vector<1x5x32xf32>
    %117 = vector.shape_cast %116 : vector<1x5x32xf32> to vector<5x32xf32>
    %118 = arith.addf %114, %117 : vector<5x32xf32>
    %119 = vector.extract_strided_slice %113 {offsets = [0, 0], sizes = [5, 8], strides = [1, 1]} : vector<5x32xf32> to vector<5x8xf32>
    %120 = arith.negf %119 : vector<5x8xf32>
    %121 = math.exp %120 : vector<5x8xf32>
    %cst_26 = arith.constant 1.000000e+00 : f32
    %122 = vector.broadcast %cst_26 : f32 to vector<5x8xf32>
    %123 = arith.addf %122, %121 : vector<5x8xf32>
    %124 = arith.divf %122, %123 : vector<5x8xf32>
    %125 = vector.extract_strided_slice %113 {offsets = [0, 8], sizes = [5, 8], strides = [1, 1]} : vector<5x32xf32> to vector<5x8xf32>
    %126 = arith.negf %125 : vector<5x8xf32>
    %127 = math.exp %126 : vector<5x8xf32>
    %cst_27 = arith.constant 1.000000e+00 : f32
    %128 = vector.broadcast %cst_27 : f32 to vector<5x8xf32>
    %129 = arith.addf %128, %127 : vector<5x8xf32>
    %130 = arith.divf %128, %129 : vector<5x8xf32>
    %131 = vector.extract_strided_slice %113 {offsets = [0, 16], sizes = [5, 8], strides = [1, 1]} : vector<5x32xf32> to vector<5x8xf32>
    %132 = math.tanh %131 : vector<5x8xf32>
    %133 = vector.extract_strided_slice %113 {offsets = [0, 24], sizes = [5, 8], strides = [1, 1]} : vector<5x32xf32> to vector<5x8xf32>
    %134 = arith.negf %133 : vector<5x8xf32>
    %135 = math.exp %134 : vector<5x8xf32>
    %cst_28 = arith.constant 1.000000e+00 : f32
    %136 = vector.broadcast %cst_28 : f32 to vector<5x8xf32>
    %137 = arith.addf %136, %135 : vector<5x8xf32>
    %138 = arith.divf %136, %137 : vector<5x8xf32>
    %139 = arith.mulf %130, %46 : vector<5x8xf32>
    %140 = arith.mulf %124, %132 : vector<5x8xf32>
    %141 = arith.addf %139, %140 : vector<5x8xf32>
    %142 = math.tanh %141 : vector<5x8xf32>
    %143 = arith.mulf %138, %142 : vector<5x8xf32>
    %144 = vector.extract_strided_slice %118 {offsets = [0, 0], sizes = [5, 8], strides = [1, 1]} : vector<5x32xf32> to vector<5x8xf32>
    %145 = arith.negf %144 : vector<5x8xf32>
    %146 = math.exp %145 : vector<5x8xf32>
    %cst_29 = arith.constant 1.000000e+00 : f32
    %147 = vector.broadcast %cst_29 : f32 to vector<5x8xf32>
    %148 = arith.addf %147, %146 : vector<5x8xf32>
    %149 = arith.divf %147, %148 : vector<5x8xf32>
    %150 = vector.extract_strided_slice %118 {offsets = [0, 8], sizes = [5, 8], strides = [1, 1]} : vector<5x32xf32> to vector<5x8xf32>
    %151 = arith.negf %150 : vector<5x8xf32>
    %152 = math.exp %151 : vector<5x8xf32>
    %cst_30 = arith.constant 1.000000e+00 : f32
    %153 = vector.broadcast %cst_30 : f32 to vector<5x8xf32>
    %154 = arith.addf %153, %152 : vector<5x8xf32>
    %155 = arith.divf %153, %154 : vector<5x8xf32>
    %156 = vector.extract_strided_slice %118 {offsets = [0, 16], sizes = [5, 8], strides = [1, 1]} : vector<5x32xf32> to vector<5x8xf32>
    %157 = math.tanh %156 : vector<5x8xf32>
    %158 = vector.extract_strided_slice %118 {offsets = [0, 24], sizes = [5, 8], strides = [1, 1]} : vector<5x32xf32> to vector<5x8xf32>
    %159 = arith.negf %158 : vector<5x8xf32>
    %160 = math.exp %159 : vector<5x8xf32>
    %cst_31 = arith.constant 1.000000e+00 : f32
    %161 = vector.broadcast %cst_31 : f32 to vector<5x8xf32>
    %162 = arith.addf %161, %160 : vector<5x8xf32>
    %163 = arith.divf %161, %162 : vector<5x8xf32>
    %164 = arith.mulf %155, %97 : vector<5x8xf32>
    %165 = arith.mulf %149, %157 : vector<5x8xf32>
    %166 = arith.addf %164, %165 : vector<5x8xf32>
    %167 = math.tanh %166 : vector<5x8xf32>
    %168 = arith.mulf %163, %167 : vector<5x8xf32>
    %169 = vector.broadcast %102 : vector<5x1xf32> to vector<5x8xf32>
    %170 = arith.mulf %143, %169 : vector<5x8xf32>
    %171 = vector.shape_cast %170 : vector<5x8xf32> to vector<5x1x8xf32>
    %c0_32 = arith.constant 0 : index
    %172 = arith.index_cast %c1_i32 : i32 to index
    %c0_33 = arith.constant 0 : index
    %173 = vector.load %arg5[%c0_32, %172, %c0_33] : memref<5x7x8xf32, #tpu.memory_space<vmem>>, vector<5x1x8xf32>
    tpu.vector_store %arg5[%c0_32, %172, %c0_33], %171 {strides = array<i32>} : memref<5x7x8xf32, #tpu.memory_space<vmem>>, vector<5x1x8xf32>,
    %174 = vector.broadcast %106 : vector<5x1xf32> to vector<5x8xf32>
    %175 = arith.mulf %174, %168 : vector<5x8xf32>
    %176 = vector.shape_cast %175 : vector<5x8xf32> to vector<5x1x8xf32>
    %c0_34 = arith.constant 0 : index
    %177 = arith.index_cast %98 : i32 to index
    %c0_35 = arith.constant 0 : index
    %178 = vector.load %arg6[%c0_34, %177, %c0_35] : memref<5x7x8xf32, #tpu.memory_space<vmem>>, vector<5x1x8xf32>
    tpu.vector_store %arg6[%c0_34, %177, %c0_35], %176 {strides = array<i32>} : memref<5x7x8xf32, #tpu.memory_space<vmem>>, vector<5x1x8xf32>,
    %179 = vector.broadcast %106 : vector<5x1xf32> to vector<5x8xf32>
    %180 = arith.mulf %179, %168 : vector<5x8xf32>
    %cst_36 = arith.constant 1.000000e+00 : f32
    %181 = vector.broadcast %cst_36 : f32 to vector<5x1xf32>
    %182 = arith.subf %181, %106 : vector<5x1xf32>
    %183 = vector.broadcast %182 : vector<5x1xf32> to vector<5x8xf32>
    %184 = arith.mulf %183, %90 : vector<5x8xf32>
    %185 = arith.addf %180, %184 : vector<5x8xf32>
    %186 = vector.broadcast %106 : vector<5x1xf32> to vector<5x8xf32>
    %187 = arith.mulf %186, %166 : vector<5x8xf32>
    %cst_37 = arith.constant 1.000000e+00 : f32
    %188 = vector.broadcast %cst_37 : f32 to vector<5x1xf32>
    %189 = arith.subf %188, %106 : vector<5x1xf32>
    %190 = vector.broadcast %189 : vector<5x1xf32> to vector<5x8xf32>
    %191 = arith.mulf %190, %97 : vector<5x8xf32>
    %192 = arith.addf %187, %191 : vector<5x8xf32>
    %c2_i32 = arith.constant 2 : i32
    %c6_i32_38 = arith.constant 6 : i32
    %193 = arith.subi %c6_i32_38, %c2_i32 : i32
    %194 = vector.broadcast %c2_i32 : i32 to vector<5x1xi32>
    %195 = arith.cmpi sgt, %1, %194 : vector<5x1xi32>
    %196 = arith.extui %195 : vector<5x1xi1> to vector<5x1xi32>
    %197 = arith.sitofp %196 : vector<5x1xi32> to vector<5x1xf32>
    %198 = vector.broadcast %193 : i32 to vector<5x1xi32>
    %199 = arith.cmpi sgt, %1, %198 : vector<5x1xi32>
    %200 = arith.extui %199 : vector<5x1xi1> to vector<5x1xi32>
    %201 = arith.sitofp %200 : vector<5x1xi32> to vector<5x1xf32>
    %202 = tpu.concatenate %143, %185 in 1 : vector<5x8xf32>, vector<5x8xf32> -> vector<5x16xf32>
    %cst_39 = arith.constant dense<0.000000e+00> : vector<5x64xf32>
    %203 = tpu.matmul %202, %0, %cst_39 {dimension_numbers = #tpu.dot_dimension_numbers<[1], [0], [0], [1], [0, 0, 1, 1], [], []>} : vector<5x16xf32>, vector<16x64xf32>, vector<5x64xf32> -> vector<5x64xf32>
    %204 = vector.extract_strided_slice %203 {offsets = [0, 0], sizes = [5, 32], strides = [1, 1]} : vector<5x64xf32> to vector<5x32xf32>
    %205 = arith.index_cast %c2_i32 : i32 to index
    %c0_40 = arith.constant 0 : index
    %c0_41 = arith.constant 0 : index
    %206 = vector.load %arg0[%205, %c0_40, %c0_41] : memref<7x5x32xf32, #tpu.memory_space<vmem>>, vector<1x5x32xf32>
    %207 = vector.shape_cast %206 : vector<1x5x32xf32> to vector<5x32xf32>
    %208 = arith.addf %204, %207 : vector<5x32xf32>
    %209 = vector.extract_strided_slice %203 {offsets = [0, 32], sizes = [5, 32], strides = [1, 1]} : vector<5x64xf32> to vector<5x32xf32>
    %210 = arith.index_cast %193 : i32 to index
    %c0_42 = arith.constant 0 : index
    %c0_43 = arith.constant 0 : index
    %211 = vector.load %arg1[%210, %c0_42, %c0_43] : memref<7x5x32xf32, #tpu.memory_space<vmem>>, vector<1x5x32xf32>
    %212 = vector.shape_cast %211 : vector<1x5x32xf32> to vector<5x32xf32>
    %213 = arith.addf %209, %212 : vector<5x32xf32>
    %214 = vector.extract_strided_slice %208 {offsets = [0, 0], sizes = [5, 8], strides = [1, 1]} : vector<5x32xf32> to vector<5x8xf32>
    %215 = arith.negf %214 : vector<5x8xf32>
    %216 = math.exp %215 : vector<5x8xf32>
    %cst_44 = arith.constant 1.000000e+00 : f32
    %217 = vector.broadcast %cst_44 : f32 to vector<5x8xf32>
    %218 = arith.addf %217, %216 : vector<5x8xf32>
    %219 = arith.divf %217, %218 : vector<5x8xf32>
    %220 = vector.extract_strided_slice %208 {offsets = [0, 8], sizes = [5, 8], strides = [1, 1]} : vector<5x32xf32> to vector<5x8xf32>
    %221 = arith.negf %220 : vector<5x8xf32>
    %222 = math.exp %221 : vector<5x8xf32>
    %cst_45 = arith.constant 1.000000e+00 : f32
    %223 = vector.broadcast %cst_45 : f32 to vector<5x8xf32>
    %224 = arith.addf %223, %222 : vector<5x8xf32>
    %225 = arith.divf %223, %224 : vector<5x8xf32>
    %226 = vector.extract_strided_slice %208 {offsets = [0, 16], sizes = [5, 8], strides = [1, 1]} : vector<5x32xf32> to vector<5x8xf32>
    %227 = math.tanh %226 : vector<5x8xf32>
    %228 = vector.extract_strided_slice %208 {offsets = [0, 24], sizes = [5, 8], strides = [1, 1]} : vector<5x32xf32> to vector<5x8xf32>
    %229 = arith.negf %228 : vector<5x8xf32>
    %230 = math.exp %229 : vector<5x8xf32>
    %cst_46 = arith.constant 1.000000e+00 : f32
    %231 = vector.broadcast %cst_46 : f32 to vector<5x8xf32>
    %232 = arith.addf %231, %230 : vector<5x8xf32>
    %233 = arith.divf %231, %232 : vector<5x8xf32>
    %234 = arith.mulf %225, %141 : vector<5x8xf32>
    %235 = arith.mulf %219, %227 : vector<5x8xf32>
    %236 = arith.addf %234, %235 : vector<5x8xf32>
    %237 = math.tanh %236 : vector<5x8xf32>
    %238 = arith.mulf %233, %237 : vector<5x8xf32>
    %239 = vector.extract_strided_slice %213 {offsets = [0, 0], sizes = [5, 8], strides = [1, 1]} : vector<5x32xf32> to vector<5x8xf32>
    %240 = arith.negf %239 : vector<5x8xf32>
    %241 = math.exp %240 : vector<5x8xf32>
    %cst_47 = arith.constant 1.000000e+00 : f32
    %242 = vector.broadcast %cst_47 : f32 to vector<5x8xf32>
    %243 = arith.addf %242, %241 : vector<5x8xf32>
    %244 = arith.divf %242, %243 : vector<5x8xf32>
    %245 = vector.extract_strided_slice %213 {offsets = [0, 8], sizes = [5, 8], strides = [1, 1]} : vector<5x32xf32> to vector<5x8xf32>
    %246 = arith.negf %245 : vector<5x8xf32>
    %247 = math.exp %246 : vector<5x8xf32>
    %cst_48 = arith.constant 1.000000e+00 : f32
    %248 = vector.broadcast %cst_48 : f32 to vector<5x8xf32>
    %249 = arith.addf %248, %247 : vector<5x8xf32>
    %250 = arith.divf %248, %249 : vector<5x8xf32>
    %251 = vector.extract_strided_slice %213 {offsets = [0, 16], sizes = [5, 8], strides = [1, 1]} : vector<5x32xf32> to vector<5x8xf32>
    %252 = math.tanh %251 : vector<5x8xf32>
    %253 = vector.extract_strided_slice %213 {offsets = [0, 24], sizes = [5, 8], strides = [1, 1]} : vector<5x32xf32> to vector<5x8xf32>
    %254 = arith.negf %253 : vector<5x8xf32>
    %255 = math.exp %254 : vector<5x8xf32>
    %cst_49 = arith.constant 1.000000e+00 : f32
    %256 = vector.broadcast %cst_49 : f32 to vector<5x8xf32>
    %257 = arith.addf %256, %255 : vector<5x8xf32>
    %258 = arith.divf %256, %257 : vector<5x8xf32>
    %259 = arith.mulf %250, %192 : vector<5x8xf32>
    %260 = arith.mulf %244, %252 : vector<5x8xf32>
    %261 = arith.addf %259, %260 : vector<5x8xf32>
    %262 = math.tanh %261 : vector<5x8xf32>
    %263 = arith.mulf %258, %262 : vector<5x8xf32>
    %264 = vector.broadcast %197 : vector<5x1xf32> to vector<5x8xf32>
    %265 = arith.mulf %238, %264 : vector<5x8xf32>
    %266 = vector.shape_cast %265 : vector<5x8xf32> to vector<5x1x8xf32>
    %c0_50 = arith.constant 0 : index
    %267 = arith.index_cast %c2_i32 : i32 to index
    %c0_51 = arith.constant 0 : index
    %268 = vector.load %arg5[%c0_50, %267, %c0_51] : memref<5x7x8xf32, #tpu.memory_space<vmem>>, vector<5x1x8xf32>
    tpu.vector_store %arg5[%c0_50, %267, %c0_51], %266 {strides = array<i32>} : memref<5x7x8xf32, #tpu.memory_space<vmem>>, vector<5x1x8xf32>,
    %269 = vector.broadcast %201 : vector<5x1xf32> to vector<5x8xf32>
    %270 = arith.mulf %269, %263 : vector<5x8xf32>
    %271 = vector.shape_cast %270 : vector<5x8xf32> to vector<5x1x8xf32>
    %c0_52 = arith.constant 0 : index
    %272 = arith.index_cast %193 : i32 to index
    %c0_53 = arith.constant 0 : index
    %273 = vector.load %arg6[%c0_52, %272, %c0_53] : memref<5x7x8xf32, #tpu.memory_space<vmem>>, vector<5x1x8xf32>
    tpu.vector_store %arg6[%c0_52, %272, %c0_53], %271 {strides = array<i32>} : memref<5x7x8xf32, #tpu.memory_space<vmem>>, vector<5x1x8xf32>,
    %274 = vector.broadcast %201 : vector<5x1xf32> to vector<5x8xf32>
    %275 = arith.mulf %274, %263 : vector<5x8xf32>
    %cst_54 = arith.constant 1.000000e+00 : f32
    %276 = vector.broadcast %cst_54 : f32 to vector<5x1xf32>
    %277 = arith.subf %276, %201 : vector<5x1xf32>
    %278 = vector.broadcast %277 : vector<5x1xf32> to vector<5x8xf32>
    %279 = arith.mulf %278, %185 : vector<5x8xf32>
    %280 = arith.addf %275, %279 : vector<5x8xf32>
    %281 = vector.broadcast %201 : vector<5x1xf32> to vector<5x8xf32>
    %282 = arith.mulf %281, %261 : vector<5x8xf32>
    %cst_55 = arith.constant 1.000000e+00 : f32
    %283 = vector.broadcast %cst_55 : f32 to vector<5x1xf32>
    %284 = arith.subf %283, %201 : vector<5x1xf32>
    %285 = vector.broadcast %284 : vector<5x1xf32> to vector<5x8xf32>
    %286 = arith.mulf %285, %192 : vector<5x8xf32>
    %287 = arith.addf %282, %286 : vector<5x8xf32>
    %c3_i32 = arith.constant 3 : i32
    %c6_i32_56 = arith.constant 6 : i32
    %288 = arith.subi %c6_i32_56, %c3_i32 : i32
    %289 = vector.broadcast %c3_i32 : i32 to vector<5x1xi32>
    %290 = arith.cmpi sgt, %1, %289 : vector<5x1xi32>
    %291 = arith.extui %290 : vector<5x1xi1> to vector<5x1xi32>
    %292 = arith.sitofp %291 : vector<5x1xi32> to vector<5x1xf32>
    %293 = vector.broadcast %288 : i32 to vector<5x1xi32>
    %294 = arith.cmpi sgt, %1, %293 : vector<5x1xi32>
    %295 = arith.extui %294 : vector<5x1xi1> to vector<5x1xi32>
    %296 = arith.sitofp %295 : vector<5x1xi32> to vector<5x1xf32>
    %297 = tpu.concatenate %238, %280 in 1 : vector<5x8xf32>, vector<5x8xf32> -> vector<5x16xf32>
    %cst_57 = arith.constant dense<0.000000e+00> : vector<5x64xf32>
    %298 = tpu.matmul %297, %0, %cst_57 {dimension_numbers = #tpu.dot_dimension_numbers<[1], [0], [0], [1], [0, 0, 1, 1], [], []>} : vector<5x16xf32>, vector<16x64xf32>, vector<5x64xf32> -> vector<5x64xf32>
    %299 = vector.extract_strided_slice %298 {offsets = [0, 0], sizes = [5, 32], strides = [1, 1]} : vector<5x64xf32> to vector<5x32xf32>
    %300 = arith.index_cast %c3_i32 : i32 to index
    %c0_58 = arith.constant 0 : index
    %c0_59 = arith.constant 0 : index
    %301 = vector.load %arg0[%300, %c0_58, %c0_59] : memref<7x5x32xf32, #tpu.memory_space<vmem>>, vector<1x5x32xf32>
    %302 = vector.shape_cast %301 : vector<1x5x32xf32> to vector<5x32xf32>
    %303 = arith.addf %299, %302 : vector<5x32xf32>
    %304 = vector.extract_strided_slice %298 {offsets = [0, 32], sizes = [5, 32], strides = [1, 1]} : vector<5x64xf32> to vector<5x32xf32>
    %305 = arith.index_cast %288 : i32 to index
    %c0_60 = arith.constant 0 : index
    %c0_61 = arith.constant 0 : index
    %306 = vector.load %arg1[%305, %c0_60, %c0_61] : memref<7x5x32xf32, #tpu.memory_space<vmem>>, vector<1x5x32xf32>
    %307 = vector.shape_cast %306 : vector<1x5x32xf32> to vector<5x32xf32>
    %308 = arith.addf %304, %307 : vector<5x32xf32>
    %309 = vector.extract_strided_slice %303 {offsets = [0, 0], sizes = [5, 8], strides = [1, 1]} : vector<5x32xf32> to vector<5x8xf32>
    %310 = arith.negf %309 : vector<5x8xf32>
    %311 = math.exp %310 : vector<5x8xf32>
    %cst_62 = arith.constant 1.000000e+00 : f32
    %312 = vector.broadcast %cst_62 : f32 to vector<5x8xf32>
    %313 = arith.addf %312, %311 : vector<5x8xf32>
    %314 = arith.divf %312, %313 : vector<5x8xf32>
    %315 = vector.extract_strided_slice %303 {offsets = [0, 8], sizes = [5, 8], strides = [1, 1]} : vector<5x32xf32> to vector<5x8xf32>
    %316 = arith.negf %315 : vector<5x8xf32>
    %317 = math.exp %316 : vector<5x8xf32>
    %cst_63 = arith.constant 1.000000e+00 : f32
    %318 = vector.broadcast %cst_63 : f32 to vector<5x8xf32>
    %319 = arith.addf %318, %317 : vector<5x8xf32>
    %320 = arith.divf %318, %319 : vector<5x8xf32>
    %321 = vector.extract_strided_slice %303 {offsets = [0, 16], sizes = [5, 8], strides = [1, 1]} : vector<5x32xf32> to vector<5x8xf32>
    %322 = math.tanh %321 : vector<5x8xf32>
    %323 = vector.extract_strided_slice %303 {offsets = [0, 24], sizes = [5, 8], strides = [1, 1]} : vector<5x32xf32> to vector<5x8xf32>
    %324 = arith.negf %323 : vector<5x8xf32>
    %325 = math.exp %324 : vector<5x8xf32>
    %cst_64 = arith.constant 1.000000e+00 : f32
    %326 = vector.broadcast %cst_64 : f32 to vector<5x8xf32>
    %327 = arith.addf %326, %325 : vector<5x8xf32>
    %328 = arith.divf %326, %327 : vector<5x8xf32>
    %329 = arith.mulf %320, %236 : vector<5x8xf32>
    %330 = arith.mulf %314, %322 : vector<5x8xf32>
    %331 = arith.addf %329, %330 : vector<5x8xf32>
    %332 = math.tanh %331 : vector<5x8xf32>
    %333 = arith.mulf %328, %332 : vector<5x8xf32>
    %334 = vector.extract_strided_slice %308 {offsets = [0, 0], sizes = [5, 8], strides = [1, 1]} : vector<5x32xf32> to vector<5x8xf32>
    %335 = arith.negf %334 : vector<5x8xf32>
    %336 = math.exp %335 : vector<5x8xf32>
    %cst_65 = arith.constant 1.000000e+00 : f32
    %337 = vector.broadcast %cst_65 : f32 to vector<5x8xf32>
    %338 = arith.addf %337, %336 : vector<5x8xf32>
    %339 = arith.divf %337, %338 : vector<5x8xf32>
    %340 = vector.extract_strided_slice %308 {offsets = [0, 8], sizes = [5, 8], strides = [1, 1]} : vector<5x32xf32> to vector<5x8xf32>
    %341 = arith.negf %340 : vector<5x8xf32>
    %342 = math.exp %341 : vector<5x8xf32>
    %cst_66 = arith.constant 1.000000e+00 : f32
    %343 = vector.broadcast %cst_66 : f32 to vector<5x8xf32>
    %344 = arith.addf %343, %342 : vector<5x8xf32>
    %345 = arith.divf %343, %344 : vector<5x8xf32>
    %346 = vector.extract_strided_slice %308 {offsets = [0, 16], sizes = [5, 8], strides = [1, 1]} : vector<5x32xf32> to vector<5x8xf32>
    %347 = math.tanh %346 : vector<5x8xf32>
    %348 = vector.extract_strided_slice %308 {offsets = [0, 24], sizes = [5, 8], strides = [1, 1]} : vector<5x32xf32> to vector<5x8xf32>
    %349 = arith.negf %348 : vector<5x8xf32>
    %350 = math.exp %349 : vector<5x8xf32>
    %cst_67 = arith.constant 1.000000e+00 : f32
    %351 = vector.broadcast %cst_67 : f32 to vector<5x8xf32>
    %352 = arith.addf %351, %350 : vector<5x8xf32>
    %353 = arith.divf %351, %352 : vector<5x8xf32>
    %354 = arith.mulf %345, %287 : vector<5x8xf32>
    %355 = arith.mulf %339, %347 : vector<5x8xf32>
    %356 = arith.addf %354, %355 : vector<5x8xf32>
    %357 = math.tanh %356 : vector<5x8xf32>
    %358 = arith.mulf %353, %357 : vector<5x8xf32>
    %359 = vector.broadcast %292 : vector<5x1xf32> to vector<5x8xf32>
    %360 = arith.mulf %333, %359 : vector<5x8xf32>
    %361 = vector.shape_cast %360 : vector<5x8xf32> to vector<5x1x8xf32>
    %c0_68 = arith.constant 0 : index
    %362 = arith.index_cast %c3_i32 : i32 to index
    %c0_69 = arith.constant 0 : index
    %363 = vector.load %arg5[%c0_68, %362, %c0_69] : memref<5x7x8xf32, #tpu.memory_space<vmem>>, vector<5x1x8xf32>
    tpu.vector_store %arg5[%c0_68, %362, %c0_69], %361 {strides = array<i32>} : memref<5x7x8xf32, #tpu.memory_space<vmem>>, vector<5x1x8xf32>,
    %364 = vector.broadcast %296 : vector<5x1xf32> to vector<5x8xf32>
    %365 = arith.mulf %364, %358 : vector<5x8xf32>
    %366 = vector.shape_cast %365 : vector<5x8xf32> to vector<5x1x8xf32>
    %c0_70 = arith.constant 0 : index
    %367 = arith.index_cast %288 : i32 to index
    %c0_71 = arith.constant 0 : index
    %368 = vector.load %arg6[%c0_70, %367, %c0_71] : memref<5x7x8xf32, #tpu.memory_space<vmem>>, vector<5x1x8xf32>
    tpu.vector_store %arg6[%c0_70, %367, %c0_71], %366 {strides = array<i32>} : memref<5x7x8xf32, #tpu.memory_space<vmem>>, vector<5x1x8xf32>,
    %369 = vector.broadcast %296 : vector<5x1xf32> to vector<5x8xf32>
    %370 = arith.mulf %369, %358 : vector<5x8xf32>
    %cst_72 = arith.constant 1.000000e+00 : f32
    %371 = vector.broadcast %cst_72 : f32 to vector<5x1xf32>
    %372 = arith.subf %371, %296 : vector<5x1xf32>
    %373 = vector.broadcast %372 : vector<5x1xf32> to vector<5x8xf32>
    %374 = arith.mulf %373, %280 : vector<5x8xf32>
    %375 = arith.addf %370, %374 : vector<5x8xf32>
    %376 = vector.broadcast %296 : vector<5x1xf32> to vector<5x8xf32>
    %377 = arith.mulf %376, %356 : vector<5x8xf32>
    %cst_73 = arith.constant 1.000000e+00 : f32
    %378 = vector.broadcast %cst_73 : f32 to vector<5x1xf32>
    %379 = arith.subf %378, %296 : vector<5x1xf32>
    %380 = vector.broadcast %379 : vector<5x1xf32> to vector<5x8xf32>
    %381 = arith.mulf %380, %287 : vector<5x8xf32>
    %382 = arith.addf %377, %381 : vector<5x8xf32>
    %c4_i32 = arith.constant 4 : i32
    %c6_i32_74 = arith.constant 6 : i32
    %383 = arith.subi %c6_i32_74, %c4_i32 : i32
    %384 = vector.broadcast %c4_i32 : i32 to vector<5x1xi32>
    %385 = arith.cmpi sgt, %1, %384 : vector<5x1xi32>
    %386 = arith.extui %385 : vector<5x1xi1> to vector<5x1xi32>
    %387 = arith.sitofp %386 : vector<5x1xi32> to vector<5x1xf32>
    %388 = vector.broadcast %383 : i32 to vector<5x1xi32>
    %389 = arith.cmpi sgt, %1, %388 : vector<5x1xi32>
    %390 = arith.extui %389 : vector<5x1xi1> to vector<5x1xi32>
    %391 = arith.sitofp %390 : vector<5x1xi32> to vector<5x1xf32>
    %392 = tpu.concatenate %333, %375 in 1 : vector<5x8xf32>, vector<5x8xf32> -> vector<5x16xf32>
    %cst_75 = arith.constant dense<0.000000e+00> : vector<5x64xf32>
    %393 = tpu.matmul %392, %0, %cst_75 {dimension_numbers = #tpu.dot_dimension_numbers<[1], [0], [0], [1], [0, 0, 1, 1], [], []>} : vector<5x16xf32>, vector<16x64xf32>, vector<5x64xf32> -> vector<5x64xf32>
    %394 = vector.extract_strided_slice %393 {offsets = [0, 0], sizes = [5, 32], strides = [1, 1]} : vector<5x64xf32> to vector<5x32xf32>
    %395 = arith.index_cast %c4_i32 : i32 to index
    %c0_76 = arith.constant 0 : index
    %c0_77 = arith.constant 0 : index
    %396 = vector.load %arg0[%395, %c0_76, %c0_77] : memref<7x5x32xf32, #tpu.memory_space<vmem>>, vector<1x5x32xf32>
    %397 = vector.shape_cast %396 : vector<1x5x32xf32> to vector<5x32xf32>
    %398 = arith.addf %394, %397 : vector<5x32xf32>
    %399 = vector.extract_strided_slice %393 {offsets = [0, 32], sizes = [5, 32], strides = [1, 1]} : vector<5x64xf32> to vector<5x32xf32>
    %400 = arith.index_cast %383 : i32 to index
    %c0_78 = arith.constant 0 : index
    %c0_79 = arith.constant 0 : index
    %401 = vector.load %arg1[%400, %c0_78, %c0_79] : memref<7x5x32xf32, #tpu.memory_space<vmem>>, vector<1x5x32xf32>
    %402 = vector.shape_cast %401 : vector<1x5x32xf32> to vector<5x32xf32>
    %403 = arith.addf %399, %402 : vector<5x32xf32>
    %404 = vector.extract_strided_slice %398 {offsets = [0, 0], sizes = [5, 8], strides = [1, 1]} : vector<5x32xf32> to vector<5x8xf32>
    %405 = arith.negf %404 : vector<5x8xf32>
    %406 = math.exp %405 : vector<5x8xf32>
    %cst_80 = arith.constant 1.000000e+00 : f32
    %407 = vector.broadcast %cst_80 : f32 to vector<5x8xf32>
    %408 = arith.addf %407, %406 : vector<5x8xf32>
    %409 = arith.divf %407, %408 : vector<5x8xf32>
    %410 = vector.extract_strided_slice %398 {offsets = [0, 8], sizes = [5, 8], strides = [1, 1]} : vector<5x32xf32> to vector<5x8xf32>
    %411 = arith.negf %410 : vector<5x8xf32>
    %412 = math.exp %411 : vector<5x8xf32>
    %cst_81 = arith.constant 1.000000e+00 : f32
    %413 = vector.broadcast %cst_81 : f32 to vector<5x8xf32>
    %414 = arith.addf %413, %412 : vector<5x8xf32>
    %415 = arith.divf %413, %414 : vector<5x8xf32>
    %416 = vector.extract_strided_slice %398 {offsets = [0, 16], sizes = [5, 8], strides = [1, 1]} : vector<5x32xf32> to vector<5x8xf32>
    %417 = math.tanh %416 : vector<5x8xf32>
    %418 = vector.extract_strided_slice %398 {offsets = [0, 24], sizes = [5, 8], strides = [1, 1]} : vector<5x32xf32> to vector<5x8xf32>
    %419 = arith.negf %418 : vector<5x8xf32>
    %420 = math.exp %419 : vector<5x8xf32>
    %cst_82 = arith.constant 1.000000e+00 : f32
    %421 = vector.broadcast %cst_82 : f32 to vector<5x8xf32>
    %422 = arith.addf %421, %420 : vector<5x8xf32>
    %423 = arith.divf %421, %422 : vector<5x8xf32>
    %424 = arith.mulf %415, %331 : vector<5x8xf32>
    %425 = arith.mulf %409, %417 : vector<5x8xf32>
    %426 = arith.addf %424, %425 : vector<5x8xf32>
    %427 = math.tanh %426 : vector<5x8xf32>
    %428 = arith.mulf %423, %427 : vector<5x8xf32>
    %429 = vector.extract_strided_slice %403 {offsets = [0, 0], sizes = [5, 8], strides = [1, 1]} : vector<5x32xf32> to vector<5x8xf32>
    %430 = arith.negf %429 : vector<5x8xf32>
    %431 = math.exp %430 : vector<5x8xf32>
    %cst_83 = arith.constant 1.000000e+00 : f32
    %432 = vector.broadcast %cst_83 : f32 to vector<5x8xf32>
    %433 = arith.addf %432, %431 : vector<5x8xf32>
    %434 = arith.divf %432, %433 : vector<5x8xf32>
    %435 = vector.extract_strided_slice %403 {offsets = [0, 8], sizes = [5, 8], strides = [1, 1]} : vector<5x32xf32> to vector<5x8xf32>
    %436 = arith.negf %435 : vector<5x8xf32>
    %437 = math.exp %436 : vector<5x8xf32>
    %cst_84 = arith.constant 1.000000e+00 : f32
    %438 = vector.broadcast %cst_84 : f32 to vector<5x8xf32>
    %439 = arith.addf %438, %437 : vector<5x8xf32>
    %440 = arith.divf %438, %439 : vector<5x8xf32>
    %441 = vector.extract_strided_slice %403 {offsets = [0, 16], sizes = [5, 8], strides = [1, 1]} : vector<5x32xf32> to vector<5x8xf32>
    %442 = math.tanh %441 : vector<5x8xf32>
    %443 = vector.extract_strided_slice %403 {offsets = [0, 24], sizes = [5, 8], strides = [1, 1]} : vector<5x32xf32> to vector<5x8xf32>
    %444 = arith.negf %443 : vector<5x8xf32>
    %445 = math.exp %444 : vector<5x8xf32>
    %cst_85 = arith.constant 1.000000e+00 : f32
    %446 = vector.broadcast %cst_85 : f32 to vector<5x8xf32>
    %447 = arith.addf %446, %445 : vector<5x8xf32>
    %448 = arith.divf %446, %447 : vector<5x8xf32>
    %449 = arith.mulf %440, %382 : vector<5x8xf32>
    %450 = arith.mulf %434, %442 : vector<5x8xf32>
    %451 = arith.addf %449, %450 : vector<5x8xf32>
    %452 = math.tanh %451 : vector<5x8xf32>
    %453 = arith.mulf %448, %452 : vector<5x8xf32>
    %454 = vector.broadcast %387 : vector<5x1xf32> to vector<5x8xf32>
    %455 = arith.mulf %428, %454 : vector<5x8xf32>
    %456 = vector.shape_cast %455 : vector<5x8xf32> to vector<5x1x8xf32>
    %c0_86 = arith.constant 0 : index
    %457 = arith.index_cast %c4_i32 : i32 to index
    %c0_87 = arith.constant 0 : index
    %458 = vector.load %arg5[%c0_86, %457, %c0_87] : memref<5x7x8xf32, #tpu.memory_space<vmem>>, vector<5x1x8xf32>
    tpu.vector_store %arg5[%c0_86, %457, %c0_87], %456 {strides = array<i32>} : memref<5x7x8xf32, #tpu.memory_space<vmem>>, vector<5x1x8xf32>,
    %459 = vector.broadcast %391 : vector<5x1xf32> to vector<5x8xf32>
    %460 = arith.mulf %459, %453 : vector<5x8xf32>
    %461 = vector.shape_cast %460 : vector<5x8xf32> to vector<5x1x8xf32>
    %c0_88 = arith.constant 0 : index
    %462 = arith.index_cast %383 : i32 to index
    %c0_89 = arith.constant 0 : index
    %463 = vector.load %arg6[%c0_88, %462, %c0_89] : memref<5x7x8xf32, #tpu.memory_space<vmem>>, vector<5x1x8xf32>
    tpu.vector_store %arg6[%c0_88, %462, %c0_89], %461 {strides = array<i32>} : memref<5x7x8xf32, #tpu.memory_space<vmem>>, vector<5x1x8xf32>,
    %464 = vector.broadcast %391 : vector<5x1xf32> to vector<5x8xf32>
    %465 = arith.mulf %464, %453 : vector<5x8xf32>
    %cst_90 = arith.constant 1.000000e+00 : f32
    %466 = vector.broadcast %cst_90 : f32 to vector<5x1xf32>
    %467 = arith.subf %466, %391 : vector<5x1xf32>
    %468 = vector.broadcast %467 : vector<5x1xf32> to vector<5x8xf32>
    %469 = arith.mulf %468, %375 : vector<5x8xf32>
    %470 = arith.addf %465, %469 : vector<5x8xf32>
    %471 = vector.broadcast %391 : vector<5x1xf32> to vector<5x8xf32>
    %472 = arith.mulf %471, %451 : vector<5x8xf32>
    %cst_91 = arith.constant 1.000000e+00 : f32
    %473 = vector.broadcast %cst_91 : f32 to vector<5x1xf32>
    %474 = arith.subf %473, %391 : vector<5x1xf32>
    %475 = vector.broadcast %474 : vector<5x1xf32> to vector<5x8xf32>
    %476 = arith.mulf %475, %382 : vector<5x8xf32>
    %477 = arith.addf %472, %476 : vector<5x8xf32>
    %c5_i32 = arith.constant 5 : i32
    %c6_i32_92 = arith.constant 6 : i32
    %478 = arith.subi %c6_i32_92, %c5_i32 : i32
    %479 = vector.broadcast %c5_i32 : i32 to vector<5x1xi32>
    %480 = arith.cmpi sgt, %1, %479 : vector<5x1xi32>
    %481 = arith.extui %480 : vector<5x1xi1> to vector<5x1xi32>
    %482 = arith.sitofp %481 : vector<5x1xi32> to vector<5x1xf32>
    %483 = vector.broadcast %478 : i32 to vector<5x1xi32>
    %484 = arith.cmpi sgt, %1, %483 : vector<5x1xi32>
    %485 = arith.extui %484 : vector<5x1xi1> to vector<5x1xi32>
    %486 = arith.sitofp %485 : vector<5x1xi32> to vector<5x1xf32>
    %487 = tpu.concatenate %428, %470 in 1 : vector<5x8xf32>, vector<5x8xf32> -> vector<5x16xf32>
    %cst_93 = arith.constant dense<0.000000e+00> : vector<5x64xf32>
    %488 = tpu.matmul %487, %0, %cst_93 {dimension_numbers = #tpu.dot_dimension_numbers<[1], [0], [0], [1], [0, 0, 1, 1], [], []>} : vector<5x16xf32>, vector<16x64xf32>, vector<5x64xf32> -> vector<5x64xf32>
    %489 = vector.extract_strided_slice %488 {offsets = [0, 0], sizes = [5, 32], strides = [1, 1]} : vector<5x64xf32> to vector<5x32xf32>
    %490 = arith.index_cast %c5_i32 : i32 to index
    %c0_94 = arith.constant 0 : index
    %c0_95 = arith.constant 0 : index
    %491 = vector.load %arg0[%490, %c0_94, %c0_95] : memref<7x5x32xf32, #tpu.memory_space<vmem>>, vector<1x5x32xf32>
    %492 = vector.shape_cast %491 : vector<1x5x32xf32> to vector<5x32xf32>
    %493 = arith.addf %489, %492 : vector<5x32xf32>
    %494 = vector.extract_strided_slice %488 {offsets = [0, 32], sizes = [5, 32], strides = [1, 1]} : vector<5x64xf32> to vector<5x32xf32>
    %495 = arith.index_cast %478 : i32 to index
    %c0_96 = arith.constant 0 : index
    %c0_97 = arith.constant 0 : index
    %496 = vector.load %arg1[%495, %c0_96, %c0_97] : memref<7x5x32xf32, #tpu.memory_space<vmem>>, vector<1x5x32xf32>
    %497 = vector.shape_cast %496 : vector<1x5x32xf32> to vector<5x32xf32>
    %498 = arith.addf %494, %497 : vector<5x32xf32>
    %499 = vector.extract_strided_slice %493 {offsets = [0, 0], sizes = [5, 8], strides = [1, 1]} : vector<5x32xf32> to vector<5x8xf32>
    %500 = arith.negf %499 : vector<5x8xf32>
    %501 = math.exp %500 : vector<5x8xf32>
    %cst_98 = arith.constant 1.000000e+00 : f32
    %502 = vector.broadcast %cst_98 : f32 to vector<5x8xf32>
    %503 = arith.addf %502, %501 : vector<5x8xf32>
    %504 = arith.divf %502, %503 : vector<5x8xf32>
    %505 = vector.extract_strided_slice %493 {offsets = [0, 8], sizes = [5, 8], strides = [1, 1]} : vector<5x32xf32> to vector<5x8xf32>
    %506 = arith.negf %505 : vector<5x8xf32>
    %507 = math.exp %506 : vector<5x8xf32>
    %cst_99 = arith.constant 1.000000e+00 : f32
    %508 = vector.broadcast %cst_99 : f32 to vector<5x8xf32>
    %509 = arith.addf %508, %507 : vector<5x8xf32>
    %510 = arith.divf %508, %509 : vector<5x8xf32>
    %511 = vector.extract_strided_slice %493 {offsets = [0, 16], sizes = [5, 8], strides = [1, 1]} : vector<5x32xf32> to vector<5x8xf32>
    %512 = math.tanh %511 : vector<5x8xf32>
    %513 = vector.extract_strided_slice %493 {offsets = [0, 24], sizes = [5, 8], strides = [1, 1]} : vector<5x32xf32> to vector<5x8xf32>
    %514 = arith.negf %513 : vector<5x8xf32>
    %515 = math.exp %514 : vector<5x8xf32>
    %cst_100 = arith.constant 1.000000e+00 : f32
    %516 = vector.broadcast %cst_100 : f32 to vector<5x8xf32>
    %517 = arith.addf %516, %515 : vector<5x8xf32>
    %518 = arith.divf %516, %517 : vector<5x8xf32>
    %519 = arith.mulf %510, %426 : vector<5x8xf32>
    %520 = arith.mulf %504, %512 : vector<5x8xf32>
    %521 = arith.addf %519, %520 : vector<5x8xf32>
    %522 = math.tanh %521 : vector<5x8xf32>
    %523 = arith.mulf %518, %522 : vector<5x8xf32>
    %524 = vector.extract_strided_slice %498 {offsets = [0, 0], sizes = [5, 8], strides = [1, 1]} : vector<5x32xf32> to vector<5x8xf32>
    %525 = arith.negf %524 : vector<5x8xf32>
    %526 = math.exp %525 : vector<5x8xf32>
    %cst_101 = arith.constant 1.000000e+00 : f32
    %527 = vector.broadcast %cst_101 : f32 to vector<5x8xf32>
    %528 = arith.addf %527, %526 : vector<5x8xf32>
    %529 = arith.divf %527, %528 : vector<5x8xf32>
    %530 = vector.extract_strided_slice %498 {offsets = [0, 8], sizes = [5, 8], strides = [1, 1]} : vector<5x32xf32> to vector<5x8xf32>
    %531 = arith.negf %530 : vector<5x8xf32>
    %532 = math.exp %531 : vector<5x8xf32>
    %cst_102 = arith.constant 1.000000e+00 : f32
    %533 = vector.broadcast %cst_102 : f32 to vector<5x8xf32>
    %534 = arith.addf %533, %532 : vector<5x8xf32>
    %535 = arith.divf %533, %534 : vector<5x8xf32>
    %536 = vector.extract_strided_slice %498 {offsets = [0, 16], sizes = [5, 8], strides = [1, 1]} : vector<5x32xf32> to vector<5x8xf32>
    %537 = math.tanh %536 : vector<5x8xf32>
    %538 = vector.extract_strided_slice %498 {offsets = [0, 24], sizes = [5, 8], strides = [1, 1]} : vector<5x32xf32> to vector<5x8xf32>
    %539 = arith.negf %538 : vector<5x8xf32>
    %540 = math.exp %539 : vector<5x8xf32>
    %cst_103 = arith.constant 1.000000e+00 : f32
    %541 = vector.broadcast %cst_103 : f32 to vector<5x8xf32>
    %542 = arith.addf %541, %540 : vector<5x8xf32>
    %543 = arith.divf %541, %542 : vector<5x8xf32>
    %544 = arith.mulf %535, %477 : vector<5x8xf32>
    %545 = arith.mulf %529, %537 : vector<5x8xf32>
    %546 = arith.addf %544, %545 : vector<5x8xf32>
    %547 = math.tanh %546 : vector<5x8xf32>
    %548 = arith.mulf %543, %547 : vector<5x8xf32>
    %549 = vector.broadcast %482 : vector<5x1xf32> to vector<5x8xf32>
    %550 = arith.mulf %523, %549 : vector<5x8xf32>
    %551 = vector.shape_cast %550 : vector<5x8xf32> to vector<5x1x8xf32>
    %c0_104 = arith.constant 0 : index
    %552 = arith.index_cast %c5_i32 : i32 to index
    %c0_105 = arith.constant 0 : index
    %553 = vector.load %arg5[%c0_104, %552, %c0_105] : memref<5x7x8xf32, #tpu.memory_space<vmem>>, vector<5x1x8xf32>
    tpu.vector_store %arg5[%c0_104, %552, %c0_105], %551 {strides = array<i32>} : memref<5x7x8xf32, #tpu.memory_space<vmem>>, vector<5x1x8xf32>,
    %554 = vector.broadcast %486 : vector<5x1xf32> to vector<5x8xf32>
    %555 = arith.mulf %554, %548 : vector<5x8xf32>
    %556 = vector.shape_cast %555 : vector<5x8xf32> to vector<5x1x8xf32>
    %c0_106 = arith.constant 0 : index
    %557 = arith.index_cast %478 : i32 to index
    %c0_107 = arith.constant 0 : index
    %558 = vector.load %arg6[%c0_106, %557, %c0_107] : memref<5x7x8xf32, #tpu.memory_space<vmem>>, vector<5x1x8xf32>
    tpu.vector_store %arg6[%c0_106, %557, %c0_107], %556 {strides = array<i32>} : memref<5x7x8xf32, #tpu.memory_space<vmem>>, vector<5x1x8xf32>,
    %559 = vector.broadcast %486 : vector<5x1xf32> to vector<5x8xf32>
    %560 = arith.mulf %559, %548 : vector<5x8xf32>
    %cst_108 = arith.constant 1.000000e+00 : f32
    %561 = vector.broadcast %cst_108 : f32 to vector<5x1xf32>
    %562 = arith.subf %561, %486 : vector<5x1xf32>
    %563 = vector.broadcast %562 : vector<5x1xf32> to vector<5x8xf32>
    %564 = arith.mulf %563, %470 : vector<5x8xf32>
    %565 = arith.addf %560, %564 : vector<5x8xf32>
    %566 = vector.broadcast %486 : vector<5x1xf32> to vector<5x8xf32>
    %567 = arith.mulf %566, %546 : vector<5x8xf32>
    %cst_109 = arith.constant 1.000000e+00 : f32
    %568 = vector.broadcast %cst_109 : f32 to vector<5x1xf32>
    %569 = arith.subf %568, %486 : vector<5x1xf32>
    %570 = vector.broadcast %569 : vector<5x1xf32> to vector<5x8xf32>
    %571 = arith.mulf %570, %477 : vector<5x8xf32>
    %572 = arith.addf %567, %571 : vector<5x8xf32>
    %c6_i32_110 = arith.constant 6 : i32
    %c6_i32_111 = arith.constant 6 : i32
    %573 = arith.subi %c6_i32_111, %c6_i32_110 : i32
    %574 = vector.broadcast %c6_i32_110 : i32 to vector<5x1xi32>
    %575 = arith.cmpi sgt, %1, %574 : vector<5x1xi32>
    %576 = arith.extui %575 : vector<5x1xi1> to vector<5x1xi32>
    %577 = arith.sitofp %576 : vector<5x1xi32> to vector<5x1xf32>
    %578 = vector.broadcast %573 : i32 to vector<5x1xi32>
    %579 = arith.cmpi sgt, %1, %578 : vector<5x1xi32>
    %580 = arith.extui %579 : vector<5x1xi1> to vector<5x1xi32>
    %581 = arith.sitofp %580 : vector<5x1xi32> to vector<5x1xf32>
    %582 = tpu.concatenate %523, %565 in 1 : vector<5x8xf32>, vector<5x8xf32> -> vector<5x16xf32>
    %cst_112 = arith.constant dense<0.000000e+00> : vector<5x64xf32>
    %583 = tpu.matmul %582, %0, %cst_112 {dimension_numbers = #tpu.dot_dimension_numbers<[1], [0], [0], [1], [0, 0, 1, 1], [], []>} : vector<5x16xf32>, vector<16x64xf32>, vector<5x64xf32> -> vector<5x64xf32>
    %584 = vector.extract_strided_slice %583 {offsets = [0, 0], sizes = [5, 32], strides = [1, 1]} : vector<5x64xf32> to vector<5x32xf32>
    %585 = arith.index_cast %c6_i32_110 : i32 to index
    %c0_113 = arith.constant 0 : index
    %c0_114 = arith.constant 0 : index
    %586 = vector.load %arg0[%585, %c0_113, %c0_114] : memref<7x5x32xf32, #tpu.memory_space<vmem>>, vector<1x5x32xf32>
    %587 = vector.shape_cast %586 : vector<1x5x32xf32> to vector<5x32xf32>
    %588 = arith.addf %584, %587 : vector<5x32xf32>
    %589 = vector.extract_strided_slice %583 {offsets = [0, 32], sizes = [5, 32], strides = [1, 1]} : vector<5x64xf32> to vector<5x32xf32>
    %590 = arith.index_cast %573 : i32 to index
    %c0_115 = arith.constant 0 : index
    %c0_116 = arith.constant 0 : index
    %591 = vector.load %arg1[%590, %c0_115, %c0_116] : memref<7x5x32xf32, #tpu.memory_space<vmem>>, vector<1x5x32xf32>
    %592 = vector.shape_cast %591 : vector<1x5x32xf32> to vector<5x32xf32>
    %593 = arith.addf %589, %592 : vector<5x32xf32>
    %594 = vector.extract_strided_slice %588 {offsets = [0, 0], sizes = [5, 8], strides = [1, 1]} : vector<5x32xf32> to vector<5x8xf32>
    %595 = arith.negf %594 : vector<5x8xf32>
    %596 = math.exp %595 : vector<5x8xf32>
    %cst_117 = arith.constant 1.000000e+00 : f32
    %597 = vector.broadcast %cst_117 : f32 to vector<5x8xf32>
    %598 = arith.addf %597, %596 : vector<5x8xf32>
    %599 = arith.divf %597, %598 : vector<5x8xf32>
    %600 = vector.extract_strided_slice %588 {offsets = [0, 8], sizes = [5, 8], strides = [1, 1]} : vector<5x32xf32> to vector<5x8xf32>
    %601 = arith.negf %600 : vector<5x8xf32>
    %602 = math.exp %601 : vector<5x8xf32>
    %cst_118 = arith.constant 1.000000e+00 : f32
    %603 = vector.broadcast %cst_118 : f32 to vector<5x8xf32>
    %604 = arith.addf %603, %602 : vector<5x8xf32>
    %605 = arith.divf %603, %604 : vector<5x8xf32>
    %606 = vector.extract_strided_slice %588 {offsets = [0, 16], sizes = [5, 8], strides = [1, 1]} : vector<5x32xf32> to vector<5x8xf32>
    %607 = math.tanh %606 : vector<5x8xf32>
    %608 = vector.extract_strided_slice %588 {offsets = [0, 24], sizes = [5, 8], strides = [1, 1]} : vector<5x32xf32> to vector<5x8xf32>
    %609 = arith.negf %608 : vector<5x8xf32>
    %610 = math.exp %609 : vector<5x8xf32>
    %cst_119 = arith.constant 1.000000e+00 : f32
    %611 = vector.broadcast %cst_119 : f32 to vector<5x8xf32>
    %612 = arith.addf %611, %610 : vector<5x8xf32>
    %613 = arith.divf %611, %612 : vector<5x8xf32>
    %614 = arith.mulf %605, %521 : vector<5x8xf32>
    %615 = arith.mulf %599, %607 : vector<5x8xf32>
    %616 = arith.addf %614, %615 : vector<5x8xf32>
    %617 = math.tanh %616 : vector<5x8xf32>
    %618 = arith.mulf %613, %617 : vector<5x8xf32>
    %619 = vector.extract_strided_slice %593 {offsets = [0, 0], sizes = [5, 8], strides = [1, 1]} : vector<5x32xf32> to vector<5x8xf32>
    %620 = arith.negf %619 : vector<5x8xf32>
    %621 = math.exp %620 : vector<5x8xf32>
    %cst_120 = arith.constant 1.000000e+00 : f32
    %622 = vector.broadcast %cst_120 : f32 to vector<5x8xf32>
    %623 = arith.addf %622, %621 : vector<5x8xf32>
    %624 = arith.divf %622, %623 : vector<5x8xf32>
    %625 = vector.extract_strided_slice %593 {offsets = [0, 8], sizes = [5, 8], strides = [1, 1]} : vector<5x32xf32> to vector<5x8xf32>
    %626 = arith.negf %625 : vector<5x8xf32>
    %627 = math.exp %626 : vector<5x8xf32>
    %cst_121 = arith.constant 1.000000e+00 : f32
    %628 = vector.broadcast %cst_121 : f32 to vector<5x8xf32>
    %629 = arith.addf %628, %627 : vector<5x8xf32>
    %630 = arith.divf %628, %629 : vector<5x8xf32>
    %631 = vector.extract_strided_slice %593 {offsets = [0, 16], sizes = [5, 8], strides = [1, 1]} : vector<5x32xf32> to vector<5x8xf32>
    %632 = math.tanh %631 : vector<5x8xf32>
    %633 = vector.extract_strided_slice %593 {offsets = [0, 24], sizes = [5, 8], strides = [1, 1]} : vector<5x32xf32> to vector<5x8xf32>
    %634 = arith.negf %633 : vector<5x8xf32>
    %635 = math.exp %634 : vector<5x8xf32>
    %cst_122 = arith.constant 1.000000e+00 : f32
    %636 = vector.broadcast %cst_122 : f32 to vector<5x8xf32>
    %637 = arith.addf %636, %635 : vector<5x8xf32>
    %638 = arith.divf %636, %637 : vector<5x8xf32>
    %639 = arith.mulf %630, %572 : vector<5x8xf32>
    %640 = arith.mulf %624, %632 : vector<5x8xf32>
    %641 = arith.addf %639, %640 : vector<5x8xf32>
    %642 = math.tanh %641 : vector<5x8xf32>
    %643 = arith.mulf %638, %642 : vector<5x8xf32>
    %644 = vector.broadcast %577 : vector<5x1xf32> to vector<5x8xf32>
    %645 = arith.mulf %618, %644 : vector<5x8xf32>
    %646 = vector.shape_cast %645 : vector<5x8xf32> to vector<5x1x8xf32>
    %c0_123 = arith.constant 0 : index
    %647 = arith.index_cast %c6_i32_110 : i32 to index
    %c0_124 = arith.constant 0 : index
    %648 = vector.load %arg5[%c0_123, %647, %c0_124] : memref<5x7x8xf32, #tpu.memory_space<vmem>>, vector<5x1x8xf32>
    tpu.vector_store %arg5[%c0_123, %647, %c0_124], %646 {strides = array<i32>} : memref<5x7x8xf32, #tpu.memory_space<vmem>>, vector<5x1x8xf32>,
    %649 = vector.broadcast %581 : vector<5x1xf32> to vector<5x8xf32>
    %650 = arith.mulf %649, %643 : vector<5x8xf32>
    %651 = vector.shape_cast %650 : vector<5x8xf32> to vector<5x1x8xf32>
    %c0_125 = arith.constant 0 : index
    %652 = arith.index_cast %573 : i32 to index
    %c0_126 = arith.constant 0 : index
    %653 = vector.load %arg6[%c0_125, %652, %c0_126] : memref<5x7x8xf32, #tpu.memory_space<vmem>>, vector<5x1x8xf32>
    tpu.vector_store %arg6[%c0_125, %652, %c0_126], %651 {strides = array<i32>} : memref<5x7x8xf32, #tpu.memory_space<vmem>>, vector<5x1x8xf32>,
    %654 = vector.broadcast %581 : vector<5x1xf32> to vector<5x8xf32>
    %655 = arith.mulf %654, %643 : vector<5x8xf32>
    %cst_127 = arith.constant 1.000000e+00 : f32
    %656 = vector.broadcast %cst_127 : f32 to vector<5x1xf32>
    %657 = arith.subf %656, %581 : vector<5x1xf32>
    %658 = vector.broadcast %657 : vector<5x1xf32> to vector<5x8xf32>
    %659 = arith.mulf %658, %565 : vector<5x8xf32>
    %660 = arith.addf %655, %659 : vector<5x8xf32>
    %661 = vector.broadcast %581 : vector<5x1xf32> to vector<5x8xf32>
    %662 = arith.mulf %661, %641 : vector<5x8xf32>
    %cst_128 = arith.constant 1.000000e+00 : f32
    %663 = vector.broadcast %cst_128 : f32 to vector<5x1xf32>
    %664 = arith.subf %663, %581 : vector<5x1xf32>
    %665 = vector.broadcast %664 : vector<5x1xf32> to vector<5x8xf32>
    %666 = arith.mulf %665, %572 : vector<5x8xf32>
    %667 = arith.addf %662, %666 : vector<5x8xf32>
    %c7_i32 = arith.constant 7 : i32
    %c0_129 = arith.constant 0 : index
    %c0_130 = arith.constant 0 : index
    %c0_131 = arith.constant 0 : index
    %668 = vector.load %arg5[%c0_129, %c0_130, %c0_131] : memref<5x7x8xf32, #tpu.memory_space<vmem>>, vector<5x7x8xf32>
    %c0_132 = arith.constant 0 : index
    %c0_133 = arith.constant 0 : index
    %c0_134 = arith.constant 0 : index
    %669 = vector.load %arg6[%c0_132, %c0_133, %c0_134] : memref<5x7x8xf32, #tpu.memory_space<vmem>>, vector<5x7x8xf32>
    %670 = tpu.concatenate %668, %669 in 2 : vector<5x7x8xf32>, vector<5x7x8xf32> -> vector<5x7x16xf32>
    %cst_135 = arith.constant 2.500000e-01 : f32
    %671 = vector.broadcast %cst_135 : f32 to vector<5x7x16xf32>
    %672 = arith.mulf %670, %671 : vector<5x7x16xf32>
    %673 = vector.extract_strided_slice %672 {offsets = [1, 0, 0], sizes = [4, 7, 16], strides = [1, 1, 1]} : vector<5x7x16xf32> to vector<4x7x16xf32>
    %cst_136 = arith.constant 0.000000e+00 : f32
    %674 = vector.broadcast %cst_136 : f32 to vector<1x7x16xf32>
    %675 = tpu.concatenate %673, %674 in 0 : vector<4x7x16xf32>, vector<1x7x16xf32> -> vector<5x7x16xf32>
    %676 = tpu.concatenate %672, %675 in 0 : vector<5x7x16xf32>, vector<5x7x16xf32> -> vector<10x7x16xf32>
    %677 = tpu.concatenate %670, %670 in 0 : vector<5x7x16xf32>, vector<5x7x16xf32> -> vector<10x7x16xf32>
    "tpu.trace_start"() <{level = 10 : i32, message = "ctd,csd->cts"}> : () -> ()
    %cst_137 = arith.constant dense<0.000000e+00> : vector<10x7x7xf32>
    %678 = tpu.matmul %676, %677, %cst_137 {dimension_numbers = #tpu.dot_dimension_numbers<[2], [2], [1], [1], [0, 0, 0, 1, 1, 1], [0], [0]>} : vector<10x7x16xf32>, vector<10x7x16xf32>, vector<10x7x7xf32> -> vector<10x7x7xf32>
    "tpu.trace_stop"() : () -> ()
    %cst_138 = arith.constant dense<0xFF800000> : vector<10x7xf32>
    %679 = vector.multi_reduction <maximumf>, %678, %cst_138 [2] : vector<10x7x7xf32> to vector<10x7xf32>
    %680 = vector.shape_cast %679 : vector<10x7xf32> to vector<10x7x1xf32>
    %681 = vector.broadcast %680 : vector<10x7x1xf32> to vector<10x7x7xf32>
    %682 = arith.subf %678, %681 : vector<10x7x7xf32>
    %683 = math.exp %682 : vector<10x7x7xf32>
    %cst_139 = arith.constant dense<0.000000e+00> : vector<10x7xf32>
    %684 = vector.multi_reduction <add>, %683, %cst_139 [2] : vector<10x7x7xf32> to vector<10x7xf32>
    %685 = vector.shape_cast %684 : vector<10x7xf32> to vector<10x7x1xf32>
    %686 = tpu.reciprocal %685 {approx = true} : vector<10x7x1xf32> -> vector<10x7x1xf32>
    %687 = vector.broadcast %686 : vector<10x7x1xf32> to vector<10x7x7xf32>
    %688 = arith.mulf %683, %687 : vector<10x7x7xf32>
    "tpu.trace_start"() <{level = 10 : i32, message = "cts,csd->ctd"}> : () -> ()
    %cst_140 = arith.constant dense<0.000000e+00> : vector<10x7x16xf32>
    %689 = tpu.matmul %688, %677, %cst_140 {dimension_numbers = #tpu.dot_dimension_numbers<[2], [1], [1], [2], [0, 0, 0, 1, 1, 2], [0], [0]>} : vector<10x7x7xf32>, vector<10x7x16xf32>, vector<10x7x16xf32> -> vector<10x7x16xf32>
    "tpu.trace_stop"() : () -> ()
    %cst_141 = arith.constant dense<0xFF800000> : vector<10x16xf32>
    %690 = vector.multi_reduction <maximumf>, %689, %cst_141 [1] : vector<10x7x16xf32> to vector<10x16xf32>
    %691 = vector.extract_strided_slice %690 {offsets = [0, 0], sizes = [5, 16], strides = [1, 1]} : vector<10x16xf32> to vector<5x16xf32>
    %692 = vector.extract_strided_slice %690 {offsets = [5, 0], sizes = [5, 16], strides = [1, 1]} : vector<10x16xf32> to vector<5x16xf32>
    %693 = tpu.iota {dimensions = array<i32: 0>} : vector<5x1xi32>
    %c4_i32_142 = arith.constant 4 : i32
    %694 = vector.broadcast %c4_i32_142 : i32 to vector<5x1xi32>
    %695 = arith.cmpi slt, %693, %694 : vector<5x1xi32>
    %cst_143 = arith.constant 0.000000e+00 : f32
    %696 = vector.shape_cast %695 : vector<5x1xi1> to vector<5x1xi1>
    %697 = vector.broadcast %696 : vector<5x1xi1> to vector<5x16xi1>
    %698 = vector.broadcast %cst_143 : f32 to vector<5x16xf32>
    %699 = arith.select %697, %692, %698 : vector<5x16xi1>, vector<5x16xf32>
    %700 = tpu.concatenate %699, %691 in 1 : vector<5x16xf32>, vector<5x16xf32> -> vector<5x32xf32>
    %c0_144 = arith.constant 0 : index
    %c0_145 = arith.constant 0 : index
    %701 = vector.load %arg4[%c0_144, %c0_145] : memref<5x32xf32, #tpu.memory_space<vmem>>, vector<5x32xf32>
    tpu.vector_store %arg4[%c0_144, %c0_145], %700 {strides = array<i32>} : memref<5x32xf32, #tpu.memory_space<vmem>>, vector<5x32xf32>,
    return
  }
}

</mosaic_0001>

<llo_original>
// kernel: multi_attention_encoder.1
$region0: #{multi_attention_encoder.1}
  #allocation0 [shape = 'u32[]', space=smem, size = 0x4, offset = 0x4, fixed_abs, tag = 'smem constant byte address 0x4 - core index']
  #allocation1 [shape = 'u32[144,128]{1,0:T(1,128)}', space=vmem, size = 0x12000, scoped, tag = 'internal scratch']
  #allocation2 [shape = 'f32[5,7,8]{2,1,0:T(8,128)}', space=vmem, size = 0x5000, scoped, tag = 'scratch operand']
  #allocation3 [shape = 'f32[5,7,8]{2,1,0:T(8,128)}', space=vmem, size = 0x5000, scoped, tag = 'scratch operand']
  %s0 = inlined_call_operand.vmem [shape: f32[7,5,32], index: 0, kind: input, shape index: {}]
  %s1 = inlined_call_operand.vmem [shape: f32[7,5,32], index: 1, kind: input, shape index: {}]
  %s2 = inlined_call_operand.vmem [shape: s32[5,1], index: 2, kind: input, shape index: {}]
  %s3 = inlined_call_operand.vmem [shape: f32[16,64], index: 3, kind: input, shape index: {}]
  %s4 = inlined_call_operand.hbm [shape: f32[5,32], index: 4, kind: output, shape index: {}]
  %s5 = sld [smem:[#allocation0]]
  $region26: #{multi_attention_encoder.1} parent=0
    _
  %s7 = ssub.s32 1, %s5
  %s8 = scalar_select 0, %s7, %s5
  $region1: #{multi_attention_encoder.1} parent=0
    #allocation4 [shape = 'u8[4096]{0}', space=vmem, size = 0x1000, scoped, tag = 'output window, operand 0, single buffered']
    #allocation5 [shape = 's32[1]{0}', space=sflag, size = 0x4, scoped, tag = 'scoped memory for multi_attention_encoder.1']
    %9 = vsyncpa [#allocation5], 0
    // Predicated region
    $region2: #{multi_attention_encoder.1} parent=1 // pred_check
      _
    $region3: #{multi_attention_encoder.1} parent=1 // pred_check_branch
      %11 = sbr.rel (0) target = $region5
    $region4: #{multi_attention_encoder.1} parent=1 // pred_region
      _
    $region5: #{multi_attention_encoder.1} parent=1 // pred_fallthru
      _
    // Predicated region
    $region6: #{multi_attention_encoder.1} parent=1 // pred_check
      _
    $region7: #{multi_attention_encoder.1} parent=1 // pred_check_branch
      %13 = sbr.rel (0) target = $region9
    $region8: #{multi_attention_encoder.1} parent=1 // pred_region
      _
    $region9: #{multi_attention_encoder.1} parent=1 // pred_fallthru
      _
    // Predicated region
    $region10: #{multi_attention_encoder.1} parent=1 // pred_check
      _
    $region11: #{multi_attention_encoder.1} parent=1 // pred_check_branch
      %15 = sbr.rel (0) target = $region13
    $region12: #{multi_attention_encoder.1} parent=1 // pred_region
      _
    $region13: #{multi_attention_encoder.1} parent=1 // pred_fallthru
      _
    // Predicated region
    $region14: #{multi_attention_encoder.1} parent=1 // pred_check
      _
    $region15: #{multi_attention_encoder.1} parent=1 // pred_check_branch
      %17 = sbr.rel (0) target = $region17
    $region16: #{multi_attention_encoder.1} parent=1 // pred_region
      _
    $region17: #{multi_attention_encoder.1} parent=1 // pred_fallthru
      _
    %v18 = vld [vmem:[%s3] sm:$0xff]
    %v19 = vld [vmem:[%s3 + $0x8] sm:$0xff]
    %v20 = vld [vmem:[%s2] sm:$0x1f]
    %vm21 = vcmp.gt.s32.totalorder %v20, 0
    %v22 = vsel %vm21, 1, 0
    %v23 = vcvt.s32.f32 %v22
    %vm24 = vcmp.gt.s32.totalorder %v20, 6
    %v25 = vsel %vm24, 1, 0
    %v26 = vcvt.s32.f32 %v25
    %vm27 = vcmask 130048
    %v29 = vsel %vm27, 0.0, 0
    %31 = vmatprep.subr.mxu0 0.0
    %32 = vmatpush1.msra.mxu0 %v18
    %33 = vmatprep.subr.mxu0 0.0
    %34 = vmatpush1.msra.mxu0 %v19
    %35 = vmatprep.subr.mxu0 0.0
    %36 = vmatpush1.msra.mxu0 0.0
    %37 = vmatprep.subr.mxu0 0.0
    %38 = vmatpush1.msra.mxu0 0.0
    %39 = vmatprep.subr.mxu0 0.0
    %40 = vmatpush1.msra.mxu0 0.0
    %41 = vmatprep.subr.mxu0 0.0
    %42 = vmatpush1.msra.mxu0 0.0
    %43 = vmatprep.subr.mxu0 0.0
    %44 = vmatpush1.msra.mxu0 0.0
    %45 = vmatprep.subr.mxu0 0.0
    %46 = vmatpush1.msra.mxu0 0.0
    %47 = vmatprep.subr.mxu0 0.0
    %48 = vmatpush1.msra.mxu0 0.0
    %49 = vmatprep.subr.mxu0 0.0
    %50 = vmatpush1.msra.mxu0 0.0
    %51 = vmatprep.subr.mxu0 0.0
    %52 = vmatpush1.msra.mxu0 0.0
    %53 = vmatprep.subr.mxu0 0.0
    %54 = vmatpush1.msra.mxu0 0.0
    %55 = vmatprep.subr.mxu0 0.0
    %56 = vmatpush1.msra.mxu0 0.0
    %57 = vmatprep.subr.mxu0 0.0
    %58 = vmatpush1.msra.mxu0 0.0
    %59 = vmatprep.subr.mxu0 0.0
    %60 = vmatpush1.msra.mxu0 0.0
    %61 = vmatprep.subr.mxu0 0.0
    %62 = vmatpush1.msra.mxu0 0.0
    %63 = vmatprep.subr.mxu0 0.0
    %64 = vmatpush1.msra.mxu0 0.0
    %65 = vmatprep.subr.mxu0 0.0
    %66 = vmatpush1.msra.mxu0 0.0
    %67 = vmatprep.subr.mxu0 0.0
    %68 = vmatpush1.msra.mxu0 0.0
    %69 = vmatprep.subr.mxu0 0.0
    %70 = vmatpush1.msra.mxu0 0.0
    %71 = vmatprep.subr.mxu0 0.0
    %72 = vmatpush1.msra.mxu0 0.0
    %73 = vmatprep.subr.mxu0 0.0
    %74 = vmatpush1.msra.mxu0 0.0
    %75 = vmatprep.subr.mxu0 0.0
    %76 = vmatpush1.msra.mxu0 0.0
    %77 = vmatprep.subr.mxu0 0.0
    %78 = vmatpush1.msra.mxu0 0.0
    %79 = vmatprep.subr.mxu0 0.0
    %80 = vmatpush1.msra.mxu0 0.0
    %81 = vmatprep.subr.mxu0 0.0
    %82 = vmatpush1.msra.mxu0 0.0
    %83 = vmatprep.subr.mxu0 0.0
    %84 = vmatpush1.msra.mxu0 0.0
    %85 = vmatprep.subr.mxu0 0.0
    %86 = vmatpush1.msra.mxu0 0.0
    %87 = vmatprep.subr.mxu0 0.0
    %88 = vmatpush1.msra.mxu0 0.0
    %89 = vmatprep.subr.mxu0 0.0
    %90 = vmatpush1.msra.mxu0 0.0
    %91 = vmatprep.subr.mxu0 0.0
    %92 = vmatpush1.msra.mxu0 0.0
    %93 = vmatprep.subr.mxu0 0.0
    %94 = vmatpush1.msra.mxu0 0.0
    %95 = vmatprep.mubr.f32.mxu0 0.0
    %96 = vmatmul.mubr.f32.gmra.mrb[0].mxu0 %v29
    %v97 = vpop.f32.mrb[0].mxu0
    %v98 = vadd.f32 0.0, %v97
    %v99 = vpop.f32.mrb[0].mxu0
    %100 = vdwg.mxu0
    %v101 = vld [vmem:[%s0] sm:$0x1f]
    %v102 = vadd.f32 %v98, %v101
    %s103 = scalar_lea.vmem %s1, 48
    %v104 = vld [vmem:[%s103] sm:$0x1f]
    %106 = vrot.lane.b32.xlu0 %v104, 32
    %v107 = vpop.permute.xlu0 %106
    %v109 = vadd.f32 %v98, %v107
    %v110 = vxor.u32 %v102, 2147483648
    %v111 = vmul.f32 %v110, 1.442695
    %v112 = vpow.pop %v111
    %v113 = vadd.f32 %v112, 1.0
    %v114 = vrcp.pop %v113
    %v115 = vmul.f32 1.0, %v114
    %v116 = vtanh.pop %v102
    %v117 = vmul.f32 %v115, 0.0
    %119 = vrot.lane.b32.xlu0 %v116, 112
    %v120 = vpop.permute.xlu0 %119
    %v122 = vmul.f32 %v115, %v120
    %124 = vrot.lane.b32.xlu0 %v122, 8
    %v125 = vpop.permute.xlu0 %124
    %v127 = vadd.f32 %v117, %v125
    %v128 = vtanh.pop %v127
    %130 = vrot.lane.b32.xlu0 %v128, 16
    %v131 = vpop.permute.xlu0 %130
    %v133 = vmul.f32 %v115, %v131
    %v134 = vxor.u32 %v109, 2147483648
    %v135 = vmul.f32 %v134, 1.442695
    %v136 = vpow.pop %v135
    %v137 = vadd.f32 %v136, 1.0
    %v138 = vrcp.pop %v137
    %v139 = vmul.f32 1.0, %v138
    %v140 = vtanh.pop %v109
    %v141 = vmul.f32 %v139, 0.0
    %143 = vrot.lane.b32.xlu0 %v140, 112
    %v144 = vpop.permute.xlu0 %143
    %v146 = vmul.f32 %v139, %v144
    %148 = vrot.lane.b32.xlu0 %v146, 8
    %v149 = vpop.permute.xlu0 %148
    %v151 = vadd.f32 %v141, %v149
    %v152 = vtanh.pop %v151
    %154 = vrot.lane.b32.xlu0 %v152, 16
    %v155 = vpop.permute.xlu0 %154
    %v157 = vmul.f32 %v139, %v155
    %159 = vset.pattern.permute.xlu0 0
    %160 = vperm.xlu0 %159, %v23
    %v161 = vpop.permute.xlu0 %160
    %v163 = vmul.f32 %v133, %v161
    %v165 = vcombine.high %v163, %v163
    %v167 = vunpack.c.l.s4 1966171168
    %v168 = vunpack.c.0.s8 %v167
    %v169 = vlaneseq
    %v170 = vshrl.u32 %v169, 7
    %v171 = vsub.s32 %v168, %v170
    %v172 = vrot.slane %v163, %v171
    %v174 = vunpack.c.l.s4 1966171168
    %v175 = vunpack.c.0.s8 %v174
    %v176 = vlaneseq
    %v177 = vshrl.u32 %v176, 7
    %v178 = vsub.s32 %v175, %v177
    %v179 = vrot.slane %v165, %v178
    %v180 = vcombine.high %v172, %v172
    %v182 = vunpack.c.l.s4 1966171168
    %v183 = vunpack.c.0.s8 %v182
    %v184 = vlaneseq
    %v185 = vshrl.u32 %v184, 7
    %v186 = vsub.s32 %v183, %v185
    %v187 = vrot.slane %v172, %v186
    %v189 = vunpack.c.l.s4 1966171168
    %v190 = vunpack.c.0.s8 %v189
    %v191 = vlaneseq
    %v192 = vshrl.u32 %v191, 7
    %v193 = vsub.s32 %v190, %v192
    %v194 = vrot.slane %v179, %v193
    %v196 = vunpack.c.l.s4 1966171168
    %v197 = vunpack.c.0.s8 %v196
    %v198 = vlaneseq
    %v199 = vshrl.u32 %v198, 7
    %v200 = vsub.s32 %v197, %v199
    %v201 = vrot.slane %v180, %v200
    %v202 = vcombine.high %v187, %v187
    %v203 = vcombine.high %v201, %v201
    %v204 = vlaneseq
    %v205 = vshrl.u32 %v204, 7
    %v206 = vsub.s32 0, %v205
    %v207 = vrot.slane %v187, %v206
    %v208 = vlaneseq
    %v209 = vshrl.u32 %v208, 7
    %v210 = vsub.s32 0, %v209
    %v211 = vrot.slane %v201, %v210
    %v212 = vlaneseq
    %v213 = vshrl.u32 %v212, 7
    %v214 = vsub.s32 0, %v213
    %v215 = vrot.slane %v202, %v214
    %v216 = vlaneseq
    %v217 = vshrl.u32 %v216, 7
    %v218 = vsub.s32 0, %v217
    %v219 = vrot.slane %v203, %v218
    %v220 = vlaneseq
    %v221 = vshrl.u32 %v220, 7
    %v222 = vsub.s32 0, %v221
    %v223 = vrot.slane %v194, %v222
    %224 = vrot.lane.b32.xlu0 %v207, 104
    %v225 = vpop.permute.xlu0 %224
    %226 = vrot.lane.b32.xlu0 %v211, 104
    %v227 = vpop.permute.xlu0 %226
    %228 = vrot.lane.b32.xlu0 %v215, 104
    %v229 = vpop.permute.xlu0 %228
    %230 = vrot.lane.b32.xlu0 %v219, 104
    %v231 = vpop.permute.xlu0 %230
    %232 = vrot.lane.b32.xlu0 %v223, 104
    %v233 = vpop.permute.xlu0 %232
    %vm239 = vcmask 57344
    %240 = vst.msk [vmem:[#allocation2] sm:$0x1] %vm239, %v225
    %241 = vst.msk [vmem:[#allocation2 + $0x8] sm:$0x1] %vm239, %v227
    %242 = vst.msk [vmem:[#allocation2 + $0x10] sm:$0x1] %vm239, %v229
    %243 = vst.msk [vmem:[#allocation2 + $0x18] sm:$0x1] %vm239, %v231
    %244 = vst.msk [vmem:[#allocation2 + $0x20] sm:$0x1] %vm239, %v233
    %246 = vset.pattern.permute.xlu0 0
    %247 = vperm.xlu0 %246, %v26
    %v248 = vpop.permute.xlu0 %247
    %v250 = vmul.f32 %v248, %v157
    %v252 = vcombine.high %v250, %v250
    %v254 = vunpack.c.l.s4 1966171168
    %v255 = vunpack.c.0.s8 %v254
    %v256 = vlaneseq
    %v257 = vshrl.u32 %v256, 7
    %v258 = vsub.s32 %v255, %v257
    %v259 = vrot.slane %v250, %v258
    %v261 = vunpack.c.l.s4 1966171168
    %v262 = vunpack.c.0.s8 %v261
    %v263 = vlaneseq
    %v264 = vshrl.u32 %v263, 7
    %v265 = vsub.s32 %v262, %v264
    %v266 = vrot.slane %v252, %v265
    %v267 = vcombine.high %v259, %v259
    %v269 = vunpack.c.l.s4 1966171168
    %v270 = vunpack.c.0.s8 %v269
    %v271 = vlaneseq
    %v272 = vshrl.u32 %v271, 7
    %v273 = vsub.s32 %v270, %v272
    %v274 = vrot.slane %v259, %v273
    %v276 = vunpack.c.l.s4 1966171168
    %v277 = vunpack.c.0.s8 %v276
    %v278 = vlaneseq
    %v279 = vshrl.u32 %v278, 7
    %v280 = vsub.s32 %v277, %v279
    %v281 = vrot.slane %v266, %v280
    %v283 = vunpack.c.l.s4 1966171168
    %v284 = vunpack.c.0.s8 %v283
    %v285 = vlaneseq
    %v286 = vshrl.u32 %v285, 7
    %v287 = vsub.s32 %v284, %v286
    %v288 = vrot.slane %v267, %v287
    %v289 = vcombine.high %v274, %v274
    %v290 = vcombine.high %v288, %v288
    %v291 = vlaneseq
    %v292 = vshrl.u32 %v291, 7
    %v293 = vsub.s32 0, %v292
    %v294 = vrot.slane %v274, %v293
    %v295 = vlaneseq
    %v296 = vshrl.u32 %v295, 7
    %v297 = vsub.s32 0, %v296
    %v298 = vrot.slane %v288, %v297
    %v299 = vlaneseq
    %v300 = vshrl.u32 %v299, 7
    %v301 = vsub.s32 0, %v300
    %v302 = vrot.slane %v289, %v301
    %v303 = vlaneseq
    %v304 = vshrl.u32 %v303, 7
    %v305 = vsub.s32 0, %v304
    %v306 = vrot.slane %v290, %v305
    %v307 = vlaneseq
    %v308 = vshrl.u32 %v307, 7
    %v309 = vsub.s32 0, %v308
    %v310 = vrot.slane %v281, %v309
    %311 = vrot.lane.b32.xlu0 %v294, 72
    %v312 = vpop.permute.xlu0 %311
    %313 = vrot.lane.b32.xlu0 %v298, 72
    %v314 = vpop.permute.xlu0 %313
    %315 = vrot.lane.b32.xlu0 %v302, 72
    %v316 = vpop.permute.xlu0 %315
    %317 = vrot.lane.b32.xlu0 %v306, 72
    %v318 = vpop.permute.xlu0 %317
    %319 = vrot.lane.b32.xlu0 %v310, 72
    %v320 = vpop.permute.xlu0 %319
    %326 = vst.msk [vmem:[#allocation3 + $0x6] sm:$0x1] %vm239, %v312
    %327 = vst.msk [vmem:[#allocation3 + $0xe] sm:$0x1] %vm239, %v314
    %328 = vst.msk [vmem:[#allocation3 + $0x16] sm:$0x1] %vm239, %v316
    %329 = vst.msk [vmem:[#allocation3 + $0x1e] sm:$0x1] %vm239, %v318
    %330 = vst.msk [vmem:[#allocation3 + $0x26] sm:$0x1] %vm239, %v320
    %v331 = vsub.f32 1.0, %v26
    %333 = vset.pattern.permute.xlu0 0
    %334 = vperm.xlu0 %333, %v331
    %v335 = vpop.permute.xlu0 %334
    %v337 = vmul.f32 %v335, 0.0
    %v338 = vadd.f32 %v250, %v337
    %v339 = vmul.f32 %v248, %v151
    %v340 = vadd.f32 %v339, %v337
    %vm341 = vcmp.gt.s32.totalorder %v20, 1
    %v342 = vsel %vm341, 1, 0
    %v343 = vcvt.s32.f32 %v342
    %vm344 = vcmp.gt.s32.totalorder %v20, 5
    %v345 = vsel %vm344, 1, 0
    %v346 = vcvt.s32.f32 %v345
    %348 = vrot.lane.b32.xlu0 %v133, 104
    %v349 = vpop.permute.xlu0 %348
    %352 = vrot.lane.b32.xlu0 %v338, 80
    %v353 = vpop.permute.xlu0 %352
    %vm355 = vcmask 64512
    %v356 = vsel %vm355, %v349, %v353
    %v358 = vsel %vm27, %v356, 0
    %360 = vmatprep.subr.mxu0 0.0
    %361 = vmatpush1.msra.mxu0 %v18
    %362 = vmatprep.subr.mxu0 0.0
    %363 = vmatpush1.msra.mxu0 %v19
    %364 = vmatprep.subr.mxu0 0.0
    %365 = vmatpush1.msra.mxu0 0.0
    %366 = vmatprep.subr.mxu0 0.0
    %367 = vmatpush1.msra.mxu0 0.0
    %368 = vmatprep.subr.mxu0 0.0
    %369 = vmatpush1.msra.mxu0 0.0
    %370 = vmatprep.subr.mxu0 0.0
    %371 = vmatpush1.msra.mxu0 0.0
    %372 = vmatprep.subr.mxu0 0.0
    %373 = vmatpush1.msra.mxu0 0.0
    %374 = vmatprep.subr.mxu0 0.0
    %375 = vmatpush1.msra.mxu0 0.0
    %376 = vmatprep.subr.mxu0 0.0
    %377 = vmatpush1.msra.mxu0 0.0
    %378 = vmatprep.subr.mxu0 0.0
    %379 = vmatpush1.msra.mxu0 0.0
    %380 = vmatprep.subr.mxu0 0.0
    %381 = vmatpush1.msra.mxu0 0.0
    %382 = vmatprep.subr.mxu0 0.0
    %383 = vmatpush1.msra.mxu0 0.0
    %384 = vmatprep.subr.mxu0 0.0
    %385 = vmatpush1.msra.mxu0 0.0
    %386 = vmatprep.subr.mxu0 0.0
    %387 = vmatpush1.msra.mxu0 0.0
    %388 = vmatprep.subr.mxu0 0.0
    %389 = vmatpush1.msra.mxu0 0.0
    %390 = vmatprep.subr.mxu0 0.0
    %391 = vmatpush1.msra.mxu0 0.0
    %392 = vmatprep.subr.mxu0 0.0
    %393 = vmatpush1.msra.mxu0 0.0
    %394 = vmatprep.subr.mxu0 0.0
    %395 = vmatpush1.msra.mxu0 0.0
    %396 = vmatprep.subr.mxu0 0.0
    %397 = vmatpush1.msra.mxu0 0.0
    %398 = vmatprep.subr.mxu0 0.0
    %399 = vmatpush1.msra.mxu0 0.0
    %400 = vmatprep.subr.mxu0 0.0
    %401 = vmatpush1.msra.mxu0 0.0
    %402 = vmatprep.subr.mxu0 0.0
    %403 = vmatpush1.msra.mxu0 0.0
    %404 = vmatprep.subr.mxu0 0.0
    %405 = vmatpush1.msra.mxu0 0.0
    %406 = vmatprep.subr.mxu0 0.0
    %407 = vmatpush1.msra.mxu0 0.0
    %408 = vmatprep.subr.mxu0 0.0
    %409 = vmatpush1.msra.mxu0 0.0
    %410 = vmatprep.subr.mxu0 0.0
    %411 = vmatpush1.msra.mxu0 0.0
    %412 = vmatprep.subr.mxu0 0.0
    %413 = vmatpush1.msra.mxu0 0.0
    %414 = vmatprep.subr.mxu0 0.0
    %415 = vmatpush1.msra.mxu0 0.0
    %416 = vmatprep.subr.mxu0 0.0
    %417 = vmatpush1.msra.mxu0 0.0
    %418 = vmatprep.subr.mxu0 0.0
    %419 = vmatpush1.msra.mxu0 0.0
    %420 = vmatprep.subr.mxu0 0.0
    %421 = vmatpush1.msra.mxu0 0.0
    %422 = vmatprep.subr.mxu0 0.0
    %423 = vmatpush1.msra.mxu0 0.0
    %424 = vmatprep.mubr.f32.mxu0 0.0
    %425 = vmatmul.mubr.f32.gmra.mrb[0].mxu0 %v358
    %v426 = vpop.f32.mrb[0].mxu0
    %v427 = vadd.f32 0.0, %v426
    %v428 = vpop.f32.mrb[0].mxu0
    %429 = vdwg.mxu0
    %s430 = scalar_lea.vmem %s0, 8
    %v431 = vld [vmem:[%s430] sm:$0x1f]
    %v432 = vadd.f32 %v427, %v431
    %s433 = scalar_lea.vmem %s1, 40
    %v434 = vld [vmem:[%s433] sm:$0x1f]
    %436 = vrot.lane.b32.xlu0 %v434, 32
    %v437 = vpop.permute.xlu0 %436
    %v439 = vadd.f32 %v427, %v437
    %v440 = vxor.u32 %v432, 2147483648
    %v441 = vmul.f32 %v440, 1.442695
    %v442 = vpow.pop %v441
    %v443 = vadd.f32 %v442, 1.0
    %v444 = vrcp.pop %v443
    %v445 = vmul.f32 1.0, %v444
    %v446 = vtanh.pop %v432
    %v447 = vmul.f32 %v445, %v127
    %449 = vrot.lane.b32.xlu0 %v446, 112
    %v450 = vpop.permute.xlu0 %449
    %v452 = vmul.f32 %v445, %v450
    %454 = vrot.lane.b32.xlu0 %v452, 8
    %v455 = vpop.permute.xlu0 %454
    %v457 = vadd.f32 %v447, %v455
    %v458 = vtanh.pop %v457
    %460 = vrot.lane.b32.xlu0 %v458, 16
    %v461 = vpop.permute.xlu0 %460
    %v463 = vmul.f32 %v445, %v461
    %v464 = vxor.u32 %v439, 2147483648
    %v465 = vmul.f32 %v464, 1.442695
    %v466 = vpow.pop %v465
    %v467 = vadd.f32 %v466, 1.0
    %v468 = vrcp.pop %v467
    %v469 = vmul.f32 1.0, %v468
    %v470 = vtanh.pop %v439
    %v471 = vmul.f32 %v469, %v340
    %473 = vrot.lane.b32.xlu0 %v470, 112
    %v474 = vpop.permute.xlu0 %473
    %v476 = vmul.f32 %v469, %v474
    %478 = vrot.lane.b32.xlu0 %v476, 8
    %v479 = vpop.permute.xlu0 %478
    %v481 = vadd.f32 %v471, %v479
    %v482 = vtanh.pop %v481
    %484 = vrot.lane.b32.xlu0 %v482, 16
    %v485 = vpop.permute.xlu0 %484
    %v487 = vmul.f32 %v469, %v485
    %489 = vset.pattern.permute.xlu0 0
    %490 = vperm.xlu0 %489, %v343
    %v491 = vpop.permute.xlu0 %490
    %v493 = vmul.f32 %v463, %v491
    %v495 = vcombine.high %v493, %v493
    %v497 = vunpack.c.l.s4 1966171168
    %v498 = vunpack.c.0.s8 %v497
    %v499 = vlaneseq
    %v500 = vshrl.u32 %v499, 7
    %v501 = vsub.s32 %v498, %v500
    %v502 = vrot.slane %v493, %v501
    %v504 = vunpack.c.l.s4 1966171168
    %v505 = vunpack.c.0.s8 %v504
    %v506 = vlaneseq
    %v507 = vshrl.u32 %v506, 7
    %v508 = vsub.s32 %v505, %v507
    %v509 = vrot.slane %v495, %v508
    %v510 = vcombine.high %v502, %v502
    %v512 = vunpack.c.l.s4 1966171168
    %v513 = vunpack.c.0.s8 %v512
    %v514 = vlaneseq
    %v515 = vshrl.u32 %v514, 7
    %v516 = vsub.s32 %v513, %v515
    %v517 = vrot.slane %v502, %v516
    %v519 = vunpack.c.l.s4 1966171168
    %v520 = vunpack.c.0.s8 %v519
    %v521 = vlaneseq
    %v522 = vshrl.u32 %v521, 7
    %v523 = vsub.s32 %v520, %v522
    %v524 = vrot.slane %v509, %v523
    %v526 = vunpack.c.l.s4 1966171168
    %v527 = vunpack.c.0.s8 %v526
    %v528 = vlaneseq
    %v529 = vshrl.u32 %v528, 7
    %v530 = vsub.s32 %v527, %v529
    %v531 = vrot.slane %v510, %v530
    %v532 = vcombine.high %v517, %v517
    %v533 = vcombine.high %v531, %v531
    %v534 = vlaneseq
    %v535 = vshrl.u32 %v534, 7
    %v536 = vsub.s32 0, %v535
    %v537 = vrot.slane %v517, %v536
    %v538 = vlaneseq
    %v539 = vshrl.u32 %v538, 7
    %v540 = vsub.s32 0, %v539
    %v541 = vrot.slane %v531, %v540
    %v542 = vlaneseq
    %v543 = vshrl.u32 %v542, 7
    %v544 = vsub.s32 0, %v543
    %v545 = vrot.slane %v532, %v544
    %v546 = vlaneseq
    %v547 = vshrl.u32 %v546, 7
    %v548 = vsub.s32 0, %v547
    %v549 = vrot.slane %v533, %v548
    %v550 = vlaneseq
    %v551 = vshrl.u32 %v550, 7
    %v552 = vsub.s32 0, %v551
    %v553 = vrot.slane %v524, %v552
    %554 = vrot.lane.b32.xlu0 %v537, 104
    %v555 = vpop.permute.xlu0 %554
    %556 = vrot.lane.b32.xlu0 %v541, 104
    %v557 = vpop.permute.xlu0 %556
    %558 = vrot.lane.b32.xlu0 %v545, 104
    %v559 = vpop.permute.xlu0 %558
    %560 = vrot.lane.b32.xlu0 %v549, 104
    %v561 = vpop.permute.xlu0 %560
    %562 = vrot.lane.b32.xlu0 %v553, 104
    %v563 = vpop.permute.xlu0 %562
    %569 = vst.msk [vmem:[#allocation2 + $0x1] sm:$0x1] %vm239, %v555
    %570 = vst.msk [vmem:[#allocation2 + $0x9] sm:$0x1] %vm239, %v557
    %571 = vst.msk [vmem:[#allocation2 + $0x11] sm:$0x1] %vm239, %v559
    %572 = vst.msk [vmem:[#allocation2 + $0x19] sm:$0x1] %vm239, %v561
    %573 = vst.msk [vmem:[#allocation2 + $0x21] sm:$0x1] %vm239, %v563
    %575 = vset.pattern.permute.xlu0 0
    %576 = vperm.xlu0 %575, %v346
    %v577 = vpop.permute.xlu0 %576
    %v579 = vmul.f32 %v577, %v487
    %v581 = vcombine.high %v579, %v579
    %v583 = vunpack.c.l.s4 1966171168
    %v584 = vunpack.c.0.s8 %v583
    %v585 = vlaneseq
    %v586 = vshrl.u32 %v585, 7
    %v587 = vsub.s32 %v584, %v586
    %v588 = vrot.slane %v579, %v587
    %v590 = vunpack.c.l.s4 1966171168
    %v591 = vunpack.c.0.s8 %v590
    %v592 = vlaneseq
    %v593 = vshrl.u32 %v592, 7
    %v594 = vsub.s32 %v591, %v593
    %v595 = vrot.slane %v581, %v594
    %v596 = vcombine.high %v588, %v588
    %v598 = vunpack.c.l.s4 1966171168
    %v599 = vunpack.c.0.s8 %v598
    %v600 = vlaneseq
    %v601 = vshrl.u32 %v600, 7
    %v602 = vsub.s32 %v599, %v601
    %v603 = vrot.slane %v588, %v602
    %v605 = vunpack.c.l.s4 1966171168
    %v606 = vunpack.c.0.s8 %v605
    %v607 = vlaneseq
    %v608 = vshrl.u32 %v607, 7
    %v609 = vsub.s32 %v606, %v608
    %v610 = vrot.slane %v595, %v609
    %v612 = vunpack.c.l.s4 1966171168
    %v613 = vunpack.c.0.s8 %v612
    %v614 = vlaneseq
    %v615 = vshrl.u32 %v614, 7
    %v616 = vsub.s32 %v613, %v615
    %v617 = vrot.slane %v596, %v616
    %v618 = vcombine.high %v603, %v603
    %v619 = vcombine.high %v617, %v617
    %v620 = vlaneseq
    %v621 = vshrl.u32 %v620, 7
    %v622 = vsub.s32 0, %v621
    %v623 = vrot.slane %v603, %v622
    %v624 = vlaneseq
    %v625 = vshrl.u32 %v624, 7
    %v626 = vsub.s32 0, %v625
    %v627 = vrot.slane %v617, %v626
    %v628 = vlaneseq
    %v629 = vshrl.u32 %v628, 7
    %v630 = vsub.s32 0, %v629
    %v631 = vrot.slane %v618, %v630
    %v632 = vlaneseq
    %v633 = vshrl.u32 %v632, 7
    %v634 = vsub.s32 0, %v633
    %v635 = vrot.slane %v619, %v634
    %v636 = vlaneseq
    %v637 = vshrl.u32 %v636, 7
    %v638 = vsub.s32 0, %v637
    %v639 = vrot.slane %v610, %v638
    %640 = vrot.lane.b32.xlu0 %v623, 72
    %v641 = vpop.permute.xlu0 %640
    %642 = vrot.lane.b32.xlu0 %v627, 72
    %v643 = vpop.permute.xlu0 %642
    %644 = vrot.lane.b32.xlu0 %v631, 72
    %v645 = vpop.permute.xlu0 %644
    %646 = vrot.lane.b32.xlu0 %v635, 72
    %v647 = vpop.permute.xlu0 %646
    %648 = vrot.lane.b32.xlu0 %v639, 72
    %v649 = vpop.permute.xlu0 %648
    %655 = vst.msk [vmem:[#allocation3 + $0x5] sm:$0x1] %vm239, %v641
    %656 = vst.msk [vmem:[#allocation3 + $0xd] sm:$0x1] %vm239, %v643
    %657 = vst.msk [vmem:[#allocation3 + $0x15] sm:$0x1] %vm239, %v645
    %658 = vst.msk [vmem:[#allocation3 + $0x1d] sm:$0x1] %vm239, %v647
    %659 = vst.msk [vmem:[#allocation3 + $0x25] sm:$0x1] %vm239, %v649
    %v660 = vsub.f32 1.0, %v346
    %662 = vset.pattern.permute.xlu0 0
    %663 = vperm.xlu0 %662, %v660
    %v664 = vpop.permute.xlu0 %663
    %v666 = vmul.f32 %v664, %v338
    %v667 = vadd.f32 %v579, %v666
    %v668 = vmul.f32 %v577, %v481
    %v669 = vmul.f32 %v664, %v340
    %v670 = vadd.f32 %v668, %v669
    %vm671 = vcmp.gt.s32.totalorder %v20, 2
    %v672 = vsel %vm671, 1, 0
    %v673 = vcvt.s32.f32 %v672
    %vm674 = vcmp.gt.s32.totalorder %v20, 4
    %v675 = vsel %vm674, 1, 0
    %v676 = vcvt.s32.f32 %v675
    %678 = vrot.lane.b32.xlu0 %v463, 104
    %v679 = vpop.permute.xlu0 %678
    %682 = vrot.lane.b32.xlu0 %v667, 80
    %v683 = vpop.permute.xlu0 %682
    %v685 = vsel %vm355, %v679, %v683
    %v687 = vsel %vm27, %v685, 0
    %689 = vmatprep.subr.mxu0 0.0
    %690 = vmatpush1.msra.mxu0 %v18
    %691 = vmatprep.subr.mxu0 0.0
    %692 = vmatpush1.msra.mxu0 %v19
    %693 = vmatprep.subr.mxu0 0.0
    %694 = vmatpush1.msra.mxu0 0.0
    %695 = vmatprep.subr.mxu0 0.0
    %696 = vmatpush1.msra.mxu0 0.0
    %697 = vmatprep.subr.mxu0 0.0
    %698 = vmatpush1.msra.mxu0 0.0
    %699 = vmatprep.subr.mxu0 0.0
    %700 = vmatpush1.msra.mxu0 0.0
    %701 = vmatprep.subr.mxu0 0.0
    %702 = vmatpush1.msra.mxu0 0.0
    %703 = vmatprep.subr.mxu0 0.0
    %704 = vmatpush1.msra.mxu0 0.0
    %705 = vmatprep.subr.mxu0 0.0
    %706 = vmatpush1.msra.mxu0 0.0
    %707 = vmatprep.subr.mxu0 0.0
    %708 = vmatpush1.msra.mxu0 0.0
    %709 = vmatprep.subr.mxu0 0.0
    %710 = vmatpush1.msra.mxu0 0.0
    %711 = vmatprep.subr.mxu0 0.0
    %712 = vmatpush1.msra.mxu0 0.0
    %713 = vmatprep.subr.mxu0 0.0
    %714 = vmatpush1.msra.mxu0 0.0
    %715 = vmatprep.subr.mxu0 0.0
    %716 = vmatpush1.msra.mxu0 0.0
    %717 = vmatprep.subr.mxu0 0.0
    %718 = vmatpush1.msra.mxu0 0.0
    %719 = vmatprep.subr.mxu0 0.0
    %720 = vmatpush1.msra.mxu0 0.0
    %721 = vmatprep.subr.mxu0 0.0
    %722 = vmatpush1.msra.mxu0 0.0
    %723 = vmatprep.subr.mxu0 0.0
    %724 = vmatpush1.msra.mxu0 0.0
    %725 = vmatprep.subr.mxu0 0.0
    %726 = vmatpush1.msra.mxu0 0.0
    %727 = vmatprep.subr.mxu0 0.0
    %728 = vmatpush1.msra.mxu0 0.0
    %729 = vmatprep.subr.mxu0 0.0
    %730 = vmatpush1.msra.mxu0 0.0
    %731 = vmatprep.subr.mxu0 0.0
    %732 = vmatpush1.msra.mxu0 0.0
    %733 = vmatprep.subr.mxu0 0.0
    %734 = vmatpush1.msra.mxu0 0.0
    %735 = vmatprep.subr.mxu0 0.0
    %736 = vmatpush1.msra.mxu0 0.0
    %737 = vmatprep.subr.mxu0 0.0
    %738 = vmatpush1.msra.mxu0 0.0
    %739 = vmatprep.subr.mxu0 0.0
    %740 = vmatpush1.msra.mxu0 0.0
    %741 = vmatprep.subr.mxu0 0.0
    %742 = vmatpush1.msra.mxu0 0.0
    %743 = vmatprep.subr.mxu0 0.0
    %744 = vmatpush1.msra.mxu0 0.0
    %745 = vmatprep.subr.mxu0 0.0
    %746 = vmatpush1.msra.mxu0 0.0
    %747 = vmatprep.subr.mxu0 0.0
    %748 = vmatpush1.msra.mxu0 0.0
    %749 = vmatprep.subr.mxu0 0.0
    %750 = vmatpush1.msra.mxu0 0.0
    %751 = vmatprep.subr.mxu0 0.0
    %752 = vmatpush1.msra.mxu0 0.0
    %753 = vmatprep.mubr.f32.mxu0 0.0
    %754 = vmatmul.mubr.f32.gmra.mrb[0].mxu0 %v687
    %v755 = vpop.f32.mrb[0].mxu0
    %v756 = vadd.f32 0.0, %v755
    %v757 = vpop.f32.mrb[0].mxu0
    %758 = vdwg.mxu0
    %s759 = scalar_lea.vmem %s0, 16
    %v760 = vld [vmem:[%s759] sm:$0x1f]
    %v761 = vadd.f32 %v756, %v760
    %s762 = scalar_lea.vmem %s1, 32
    %v763 = vld [vmem:[%s762] sm:$0x1f]
    %765 = vrot.lane.b32.xlu0 %v763, 32
    %v766 = vpop.permute.xlu0 %765
    %v768 = vadd.f32 %v756, %v766
    %v769 = vxor.u32 %v761, 2147483648
    %v770 = vmul.f32 %v769, 1.442695
    %v771 = vpow.pop %v770
    %v772 = vadd.f32 %v771, 1.0
    %v773 = vrcp.pop %v772
    %v774 = vmul.f32 1.0, %v773
    %v775 = vtanh.pop %v761
    %v776 = vmul.f32 %v774, %v457
    %778 = vrot.lane.b32.xlu0 %v775, 112
    %v779 = vpop.permute.xlu0 %778
    %v781 = vmul.f32 %v774, %v779
    %783 = vrot.lane.b32.xlu0 %v781, 8
    %v784 = vpop.permute.xlu0 %783
    %v786 = vadd.f32 %v776, %v784
    %v787 = vtanh.pop %v786
    %789 = vrot.lane.b32.xlu0 %v787, 16
    %v790 = vpop.permute.xlu0 %789
    %v792 = vmul.f32 %v774, %v790
    %v793 = vxor.u32 %v768, 2147483648
    %v794 = vmul.f32 %v793, 1.442695
    %v795 = vpow.pop %v794
    %v796 = vadd.f32 %v795, 1.0
    %v797 = vrcp.pop %v796
    %v798 = vmul.f32 1.0, %v797
    %v799 = vtanh.pop %v768
    %v800 = vmul.f32 %v798, %v670
    %802 = vrot.lane.b32.xlu0 %v799, 112
    %v803 = vpop.permute.xlu0 %802
    %v805 = vmul.f32 %v798, %v803
    %807 = vrot.lane.b32.xlu0 %v805, 8
    %v808 = vpop.permute.xlu0 %807
    %v810 = vadd.f32 %v800, %v808
    %v811 = vtanh.pop %v810
    %813 = vrot.lane.b32.xlu0 %v811, 16
    %v814 = vpop.permute.xlu0 %813
    %v816 = vmul.f32 %v798, %v814
    %818 = vset.pattern.permute.xlu0 0
    %819 = vperm.xlu0 %818, %v673
    %v820 = vpop.permute.xlu0 %819
    %v822 = vmul.f32 %v792, %v820
    %v824 = vcombine.high %v822, %v822
    %v826 = vunpack.c.l.s4 1966171168
    %v827 = vunpack.c.0.s8 %v826
    %v828 = vlaneseq
    %v829 = vshrl.u32 %v828, 7
    %v830 = vsub.s32 %v827, %v829
    %v831 = vrot.slane %v822, %v830
    %v833 = vunpack.c.l.s4 1966171168
    %v834 = vunpack.c.0.s8 %v833
    %v835 = vlaneseq
    %v836 = vshrl.u32 %v835, 7
    %v837 = vsub.s32 %v834, %v836
    %v838 = vrot.slane %v824, %v837
    %v839 = vcombine.high %v831, %v831
    %v841 = vunpack.c.l.s4 1966171168
    %v842 = vunpack.c.0.s8 %v841
    %v843 = vlaneseq
    %v844 = vshrl.u32 %v843, 7
    %v845 = vsub.s32 %v842, %v844
    %v846 = vrot.slane %v831, %v845
    %v848 = vunpack.c.l.s4 1966171168
    %v849 = vunpack.c.0.s8 %v848
    %v850 = vlaneseq
    %v851 = vshrl.u32 %v850, 7
    %v852 = vsub.s32 %v849, %v851
    %v853 = vrot.slane %v838, %v852
    %v855 = vunpack.c.l.s4 1966171168
    %v856 = vunpack.c.0.s8 %v855
    %v857 = vlaneseq
    %v858 = vshrl.u32 %v857, 7
    %v859 = vsub.s32 %v856, %v858
    %v860 = vrot.slane %v839, %v859
    %v861 = vcombine.high %v846, %v846
    %v862 = vcombine.high %v860, %v860
    %v863 = vlaneseq
    %v864 = vshrl.u32 %v863, 7
    %v865 = vsub.s32 0, %v864
    %v866 = vrot.slane %v846, %v865
    %v867 = vlaneseq
    %v868 = vshrl.u32 %v867, 7
    %v869 = vsub.s32 0, %v868
    %v870 = vrot.slane %v860, %v869
    %v871 = vlaneseq
    %v872 = vshrl.u32 %v871, 7
    %v873 = vsub.s32 0, %v872
    %v874 = vrot.slane %v861, %v873
    %v875 = vlaneseq
    %v876 = vshrl.u32 %v875, 7
    %v877 = vsub.s32 0, %v876
    %v878 = vrot.slane %v862, %v877
    %v879 = vlaneseq
    %v880 = vshrl.u32 %v879, 7
    %v881 = vsub.s32 0, %v880
    %v882 = vrot.slane %v853, %v881
    %883 = vrot.lane.b32.xlu0 %v866, 104
    %v884 = vpop.permute.xlu0 %883
    %885 = vrot.lane.b32.xlu0 %v870, 104
    %v886 = vpop.permute.xlu0 %885
    %887 = vrot.lane.b32.xlu0 %v874, 104
    %v888 = vpop.permute.xlu0 %887
    %889 = vrot.lane.b32.xlu0 %v878, 104
    %v890 = vpop.permute.xlu0 %889
    %891 = vrot.lane.b32.xlu0 %v882, 104
    %v892 = vpop.permute.xlu0 %891
    %898 = vst.msk [vmem:[#allocation2 + $0x2] sm:$0x1] %vm239, %v884
    %899 = vst.msk [vmem:[#allocation2 + $0xa] sm:$0x1] %vm239, %v886
    %900 = vst.msk [vmem:[#allocation2 + $0x12] sm:$0x1] %vm239, %v888
    %901 = vst.msk [vmem:[#allocation2 + $0x1a] sm:$0x1] %vm239, %v890
    %902 = vst.msk [vmem:[#allocation2 + $0x22] sm:$0x1] %vm239, %v892
    %904 = vset.pattern.permute.xlu0 0
    %905 = vperm.xlu0 %904, %v676
    %v906 = vpop.permute.xlu0 %905
    %v908 = vmul.f32 %v906, %v816
    %v910 = vcombine.high %v908, %v908
    %v912 = vunpack.c.l.s4 1966171168
    %v913 = vunpack.c.0.s8 %v912
    %v914 = vlaneseq
    %v915 = vshrl.u32 %v914, 7
    %v916 = vsub.s32 %v913, %v915
    %v917 = vrot.slane %v908, %v916
    %v919 = vunpack.c.l.s4 1966171168
    %v920 = vunpack.c.0.s8 %v919
    %v921 = vlaneseq
    %v922 = vshrl.u32 %v921, 7
    %v923 = vsub.s32 %v920, %v922
    %v924 = vrot.slane %v910, %v923
    %v925 = vcombine.high %v917, %v917
    %v927 = vunpack.c.l.s4 1966171168
    %v928 = vunpack.c.0.s8 %v927
    %v929 = vlaneseq
    %v930 = vshrl.u32 %v929, 7
    %v931 = vsub.s32 %v928, %v930
    %v932 = vrot.slane %v917, %v931
    %v934 = vunpack.c.l.s4 1966171168
    %v935 = vunpack.c.0.s8 %v934
    %v936 = vlaneseq
    %v937 = vshrl.u32 %v936, 7
    %v938 = vsub.s32 %v935, %v937
    %v939 = vrot.slane %v924, %v938
    %v941 = vunpack.c.l.s4 1966171168
    %v942 = vunpack.c.0.s8 %v941
    %v943 = vlaneseq
    %v944 = vshrl.u32 %v943, 7
    %v945 = vsub.s32 %v942, %v944
    %v946 = vrot.slane %v925, %v945
    %v947 = vcombine.high %v932, %v932
    %v948 = vcombine.high %v946, %v946
    %v949 = vlaneseq
    %v950 = vshrl.u32 %v949, 7
    %v951 = vsub.s32 0, %v950
    %v952 = vrot.slane %v932, %v951
    %v953 = vlaneseq
    %v954 = vshrl.u32 %v953, 7
    %v955 = vsub.s32 0, %v954
    %v956 = vrot.slane %v946, %v955
    %v957 = vlaneseq
    %v958 = vshrl.u32 %v957, 7
    %v959 = vsub.s32 0, %v958
    %v960 = vrot.slane %v947, %v959
    %v961 = vlaneseq
    %v962 = vshrl.u32 %v961, 7
    %v963 = vsub.s32 0, %v962
    %v964 = vrot.slane %v948, %v963
    %v965 = vlaneseq
    %v966 = vshrl.u32 %v965, 7
    %v967 = vsub.s32 0, %v966
    %v968 = vrot.slane %v939, %v967
    %969 = vrot.lane.b32.xlu0 %v952, 72
    %v970 = vpop.permute.xlu0 %969
    %971 = vrot.lane.b32.xlu0 %v956, 72
    %v972 = vpop.permute.xlu0 %971
    %973 = vrot.lane.b32.xlu0 %v960, 72
    %v974 = vpop.permute.xlu0 %973
    %975 = vrot.lane.b32.xlu0 %v964, 72
    %v976 = vpop.permute.xlu0 %975
    %977 = vrot.lane.b32.xlu0 %v968, 72
    %v978 = vpop.permute.xlu0 %977
    %984 = vst.msk [vmem:[#allocation3 + $0x4] sm:$0x1] %vm239, %v970
    %985 = vst.msk [vmem:[#allocation3 + $0xc] sm:$0x1] %vm239, %v972
    %986 = vst.msk [vmem:[#allocation3 + $0x14] sm:$0x1] %vm239, %v974
    %987 = vst.msk [vmem:[#allocation3 + $0x1c] sm:$0x1] %vm239, %v976
    %988 = vst.msk [vmem:[#allocation3 + $0x24] sm:$0x1] %vm239, %v978
    %v989 = vsub.f32 1.0, %v676
    %991 = vset.pattern.permute.xlu0 0
    %992 = vperm.xlu0 %991, %v989
    %v993 = vpop.permute.xlu0 %992
    %v995 = vmul.f32 %v993, %v667
    %v996 = vadd.f32 %v908, %v995
    %v997 = vmul.f32 %v906, %v810
    %v998 = vmul.f32 %v993, %v670
    %v999 = vadd.f32 %v997, %v998
    %vm1000 = vcmp.gt.s32.totalorder %v20, 3
    %v1001 = vsel %vm1000, 1, 0
    %v1002 = vcvt.s32.f32 %v1001
    %1004 = vrot.lane.b32.xlu0 %v792, 104
    %v1005 = vpop.permute.xlu0 %1004
    %1008 = vrot.lane.b32.xlu0 %v996, 80
    %v1009 = vpop.permute.xlu0 %1008
    %v1011 = vsel %vm355, %v1005, %v1009
    %v1013 = vsel %vm27, %v1011, 0
    %1015 = vmatprep.subr.mxu0 0.0
    %1016 = vmatpush1.msra.mxu0 %v18
    %1017 = vmatprep.subr.mxu0 0.0
    %1018 = vmatpush1.msra.mxu0 %v19
    %1019 = vmatprep.subr.mxu0 0.0
    %1020 = vmatpush1.msra.mxu0 0.0
    %1021 = vmatprep.subr.mxu0 0.0
    %1022 = vmatpush1.msra.mxu0 0.0
    %1023 = vmatprep.subr.mxu0 0.0
    %1024 = vmatpush1.msra.mxu0 0.0
    %1025 = vmatprep.subr.mxu0 0.0
    %1026 = vmatpush1.msra.mxu0 0.0
    %1027 = vmatprep.subr.mxu0 0.0
    %1028 = vmatpush1.msra.mxu0 0.0
    %1029 = vmatprep.subr.mxu0 0.0
    %1030 = vmatpush1.msra.mxu0 0.0
    %1031 = vmatprep.subr.mxu0 0.0
    %1032 = vmatpush1.msra.mxu0 0.0
    %1033 = vmatprep.subr.mxu0 0.0
    %1034 = vmatpush1.msra.mxu0 0.0
    %1035 = vmatprep.subr.mxu0 0.0
    %1036 = vmatpush1.msra.mxu0 0.0
    %1037 = vmatprep.subr.mxu0 0.0
    %1038 = vmatpush1.msra.mxu0 0.0
    %1039 = vmatprep.subr.mxu0 0.0
    %1040 = vmatpush1.msra.mxu0 0.0
    %1041 = vmatprep.subr.mxu0 0.0
    %1042 = vmatpush1.msra.mxu0 0.0
    %1043 = vmatprep.subr.mxu0 0.0
    %1044 = vmatpush1.msra.mxu0 0.0
    %1045 = vmatprep.subr.mxu0 0.0
    %1046 = vmatpush1.msra.mxu0 0.0
    %1047 = vmatprep.subr.mxu0 0.0
    %1048 = vmatpush1.msra.mxu0 0.0
    %1049 = vmatprep.subr.mxu0 0.0
    %1050 = vmatpush1.msra.mxu0 0.0
    %1051 = vmatprep.subr.mxu0 0.0
    %1052 = vmatpush1.msra.mxu0 0.0
    %1053 = vmatprep.subr.mxu0 0.0
    %1054 = vmatpush1.msra.mxu0 0.0
    %1055 = vmatprep.subr.mxu0 0.0
    %1056 = vmatpush1.msra.mxu0 0.0
    %1057 = vmatprep.subr.mxu0 0.0
    %1058 = vmatpush1.msra.mxu0 0.0
    %1059 = vmatprep.subr.mxu0 0.0
    %1060 = vmatpush1.msra.mxu0 0.0
    %1061 = vmatprep.subr.mxu0 0.0
    %1062 = vmatpush1.msra.mxu0 0.0
    %1063 = vmatprep.subr.mxu0 0.0
    %1064 = vmatpush1.msra.mxu0 0.0
    %1065 = vmatprep.subr.mxu0 0.0
    %1066 = vmatpush1.msra.mxu0 0.0
    %1067 = vmatprep.subr.mxu0 0.0
    %1068 = vmatpush1.msra.mxu0 0.0
    %1069 = vmatprep.subr.mxu0 0.0
    %1070 = vmatpush1.msra.mxu0 0.0
    %1071 = vmatprep.subr.mxu0 0.0
    %1072 = vmatpush1.msra.mxu0 0.0
    %1073 = vmatprep.subr.mxu0 0.0
    %1074 = vmatpush1.msra.mxu0 0.0
    %1075 = vmatprep.subr.mxu0 0.0
    %1076 = vmatpush1.msra.mxu0 0.0
    %1077 = vmatprep.subr.mxu0 0.0
    %1078 = vmatpush1.msra.mxu0 0.0
    %1079 = vmatprep.mubr.f32.mxu0 0.0
    %1080 = vmatmul.mubr.f32.gmra.mrb[0].mxu0 %v1013
    %v1081 = vpop.f32.mrb[0].mxu0
    %v1082 = vadd.f32 0.0, %v1081
    %v1083 = vpop.f32.mrb[0].mxu0
    %1084 = vdwg.mxu0
    %s1085 = scalar_lea.vmem %s0, 24
    %v1086 = vld [vmem:[%s1085] sm:$0x1f]
    %v1087 = vadd.f32 %v1082, %v1086
    %s1088 = scalar_lea.vmem %s1, 24
    %v1089 = vld [vmem:[%s1088] sm:$0x1f]
    %1091 = vrot.lane.b32.xlu0 %v1089, 32
    %v1092 = vpop.permute.xlu0 %1091
    %v1094 = vadd.f32 %v1082, %v1092
    %v1095 = vxor.u32 %v1087, 2147483648
    %v1096 = vmul.f32 %v1095, 1.442695
    %v1097 = vpow.pop %v1096
    %v1098 = vadd.f32 %v1097, 1.0
    %v1099 = vrcp.pop %v1098
    %v1100 = vmul.f32 1.0, %v1099
    %v1101 = vtanh.pop %v1087
    %v1102 = vmul.f32 %v1100, %v786
    %1104 = vrot.lane.b32.xlu0 %v1101, 112
    %v1105 = vpop.permute.xlu0 %1104
    %v1107 = vmul.f32 %v1100, %v1105
    %1109 = vrot.lane.b32.xlu0 %v1107, 8
    %v1110 = vpop.permute.xlu0 %1109
    %v1112 = vadd.f32 %v1102, %v1110
    %v1113 = vtanh.pop %v1112
    %1115 = vrot.lane.b32.xlu0 %v1113, 16
    %v1116 = vpop.permute.xlu0 %1115
    %v1118 = vmul.f32 %v1100, %v1116
    %v1119 = vxor.u32 %v1094, 2147483648
    %v1120 = vmul.f32 %v1119, 1.442695
    %v1121 = vpow.pop %v1120
    %v1122 = vadd.f32 %v1121, 1.0
    %v1123 = vrcp.pop %v1122
    %v1124 = vmul.f32 1.0, %v1123
    %v1125 = vtanh.pop %v1094
    %v1126 = vmul.f32 %v1124, %v999
    %1128 = vrot.lane.b32.xlu0 %v1125, 112
    %v1129 = vpop.permute.xlu0 %1128
    %v1131 = vmul.f32 %v1124, %v1129
    %1133 = vrot.lane.b32.xlu0 %v1131, 8
    %v1134 = vpop.permute.xlu0 %1133
    %v1136 = vadd.f32 %v1126, %v1134
    %v1137 = vtanh.pop %v1136
    %1139 = vrot.lane.b32.xlu0 %v1137, 16
    %v1140 = vpop.permute.xlu0 %1139
    %v1142 = vmul.f32 %v1124, %v1140
    %1144 = vset.pattern.permute.xlu0 0
    %1145 = vperm.xlu0 %1144, %v1002
    %v1146 = vpop.permute.xlu0 %1145
    %v1148 = vmul.f32 %v1118, %v1146
    %v1150 = vcombine.high %v1148, %v1148
    %v1152 = vunpack.c.l.s4 1966171168
    %v1153 = vunpack.c.0.s8 %v1152
    %v1154 = vlaneseq
    %v1155 = vshrl.u32 %v1154, 7
    %v1156 = vsub.s32 %v1153, %v1155
    %v1157 = vrot.slane %v1148, %v1156
    %v1159 = vunpack.c.l.s4 1966171168
    %v1160 = vunpack.c.0.s8 %v1159
    %v1161 = vlaneseq
    %v1162 = vshrl.u32 %v1161, 7
    %v1163 = vsub.s32 %v1160, %v1162
    %v1164 = vrot.slane %v1150, %v1163
    %v1165 = vcombine.high %v1157, %v1157
    %v1167 = vunpack.c.l.s4 1966171168
    %v1168 = vunpack.c.0.s8 %v1167
    %v1169 = vlaneseq
    %v1170 = vshrl.u32 %v1169, 7
    %v1171 = vsub.s32 %v1168, %v1170
    %v1172 = vrot.slane %v1157, %v1171
    %v1174 = vunpack.c.l.s4 1966171168
    %v1175 = vunpack.c.0.s8 %v1174
    %v1176 = vlaneseq
    %v1177 = vshrl.u32 %v1176, 7
    %v1178 = vsub.s32 %v1175, %v1177
    %v1179 = vrot.slane %v1164, %v1178
    %v1181 = vunpack.c.l.s4 1966171168
    %v1182 = vunpack.c.0.s8 %v1181
    %v1183 = vlaneseq
    %v1184 = vshrl.u32 %v1183, 7
    %v1185 = vsub.s32 %v1182, %v1184
    %v1186 = vrot.slane %v1165, %v1185
    %v1187 = vcombine.high %v1172, %v1172
    %v1188 = vcombine.high %v1186, %v1186
    %v1189 = vlaneseq
    %v1190 = vshrl.u32 %v1189, 7
    %v1191 = vsub.s32 0, %v1190
    %v1192 = vrot.slane %v1172, %v1191
    %v1193 = vlaneseq
    %v1194 = vshrl.u32 %v1193, 7
    %v1195 = vsub.s32 0, %v1194
    %v1196 = vrot.slane %v1186, %v1195
    %v1197 = vlaneseq
    %v1198 = vshrl.u32 %v1197, 7
    %v1199 = vsub.s32 0, %v1198
    %v1200 = vrot.slane %v1187, %v1199
    %v1201 = vlaneseq
    %v1202 = vshrl.u32 %v1201, 7
    %v1203 = vsub.s32 0, %v1202
    %v1204 = vrot.slane %v1188, %v1203
    %v1205 = vlaneseq
    %v1206 = vshrl.u32 %v1205, 7
    %v1207 = vsub.s32 0, %v1206
    %v1208 = vrot.slane %v1179, %v1207
    %1209 = vrot.lane.b32.xlu0 %v1192, 104
    %v1210 = vpop.permute.xlu0 %1209
    %1211 = vrot.lane.b32.xlu0 %v1196, 104
    %v1212 = vpop.permute.xlu0 %1211
    %1213 = vrot.lane.b32.xlu0 %v1200, 104
    %v1214 = vpop.permute.xlu0 %1213
    %1215 = vrot.lane.b32.xlu0 %v1204, 104
    %v1216 = vpop.permute.xlu0 %1215
    %1217 = vrot.lane.b32.xlu0 %v1208, 104
    %v1218 = vpop.permute.xlu0 %1217
    %1224 = vst.msk [vmem:[#allocation2 + $0x3] sm:$0x1] %vm239, %v1210
    %1225 = vst.msk [vmem:[#allocation2 + $0xb] sm:$0x1] %vm239, %v1212
    %1226 = vst.msk [vmem:[#allocation2 + $0x13] sm:$0x1] %vm239, %v1214
    %1227 = vst.msk [vmem:[#allocation2 + $0x1b] sm:$0x1] %vm239, %v1216
    %1228 = vst.msk [vmem:[#allocation2 + $0x23] sm:$0x1] %vm239, %v1218
    %v1229 = vmul.f32 %v1146, %v1142
    %v1231 = vcombine.high %v1229, %v1229
    %v1233 = vunpack.c.l.s4 1966171168
    %v1234 = vunpack.c.0.s8 %v1233
    %v1235 = vlaneseq
    %v1236 = vshrl.u32 %v1235, 7
    %v1237 = vsub.s32 %v1234, %v1236
    %v1238 = vrot.slane %v1229, %v1237
    %v1240 = vunpack.c.l.s4 1966171168
    %v1241 = vunpack.c.0.s8 %v1240
    %v1242 = vlaneseq
    %v1243 = vshrl.u32 %v1242, 7
    %v1244 = vsub.s32 %v1241, %v1243
    %v1245 = vrot.slane %v1231, %v1244
    %v1246 = vcombine.high %v1238, %v1238
    %v1248 = vunpack.c.l.s4 1966171168
    %v1249 = vunpack.c.0.s8 %v1248
    %v1250 = vlaneseq
    %v1251 = vshrl.u32 %v1250, 7
    %v1252 = vsub.s32 %v1249, %v1251
    %v1253 = vrot.slane %v1238, %v1252
    %v1255 = vunpack.c.l.s4 1966171168
    %v1256 = vunpack.c.0.s8 %v1255
    %v1257 = vlaneseq
    %v1258 = vshrl.u32 %v1257, 7
    %v1259 = vsub.s32 %v1256, %v1258
    %v1260 = vrot.slane %v1245, %v1259
    %v1262 = vunpack.c.l.s4 1966171168
    %v1263 = vunpack.c.0.s8 %v1262
    %v1264 = vlaneseq
    %v1265 = vshrl.u32 %v1264, 7
    %v1266 = vsub.s32 %v1263, %v1265
    %v1267 = vrot.slane %v1246, %v1266
    %v1268 = vcombine.high %v1253, %v1253
    %v1269 = vcombine.high %v1267, %v1267
    %v1270 = vlaneseq
    %v1271 = vshrl.u32 %v1270, 7
    %v1272 = vsub.s32 0, %v1271
    %v1273 = vrot.slane %v1253, %v1272
    %v1274 = vlaneseq
    %v1275 = vshrl.u32 %v1274, 7
    %v1276 = vsub.s32 0, %v1275
    %v1277 = vrot.slane %v1267, %v1276
    %v1278 = vlaneseq
    %v1279 = vshrl.u32 %v1278, 7
    %v1280 = vsub.s32 0, %v1279
    %v1281 = vrot.slane %v1268, %v1280
    %v1282 = vlaneseq
    %v1283 = vshrl.u32 %v1282, 7
    %v1284 = vsub.s32 0, %v1283
    %v1285 = vrot.slane %v1269, %v1284
    %v1286 = vlaneseq
    %v1287 = vshrl.u32 %v1286, 7
    %v1288 = vsub.s32 0, %v1287
    %v1289 = vrot.slane %v1260, %v1288
    %1290 = vrot.lane.b32.xlu0 %v1273, 72
    %v1291 = vpop.permute.xlu0 %1290
    %1292 = vrot.lane.b32.xlu0 %v1277, 72
    %v1293 = vpop.permute.xlu0 %1292
    %1294 = vrot.lane.b32.xlu0 %v1281, 72
    %v1295 = vpop.permute.xlu0 %1294
    %1296 = vrot.lane.b32.xlu0 %v1285, 72
    %v1297 = vpop.permute.xlu0 %1296
    %1298 = vrot.lane.b32.xlu0 %v1289, 72
    %v1299 = vpop.permute.xlu0 %1298
    %1305 = vst.msk [vmem:[#allocation3 + $0x3] sm:$0x1] %vm239, %v1291
    %1306 = vst.msk [vmem:[#allocation3 + $0xb] sm:$0x1] %vm239, %v1293
    %1307 = vst.msk [vmem:[#allocation3 + $0x13] sm:$0x1] %vm239, %v1295
    %1308 = vst.msk [vmem:[#allocation3 + $0x1b] sm:$0x1] %vm239, %v1297
    %1309 = vst.msk [vmem:[#allocation3 + $0x23] sm:$0x1] %vm239, %v1299
    %v1310 = vsub.f32 1.0, %v1002
    %1312 = vset.pattern.permute.xlu0 0
    %1313 = vperm.xlu0 %1312, %v1310
    %v1314 = vpop.permute.xlu0 %1313
    %v1316 = vmul.f32 %v1314, %v996
    %v1317 = vadd.f32 %v1229, %v1316
    %v1318 = vmul.f32 %v1146, %v1136
    %v1319 = vmul.f32 %v1314, %v999
    %v1320 = vadd.f32 %v1318, %v1319
    %1322 = vrot.lane.b32.xlu0 %v1118, 104
    %v1323 = vpop.permute.xlu0 %1322
    %1326 = vrot.lane.b32.xlu0 %v1317, 80
    %v1327 = vpop.permute.xlu0 %1326
    %v1329 = vsel %vm355, %v1323, %v1327
    %v1331 = vsel %vm27, %v1329, 0
    %1333 = vmatprep.subr.mxu0 0.0
    %1334 = vmatpush1.msra.mxu0 %v18
    %1335 = vmatprep.subr.mxu0 0.0
    %1336 = vmatpush1.msra.mxu0 %v19
    %1337 = vmatprep.subr.mxu0 0.0
    %1338 = vmatpush1.msra.mxu0 0.0
    %1339 = vmatprep.subr.mxu0 0.0
    %1340 = vmatpush1.msra.mxu0 0.0
    %1341 = vmatprep.subr.mxu0 0.0
    %1342 = vmatpush1.msra.mxu0 0.0
    %1343 = vmatprep.subr.mxu0 0.0
    %1344 = vmatpush1.msra.mxu0 0.0
    %1345 = vmatprep.subr.mxu0 0.0
    %1346 = vmatpush1.msra.mxu0 0.0
    %1347 = vmatprep.subr.mxu0 0.0
    %1348 = vmatpush1.msra.mxu0 0.0
    %1349 = vmatprep.subr.mxu0 0.0
    %1350 = vmatpush1.msra.mxu0 0.0
    %1351 = vmatprep.subr.mxu0 0.0
    %1352 = vmatpush1.msra.mxu0 0.0
    %1353 = vmatprep.subr.mxu0 0.0
    %1354 = vmatpush1.msra.mxu0 0.0
    %1355 = vmatprep.subr.mxu0 0.0
    %1356 = vmatpush1.msra.mxu0 0.0
    %1357 = vmatprep.subr.mxu0 0.0
    %1358 = vmatpush1.msra.mxu0 0.0
    %1359 = vmatprep.subr.mxu0 0.0
    %1360 = vmatpush1.msra.mxu0 0.0
    %1361 = vmatprep.subr.mxu0 0.0
    %1362 = vmatpush1.msra.mxu0 0.0
    %1363 = vmatprep.subr.mxu0 0.0
    %1364 = vmatpush1.msra.mxu0 0.0
    %1365 = vmatprep.subr.mxu0 0.0
    %1366 = vmatpush1.msra.mxu0 0.0
    %1367 = vmatprep.subr.mxu0 0.0
    %1368 = vmatpush1.msra.mxu0 0.0
    %1369 = vmatprep.subr.mxu0 0.0
    %1370 = vmatpush1.msra.mxu0 0.0
    %1371 = vmatprep.subr.mxu0 0.0
    %1372 = vmatpush1.msra.mxu0 0.0
    %1373 = vmatprep.subr.mxu0 0.0
    %1374 = vmatpush1.msra.mxu0 0.0
    %1375 = vmatprep.subr.mxu0 0.0
    %1376 = vmatpush1.msra.mxu0 0.0
    %1377 = vmatprep.subr.mxu0 0.0
    %1378 = vmatpush1.msra.mxu0 0.0
    %1379 = vmatprep.subr.mxu0 0.0
    %1380 = vmatpush1.msra.mxu0 0.0
    %1381 = vmatprep.subr.mxu0 0.0
    %1382 = vmatpush1.msra.mxu0 0.0
    %1383 = vmatprep.subr.mxu0 0.0
    %1384 = vmatpush1.msra.mxu0 0.0
    %1385 = vmatprep.subr.mxu0 0.0
    %1386 = vmatpush1.msra.mxu0 0.0
    %1387 = vmatprep.subr.mxu0 0.0
    %1388 = vmatpush1.msra.mxu0 0.0
    %1389 = vmatprep.subr.mxu0 0.0
    %1390 = vmatpush1.msra.mxu0 0.0
    %1391 = vmatprep.subr.mxu0 0.0
    %1392 = vmatpush1.msra.mxu0 0.0
    %1393 = vmatprep.subr.mxu0 0.0
    %1394 = vmatpush1.msra.mxu0 0.0
    %1395 = vmatprep.subr.mxu0 0.0
    %1396 = vmatpush1.msra.mxu0 0.0
    %1397 = vmatprep.mubr.f32.mxu0 0.0
    %1398 = vmatmul.mubr.f32.gmra.mrb[0].mxu0 %v1331
    %v1399 = vpop.f32.mrb[0].mxu0
    %v1400 = vadd.f32 0.0, %v1399
    %v1401 = vpop.f32.mrb[0].mxu0
    %1402 = vdwg.mxu0
    %s1403 = scalar_lea.vmem %s0, 32
    %v1404 = vld [vmem:[%s1403] sm:$0x1f]
    %v1405 = vadd.f32 %v1400, %v1404
    %s1406 = scalar_lea.vmem %s1, 16
    %v1407 = vld [vmem:[%s1406] sm:$0x1f]
    %1409 = vrot.lane.b32.xlu0 %v1407, 32
    %v1410 = vpop.permute.xlu0 %1409
    %v1412 = vadd.f32 %v1400, %v1410
    %v1413 = vxor.u32 %v1405, 2147483648
    %v1414 = vmul.f32 %v1413, 1.442695
    %v1415 = vpow.pop %v1414
    %v1416 = vadd.f32 %v1415, 1.0
    %v1417 = vrcp.pop %v1416
    %v1418 = vmul.f32 1.0, %v1417
    %v1419 = vtanh.pop %v1405
    %v1420 = vmul.f32 %v1418, %v1112
    %1422 = vrot.lane.b32.xlu0 %v1419, 112
    %v1423 = vpop.permute.xlu0 %1422
    %v1425 = vmul.f32 %v1418, %v1423
    %1427 = vrot.lane.b32.xlu0 %v1425, 8
    %v1428 = vpop.permute.xlu0 %1427
    %v1430 = vadd.f32 %v1420, %v1428
    %v1431 = vtanh.pop %v1430
    %1433 = vrot.lane.b32.xlu0 %v1431, 16
    %v1434 = vpop.permute.xlu0 %1433
    %v1436 = vmul.f32 %v1418, %v1434
    %v1437 = vxor.u32 %v1412, 2147483648
    %v1438 = vmul.f32 %v1437, 1.442695
    %v1439 = vpow.pop %v1438
    %v1440 = vadd.f32 %v1439, 1.0
    %v1441 = vrcp.pop %v1440
    %v1442 = vmul.f32 1.0, %v1441
    %v1443 = vtanh.pop %v1412
    %v1444 = vmul.f32 %v1442, %v1320
    %1446 = vrot.lane.b32.xlu0 %v1443, 112
    %v1447 = vpop.permute.xlu0 %1446
    %v1449 = vmul.f32 %v1442, %v1447
    %1451 = vrot.lane.b32.xlu0 %v1449, 8
    %v1452 = vpop.permute.xlu0 %1451
    %v1454 = vadd.f32 %v1444, %v1452
    %v1455 = vtanh.pop %v1454
    %1457 = vrot.lane.b32.xlu0 %v1455, 16
    %v1458 = vpop.permute.xlu0 %1457
    %v1460 = vmul.f32 %v1442, %v1458
    %v1461 = vmul.f32 %v1436, %v906
    %v1463 = vcombine.high %v1461, %v1461
    %v1465 = vunpack.c.l.s4 1966171168
    %v1466 = vunpack.c.0.s8 %v1465
    %v1467 = vlaneseq
    %v1468 = vshrl.u32 %v1467, 7
    %v1469 = vsub.s32 %v1466, %v1468
    %v1470 = vrot.slane %v1461, %v1469
    %v1472 = vunpack.c.l.s4 1966171168
    %v1473 = vunpack.c.0.s8 %v1472
    %v1474 = vlaneseq
    %v1475 = vshrl.u32 %v1474, 7
    %v1476 = vsub.s32 %v1473, %v1475
    %v1477 = vrot.slane %v1463, %v1476
    %v1478 = vcombine.high %v1470, %v1470
    %v1480 = vunpack.c.l.s4 1966171168
    %v1481 = vunpack.c.0.s8 %v1480
    %v1482 = vlaneseq
    %v1483 = vshrl.u32 %v1482, 7
    %v1484 = vsub.s32 %v1481, %v1483
    %v1485 = vrot.slane %v1470, %v1484
    %v1487 = vunpack.c.l.s4 1966171168
    %v1488 = vunpack.c.0.s8 %v1487
    %v1489 = vlaneseq
    %v1490 = vshrl.u32 %v1489, 7
    %v1491 = vsub.s32 %v1488, %v1490
    %v1492 = vrot.slane %v1477, %v1491
    %v1494 = vunpack.c.l.s4 1966171168
    %v1495 = vunpack.c.0.s8 %v1494
    %v1496 = vlaneseq
    %v1497 = vshrl.u32 %v1496, 7
    %v1498 = vsub.s32 %v1495, %v1497
    %v1499 = vrot.slane %v1478, %v1498
    %v1500 = vcombine.high %v1485, %v1485
    %v1501 = vcombine.high %v1499, %v1499
    %v1502 = vlaneseq
    %v1503 = vshrl.u32 %v1502, 7
    %v1504 = vsub.s32 0, %v1503
    %v1505 = vrot.slane %v1485, %v1504
    %v1506 = vlaneseq
    %v1507 = vshrl.u32 %v1506, 7
    %v1508 = vsub.s32 0, %v1507
    %v1509 = vrot.slane %v1499, %v1508
    %v1510 = vlaneseq
    %v1511 = vshrl.u32 %v1510, 7
    %v1512 = vsub.s32 0, %v1511
    %v1513 = vrot.slane %v1500, %v1512
    %v1514 = vlaneseq
    %v1515 = vshrl.u32 %v1514, 7
    %v1516 = vsub.s32 0, %v1515
    %v1517 = vrot.slane %v1501, %v1516
    %v1518 = vlaneseq
    %v1519 = vshrl.u32 %v1518, 7
    %v1520 = vsub.s32 0, %v1519
    %v1521 = vrot.slane %v1492, %v1520
    %1522 = vrot.lane.b32.xlu0 %v1505, 104
    %v1523 = vpop.permute.xlu0 %1522
    %1524 = vrot.lane.b32.xlu0 %v1509, 104
    %v1525 = vpop.permute.xlu0 %1524
    %1526 = vrot.lane.b32.xlu0 %v1513, 104
    %v1527 = vpop.permute.xlu0 %1526
    %1528 = vrot.lane.b32.xlu0 %v1517, 104
    %v1529 = vpop.permute.xlu0 %1528
    %1530 = vrot.lane.b32.xlu0 %v1521, 104
    %v1531 = vpop.permute.xlu0 %1530
    %1537 = vst.msk [vmem:[#allocation2 + $0x4] sm:$0x1] %vm239, %v1523
    %1538 = vst.msk [vmem:[#allocation2 + $0xc] sm:$0x1] %vm239, %v1525
    %1539 = vst.msk [vmem:[#allocation2 + $0x14] sm:$0x1] %vm239, %v1527
    %1540 = vst.msk [vmem:[#allocation2 + $0x1c] sm:$0x1] %vm239, %v1529
    %1541 = vst.msk [vmem:[#allocation2 + $0x24] sm:$0x1] %vm239, %v1531
    %v1542 = vmul.f32 %v820, %v1460
    %v1544 = vcombine.high %v1542, %v1542
    %v1546 = vunpack.c.l.s4 1966171168
    %v1547 = vunpack.c.0.s8 %v1546
    %v1548 = vlaneseq
    %v1549 = vshrl.u32 %v1548, 7
    %v1550 = vsub.s32 %v1547, %v1549
    %v1551 = vrot.slane %v1542, %v1550
    %v1553 = vunpack.c.l.s4 1966171168
    %v1554 = vunpack.c.0.s8 %v1553
    %v1555 = vlaneseq
    %v1556 = vshrl.u32 %v1555, 7
    %v1557 = vsub.s32 %v1554, %v1556
    %v1558 = vrot.slane %v1544, %v1557
    %v1559 = vcombine.high %v1551, %v1551
    %v1561 = vunpack.c.l.s4 1966171168
    %v1562 = vunpack.c.0.s8 %v1561
    %v1563 = vlaneseq
    %v1564 = vshrl.u32 %v1563, 7
    %v1565 = vsub.s32 %v1562, %v1564
    %v1566 = vrot.slane %v1551, %v1565
    %v1568 = vunpack.c.l.s4 1966171168
    %v1569 = vunpack.c.0.s8 %v1568
    %v1570 = vlaneseq
    %v1571 = vshrl.u32 %v1570, 7
    %v1572 = vsub.s32 %v1569, %v1571
    %v1573 = vrot.slane %v1558, %v1572
    %v1575 = vunpack.c.l.s4 1966171168
    %v1576 = vunpack.c.0.s8 %v1575
    %v1577 = vlaneseq
    %v1578 = vshrl.u32 %v1577, 7
    %v1579 = vsub.s32 %v1576, %v1578
    %v1580 = vrot.slane %v1559, %v1579
    %v1581 = vcombine.high %v1566, %v1566
    %v1582 = vcombine.high %v1580, %v1580
    %v1583 = vlaneseq
    %v1584 = vshrl.u32 %v1583, 7
    %v1585 = vsub.s32 0, %v1584
    %v1586 = vrot.slane %v1566, %v1585
    %v1587 = vlaneseq
    %v1588 = vshrl.u32 %v1587, 7
    %v1589 = vsub.s32 0, %v1588
    %v1590 = vrot.slane %v1580, %v1589
    %v1591 = vlaneseq
    %v1592 = vshrl.u32 %v1591, 7
    %v1593 = vsub.s32 0, %v1592
    %v1594 = vrot.slane %v1581, %v1593
    %v1595 = vlaneseq
    %v1596 = vshrl.u32 %v1595, 7
    %v1597 = vsub.s32 0, %v1596
    %v1598 = vrot.slane %v1582, %v1597
    %v1599 = vlaneseq
    %v1600 = vshrl.u32 %v1599, 7
    %v1601 = vsub.s32 0, %v1600
    %v1602 = vrot.slane %v1573, %v1601
    %1603 = vrot.lane.b32.xlu0 %v1586, 72
    %v1604 = vpop.permute.xlu0 %1603
    %1605 = vrot.lane.b32.xlu0 %v1590, 72
    %v1606 = vpop.permute.xlu0 %1605
    %1607 = vrot.lane.b32.xlu0 %v1594, 72
    %v1608 = vpop.permute.xlu0 %1607
    %1609 = vrot.lane.b32.xlu0 %v1598, 72
    %v1610 = vpop.permute.xlu0 %1609
    %1611 = vrot.lane.b32.xlu0 %v1602, 72
    %v1612 = vpop.permute.xlu0 %1611
    %1618 = vst.msk [vmem:[#allocation3 + $0x2] sm:$0x1] %vm239, %v1604
    %1619 = vst.msk [vmem:[#allocation3 + $0xa] sm:$0x1] %vm239, %v1606
    %1620 = vst.msk [vmem:[#allocation3 + $0x12] sm:$0x1] %vm239, %v1608
    %1621 = vst.msk [vmem:[#allocation3 + $0x1a] sm:$0x1] %vm239, %v1610
    %1622 = vst.msk [vmem:[#allocation3 + $0x22] sm:$0x1] %vm239, %v1612
    %v1623 = vsub.f32 1.0, %v673
    %1625 = vset.pattern.permute.xlu0 0
    %1626 = vperm.xlu0 %1625, %v1623
    %v1627 = vpop.permute.xlu0 %1626
    %v1629 = vmul.f32 %v1627, %v1317
    %v1630 = vadd.f32 %v1542, %v1629
    %v1631 = vmul.f32 %v820, %v1454
    %v1632 = vmul.f32 %v1627, %v1320
    %v1633 = vadd.f32 %v1631, %v1632
    %1635 = vrot.lane.b32.xlu0 %v1436, 104
    %v1636 = vpop.permute.xlu0 %1635
    %1639 = vrot.lane.b32.xlu0 %v1630, 80
    %v1640 = vpop.permute.xlu0 %1639
    %v1642 = vsel %vm355, %v1636, %v1640
    %v1644 = vsel %vm27, %v1642, 0
    %1646 = vmatprep.subr.mxu0 0.0
    %1647 = vmatpush1.msra.mxu0 %v18
    %1648 = vmatprep.subr.mxu0 0.0
    %1649 = vmatpush1.msra.mxu0 %v19
    %1650 = vmatprep.subr.mxu0 0.0
    %1651 = vmatpush1.msra.mxu0 0.0
    %1652 = vmatprep.subr.mxu0 0.0
    %1653 = vmatpush1.msra.mxu0 0.0
    %1654 = vmatprep.subr.mxu0 0.0
    %1655 = vmatpush1.msra.mxu0 0.0
    %1656 = vmatprep.subr.mxu0 0.0
    %1657 = vmatpush1.msra.mxu0 0.0
    %1658 = vmatprep.subr.mxu0 0.0
    %1659 = vmatpush1.msra.mxu0 0.0
    %1660 = vmatprep.subr.mxu0 0.0
    %1661 = vmatpush1.msra.mxu0 0.0
    %1662 = vmatprep.subr.mxu0 0.0
    %1663 = vmatpush1.msra.mxu0 0.0
    %1664 = vmatprep.subr.mxu0 0.0
    %1665 = vmatpush1.msra.mxu0 0.0
    %1666 = vmatprep.subr.mxu0 0.0
    %1667 = vmatpush1.msra.mxu0 0.0
    %1668 = vmatprep.subr.mxu0 0.0
    %1669 = vmatpush1.msra.mxu0 0.0
    %1670 = vmatprep.subr.mxu0 0.0
    %1671 = vmatpush1.msra.mxu0 0.0
    %1672 = vmatprep.subr.mxu0 0.0
    %1673 = vmatpush1.msra.mxu0 0.0
    %1674 = vmatprep.subr.mxu0 0.0
    %1675 = vmatpush1.msra.mxu0 0.0
    %1676 = vmatprep.subr.mxu0 0.0
    %1677 = vmatpush1.msra.mxu0 0.0
    %1678 = vmatprep.subr.mxu0 0.0
    %1679 = vmatpush1.msra.mxu0 0.0
    %1680 = vmatprep.subr.mxu0 0.0
    %1681 = vmatpush1.msra.mxu0 0.0
    %1682 = vmatprep.subr.mxu0 0.0
    %1683 = vmatpush1.msra.mxu0 0.0
    %1684 = vmatprep.subr.mxu0 0.0
    %1685 = vmatpush1.msra.mxu0 0.0
    %1686 = vmatprep.subr.mxu0 0.0
    %1687 = vmatpush1.msra.mxu0 0.0
    %1688 = vmatprep.subr.mxu0 0.0
    %1689 = vmatpush1.msra.mxu0 0.0
    %1690 = vmatprep.subr.mxu0 0.0
    %1691 = vmatpush1.msra.mxu0 0.0
    %1692 = vmatprep.subr.mxu0 0.0
    %1693 = vmatpush1.msra.mxu0 0.0
    %1694 = vmatprep.subr.mxu0 0.0
    %1695 = vmatpush1.msra.mxu0 0.0
    %1696 = vmatprep.subr.mxu0 0.0
    %1697 = vmatpush1.msra.mxu0 0.0
    %1698 = vmatprep.subr.mxu0 0.0
    %1699 = vmatpush1.msra.mxu0 0.0
    %1700 = vmatprep.subr.mxu0 0.0
    %1701 = vmatpush1.msra.mxu0 0.0
    %1702 = vmatprep.subr.mxu0 0.0
    %1703 = vmatpush1.msra.mxu0 0.0
    %1704 = vmatprep.subr.mxu0 0.0
    %1705 = vmatpush1.msra.mxu0 0.0
    %1706 = vmatprep.subr.mxu0 0.0
    %1707 = vmatpush1.msra.mxu0 0.0
    %1708 = vmatprep.subr.mxu0 0.0
    %1709 = vmatpush1.msra.mxu0 0.0
    %1710 = vmatprep.mubr.f32.mxu0 0.0
    %1711 = vmatmul.mubr.f32.gmra.mrb[0].mxu0 %v1644
    %v1712 = vpop.f32.mrb[0].mxu0
    %v1713 = vadd.f32 0.0, %v1712
    %v1714 = vpop.f32.mrb[0].mxu0
    %1715 = vdwg.mxu0
    %s1716 = scalar_lea.vmem %s0, 40
    %v1717 = vld [vmem:[%s1716] sm:$0x1f]
    %v1718 = vadd.f32 %v1713, %v1717
    %s1719 = scalar_lea.vmem %s1, 8
    %v1720 = vld [vmem:[%s1719] sm:$0x1f]
    %1722 = vrot.lane.b32.xlu0 %v1720, 32
    %v1723 = vpop.permute.xlu0 %1722
    %v1725 = vadd.f32 %v1713, %v1723
    %v1726 = vxor.u32 %v1718, 2147483648
    %v1727 = vmul.f32 %v1726, 1.442695
    %v1728 = vpow.pop %v1727
    %v1729 = vadd.f32 %v1728, 1.0
    %v1730 = vrcp.pop %v1729
    %v1731 = vmul.f32 1.0, %v1730
    %v1732 = vtanh.pop %v1718
    %v1733 = vmul.f32 %v1731, %v1430
    %1735 = vrot.lane.b32.xlu0 %v1732, 112
    %v1736 = vpop.permute.xlu0 %1735
    %v1738 = vmul.f32 %v1731, %v1736
    %1740 = vrot.lane.b32.xlu0 %v1738, 8
    %v1741 = vpop.permute.xlu0 %1740
    %v1743 = vadd.f32 %v1733, %v1741
    %v1744 = vtanh.pop %v1743
    %1746 = vrot.lane.b32.xlu0 %v1744, 16
    %v1747 = vpop.permute.xlu0 %1746
    %v1749 = vmul.f32 %v1731, %v1747
    %v1750 = vxor.u32 %v1725, 2147483648
    %v1751 = vmul.f32 %v1750, 1.442695
    %v1752 = vpow.pop %v1751
    %v1753 = vadd.f32 %v1752, 1.0
    %v1754 = vrcp.pop %v1753
    %v1755 = vmul.f32 1.0, %v1754
    %v1756 = vtanh.pop %v1725
    %v1757 = vmul.f32 %v1755, %v1633
    %1759 = vrot.lane.b32.xlu0 %v1756, 112
    %v1760 = vpop.permute.xlu0 %1759
    %v1762 = vmul.f32 %v1755, %v1760
    %1764 = vrot.lane.b32.xlu0 %v1762, 8
    %v1765 = vpop.permute.xlu0 %1764
    %v1767 = vadd.f32 %v1757, %v1765
    %v1768 = vtanh.pop %v1767
    %1770 = vrot.lane.b32.xlu0 %v1768, 16
    %v1771 = vpop.permute.xlu0 %1770
    %v1773 = vmul.f32 %v1755, %v1771
    %v1774 = vmul.f32 %v1749, %v577
    %v1776 = vcombine.high %v1774, %v1774
    %v1778 = vunpack.c.l.s4 1966171168
    %v1779 = vunpack.c.0.s8 %v1778
    %v1780 = vlaneseq
    %v1781 = vshrl.u32 %v1780, 7
    %v1782 = vsub.s32 %v1779, %v1781
    %v1783 = vrot.slane %v1774, %v1782
    %v1785 = vunpack.c.l.s4 1966171168
    %v1786 = vunpack.c.0.s8 %v1785
    %v1787 = vlaneseq
    %v1788 = vshrl.u32 %v1787, 7
    %v1789 = vsub.s32 %v1786, %v1788
    %v1790 = vrot.slane %v1776, %v1789
    %v1791 = vcombine.high %v1783, %v1783
    %v1793 = vunpack.c.l.s4 1966171168
    %v1794 = vunpack.c.0.s8 %v1793
    %v1795 = vlaneseq
    %v1796 = vshrl.u32 %v1795, 7
    %v1797 = vsub.s32 %v1794, %v1796
    %v1798 = vrot.slane %v1783, %v1797
    %v1800 = vunpack.c.l.s4 1966171168
    %v1801 = vunpack.c.0.s8 %v1800
    %v1802 = vlaneseq
    %v1803 = vshrl.u32 %v1802, 7
    %v1804 = vsub.s32 %v1801, %v1803
    %v1805 = vrot.slane %v1790, %v1804
    %v1807 = vunpack.c.l.s4 1966171168
    %v1808 = vunpack.c.0.s8 %v1807
    %v1809 = vlaneseq
    %v1810 = vshrl.u32 %v1809, 7
    %v1811 = vsub.s32 %v1808, %v1810
    %v1812 = vrot.slane %v1791, %v1811
    %v1813 = vcombine.high %v1798, %v1798
    %v1814 = vcombine.high %v1812, %v1812
    %v1815 = vlaneseq
    %v1816 = vshrl.u32 %v1815, 7
    %v1817 = vsub.s32 0, %v1816
    %v1818 = vrot.slane %v1798, %v1817
    %v1819 = vlaneseq
    %v1820 = vshrl.u32 %v1819, 7
    %v1821 = vsub.s32 0, %v1820
    %v1822 = vrot.slane %v1812, %v1821
    %v1823 = vlaneseq
    %v1824 = vshrl.u32 %v1823, 7
    %v1825 = vsub.s32 0, %v1824
    %v1826 = vrot.slane %v1813, %v1825
    %v1827 = vlaneseq
    %v1828 = vshrl.u32 %v1827, 7
    %v1829 = vsub.s32 0, %v1828
    %v1830 = vrot.slane %v1814, %v1829
    %v1831 = vlaneseq
    %v1832 = vshrl.u32 %v1831, 7
    %v1833 = vsub.s32 0, %v1832
    %v1834 = vrot.slane %v1805, %v1833
    %1835 = vrot.lane.b32.xlu0 %v1818, 104
    %v1836 = vpop.permute.xlu0 %1835
    %1837 = vrot.lane.b32.xlu0 %v1822, 104
    %v1838 = vpop.permute.xlu0 %1837
    %1839 = vrot.lane.b32.xlu0 %v1826, 104
    %v1840 = vpop.permute.xlu0 %1839
    %1841 = vrot.lane.b32.xlu0 %v1830, 104
    %v1842 = vpop.permute.xlu0 %1841
    %1843 = vrot.lane.b32.xlu0 %v1834, 104
    %v1844 = vpop.permute.xlu0 %1843
    %1850 = vst.msk [vmem:[#allocation2 + $0x5] sm:$0x1] %vm239, %v1836
    %1851 = vst.msk [vmem:[#allocation2 + $0xd] sm:$0x1] %vm239, %v1838
    %1852 = vst.msk [vmem:[#allocation2 + $0x15] sm:$0x1] %vm239, %v1840
    %1853 = vst.msk [vmem:[#allocation2 + $0x1d] sm:$0x1] %vm239, %v1842
    %1854 = vst.msk [vmem:[#allocation2 + $0x25] sm:$0x1] %vm239, %v1844
    %v1855 = vmul.f32 %v491, %v1773
    %v1857 = vcombine.high %v1855, %v1855
    %v1859 = vunpack.c.l.s4 1966171168
    %v1860 = vunpack.c.0.s8 %v1859
    %v1861 = vlaneseq
    %v1862 = vshrl.u32 %v1861, 7
    %v1863 = vsub.s32 %v1860, %v1862
    %v1864 = vrot.slane %v1855, %v1863
    %v1866 = vunpack.c.l.s4 1966171168
    %v1867 = vunpack.c.0.s8 %v1866
    %v1868 = vlaneseq
    %v1869 = vshrl.u32 %v1868, 7
    %v1870 = vsub.s32 %v1867, %v1869
    %v1871 = vrot.slane %v1857, %v1870
    %v1872 = vcombine.high %v1864, %v1864
    %v1874 = vunpack.c.l.s4 1966171168
    %v1875 = vunpack.c.0.s8 %v1874
    %v1876 = vlaneseq
    %v1877 = vshrl.u32 %v1876, 7
    %v1878 = vsub.s32 %v1875, %v1877
    %v1879 = vrot.slane %v1864, %v1878
    %v1881 = vunpack.c.l.s4 1966171168
    %v1882 = vunpack.c.0.s8 %v1881
    %v1883 = vlaneseq
    %v1884 = vshrl.u32 %v1883, 7
    %v1885 = vsub.s32 %v1882, %v1884
    %v1886 = vrot.slane %v1871, %v1885
    %v1888 = vunpack.c.l.s4 1966171168
    %v1889 = vunpack.c.0.s8 %v1888
    %v1890 = vlaneseq
    %v1891 = vshrl.u32 %v1890, 7
    %v1892 = vsub.s32 %v1889, %v1891
    %v1893 = vrot.slane %v1872, %v1892
    %v1894 = vcombine.high %v1879, %v1879
    %v1895 = vcombine.high %v1893, %v1893
    %v1896 = vlaneseq
    %v1897 = vshrl.u32 %v1896, 7
    %v1898 = vsub.s32 0, %v1897
    %v1899 = vrot.slane %v1879, %v1898
    %v1900 = vlaneseq
    %v1901 = vshrl.u32 %v1900, 7
    %v1902 = vsub.s32 0, %v1901
    %v1903 = vrot.slane %v1893, %v1902
    %v1904 = vlaneseq
    %v1905 = vshrl.u32 %v1904, 7
    %v1906 = vsub.s32 0, %v1905
    %v1907 = vrot.slane %v1894, %v1906
    %v1908 = vlaneseq
    %v1909 = vshrl.u32 %v1908, 7
    %v1910 = vsub.s32 0, %v1909
    %v1911 = vrot.slane %v1895, %v1910
    %v1912 = vlaneseq
    %v1913 = vshrl.u32 %v1912, 7
    %v1914 = vsub.s32 0, %v1913
    %v1915 = vrot.slane %v1886, %v1914
    %1916 = vrot.lane.b32.xlu0 %v1899, 72
    %v1917 = vpop.permute.xlu0 %1916
    %1918 = vrot.lane.b32.xlu0 %v1903, 72
    %v1919 = vpop.permute.xlu0 %1918
    %1920 = vrot.lane.b32.xlu0 %v1907, 72
    %v1921 = vpop.permute.xlu0 %1920
    %1922 = vrot.lane.b32.xlu0 %v1911, 72
    %v1923 = vpop.permute.xlu0 %1922
    %1924 = vrot.lane.b32.xlu0 %v1915, 72
    %v1925 = vpop.permute.xlu0 %1924
    %1931 = vst.msk [vmem:[#allocation3 + $0x1] sm:$0x1] %vm239, %v1917
    %1932 = vst.msk [vmem:[#allocation3 + $0x9] sm:$0x1] %vm239, %v1919
    %1933 = vst.msk [vmem:[#allocation3 + $0x11] sm:$0x1] %vm239, %v1921
    %1934 = vst.msk [vmem:[#allocation3 + $0x19] sm:$0x1] %vm239, %v1923
    %1935 = vst.msk [vmem:[#allocation3 + $0x21] sm:$0x1] %vm239, %v1925
    %v1936 = vsub.f32 1.0, %v343
    %1938 = vset.pattern.permute.xlu0 0
    %1939 = vperm.xlu0 %1938, %v1936
    %v1940 = vpop.permute.xlu0 %1939
    %v1942 = vmul.f32 %v1940, %v1630
    %v1943 = vadd.f32 %v1855, %v1942
    %v1944 = vmul.f32 %v491, %v1767
    %v1945 = vmul.f32 %v1940, %v1633
    %v1946 = vadd.f32 %v1944, %v1945
    %1948 = vrot.lane.b32.xlu0 %v1749, 104
    %v1949 = vpop.permute.xlu0 %1948
    %1952 = vrot.lane.b32.xlu0 %v1943, 80
    %v1953 = vpop.permute.xlu0 %1952
    %v1955 = vsel %vm355, %v1949, %v1953
    %v1957 = vsel %vm27, %v1955, 0
    %1959 = vmatprep.subr.mxu0 0.0
    %1960 = vmatpush1.msra.mxu0 %v18
    %1961 = vmatprep.subr.mxu0 0.0
    %1962 = vmatpush1.msra.mxu0 %v19
    %1963 = vmatprep.subr.mxu0 0.0
    %1964 = vmatpush1.msra.mxu0 0.0
    %1965 = vmatprep.subr.mxu0 0.0
    %1966 = vmatpush1.msra.mxu0 0.0
    %1967 = vmatprep.subr.mxu0 0.0
    %1968 = vmatpush1.msra.mxu0 0.0
    %1969 = vmatprep.subr.mxu0 0.0
    %1970 = vmatpush1.msra.mxu0 0.0
    %1971 = vmatprep.subr.mxu0 0.0
    %1972 = vmatpush1.msra.mxu0 0.0
    %1973 = vmatprep.subr.mxu0 0.0
    %1974 = vmatpush1.msra.mxu0 0.0
    %1975 = vmatprep.subr.mxu0 0.0
    %1976 = vmatpush1.msra.mxu0 0.0
    %1977 = vmatprep.subr.mxu0 0.0
    %1978 = vmatpush1.msra.mxu0 0.0
    %1979 = vmatprep.subr.mxu0 0.0
    %1980 = vmatpush1.msra.mxu0 0.0
    %1981 = vmatprep.subr.mxu0 0.0
    %1982 = vmatpush1.msra.mxu0 0.0
    %1983 = vmatprep.subr.mxu0 0.0
    %1984 = vmatpush1.msra.mxu0 0.0
    %1985 = vmatprep.subr.mxu0 0.0
    %1986 = vmatpush1.msra.mxu0 0.0
    %1987 = vmatprep.subr.mxu0 0.0
    %1988 = vmatpush1.msra.mxu0 0.0
    %1989 = vmatprep.subr.mxu0 0.0
    %1990 = vmatpush1.msra.mxu0 0.0
    %1991 = vmatprep.subr.mxu0 0.0
    %1992 = vmatpush1.msra.mxu0 0.0
    %1993 = vmatprep.subr.mxu0 0.0
    %1994 = vmatpush1.msra.mxu0 0.0
    %1995 = vmatprep.subr.mxu0 0.0
    %1996 = vmatpush1.msra.mxu0 0.0
    %1997 = vmatprep.subr.mxu0 0.0
    %1998 = vmatpush1.msra.mxu0 0.0
    %1999 = vmatprep.subr.mxu0 0.0
    %2000 = vmatpush1.msra.mxu0 0.0
    %2001 = vmatprep.subr.mxu0 0.0
    %2002 = vmatpush1.msra.mxu0 0.0
    %2003 = vmatprep.subr.mxu0 0.0
    %2004 = vmatpush1.msra.mxu0 0.0
    %2005 = vmatprep.subr.mxu0 0.0
    %2006 = vmatpush1.msra.mxu0 0.0
    %2007 = vmatprep.subr.mxu0 0.0
    %2008 = vmatpush1.msra.mxu0 0.0
    %2009 = vmatprep.subr.mxu0 0.0
    %2010 = vmatpush1.msra.mxu0 0.0
    %2011 = vmatprep.subr.mxu0 0.0
    %2012 = vmatpush1.msra.mxu0 0.0
    %2013 = vmatprep.subr.mxu0 0.0
    %2014 = vmatpush1.msra.mxu0 0.0
    %2015 = vmatprep.subr.mxu0 0.0
    %2016 = vmatpush1.msra.mxu0 0.0
    %2017 = vmatprep.subr.mxu0 0.0
    %2018 = vmatpush1.msra.mxu0 0.0
    %2019 = vmatprep.subr.mxu0 0.0
    %2020 = vmatpush1.msra.mxu0 0.0
    %2021 = vmatprep.subr.mxu0 0.0
    %2022 = vmatpush1.msra.mxu0 0.0
    %2023 = vmatprep.mubr.f32.mxu0 0.0
    %2024 = vmatmul.mubr.f32.gmra.mrb[0].mxu0 %v1957
    %v2025 = vpop.f32.mrb[0].mxu0
    %v2026 = vadd.f32 0.0, %v2025
    %v2027 = vpop.f32.mrb[0].mxu0
    %2028 = vdwg.mxu0
    %s2029 = scalar_lea.vmem %s0, 48
    %v2030 = vld [vmem:[%s2029] sm:$0x1f]
    %v2031 = vadd.f32 %v2026, %v2030
    %v2032 = vld [vmem:[%s1] sm:$0x1f]
    %2034 = vrot.lane.b32.xlu0 %v2032, 32
    %v2035 = vpop.permute.xlu0 %2034
    %v2037 = vadd.f32 %v2026, %v2035
    %v2038 = vxor.u32 %v2031, 2147483648
    %v2039 = vmul.f32 %v2038, 1.442695
    %v2040 = vpow.pop %v2039
    %v2041 = vadd.f32 %v2040, 1.0
    %v2042 = vrcp.pop %v2041
    %v2043 = vmul.f32 1.0, %v2042
    %v2044 = vtanh.pop %v2031
    %v2045 = vmul.f32 %v2043, %v1743
    %2047 = vrot.lane.b32.xlu0 %v2044, 112
    %v2048 = vpop.permute.xlu0 %2047
    %v2050 = vmul.f32 %v2043, %v2048
    %2052 = vrot.lane.b32.xlu0 %v2050, 8
    %v2053 = vpop.permute.xlu0 %2052
    %v2055 = vadd.f32 %v2045, %v2053
    %v2056 = vtanh.pop %v2055
    %2058 = vrot.lane.b32.xlu0 %v2056, 16
    %v2059 = vpop.permute.xlu0 %2058
    %v2061 = vmul.f32 %v2043, %v2059
    %v2062 = vxor.u32 %v2037, 2147483648
    %v2063 = vmul.f32 %v2062, 1.442695
    %v2064 = vpow.pop %v2063
    %v2065 = vadd.f32 %v2064, 1.0
    %v2066 = vrcp.pop %v2065
    %v2067 = vmul.f32 1.0, %v2066
    %v2068 = vtanh.pop %v2037
    %v2069 = vmul.f32 %v2067, %v1946
    %2071 = vrot.lane.b32.xlu0 %v2068, 112
    %v2072 = vpop.permute.xlu0 %2071
    %v2074 = vmul.f32 %v2067, %v2072
    %2076 = vrot.lane.b32.xlu0 %v2074, 8
    %v2077 = vpop.permute.xlu0 %2076
    %v2079 = vadd.f32 %v2069, %v2077
    %v2080 = vtanh.pop %v2079
    %2082 = vrot.lane.b32.xlu0 %v2080, 16
    %v2083 = vpop.permute.xlu0 %2082
    %v2085 = vmul.f32 %v2067, %v2083
    %v2086 = vmul.f32 %v2061, %v248
    %v2088 = vcombine.high %v2086, %v2086
    %v2090 = vunpack.c.l.s4 1966171168
    %v2091 = vunpack.c.0.s8 %v2090
    %v2092 = vlaneseq
    %v2093 = vshrl.u32 %v2092, 7
    %v2094 = vsub.s32 %v2091, %v2093
    %v2095 = vrot.slane %v2086, %v2094
    %v2097 = vunpack.c.l.s4 1966171168
    %v2098 = vunpack.c.0.s8 %v2097
    %v2099 = vlaneseq
    %v2100 = vshrl.u32 %v2099, 7
    %v2101 = vsub.s32 %v2098, %v2100
    %v2102 = vrot.slane %v2088, %v2101
    %v2103 = vcombine.high %v2095, %v2095
    %v2105 = vunpack.c.l.s4 1966171168
    %v2106 = vunpack.c.0.s8 %v2105
    %v2107 = vlaneseq
    %v2108 = vshrl.u32 %v2107, 7
    %v2109 = vsub.s32 %v2106, %v2108
    %v2110 = vrot.slane %v2095, %v2109
    %v2112 = vunpack.c.l.s4 1966171168
    %v2113 = vunpack.c.0.s8 %v2112
    %v2114 = vlaneseq
    %v2115 = vshrl.u32 %v2114, 7
    %v2116 = vsub.s32 %v2113, %v2115
    %v2117 = vrot.slane %v2102, %v2116
    %v2119 = vunpack.c.l.s4 1966171168
    %v2120 = vunpack.c.0.s8 %v2119
    %v2121 = vlaneseq
    %v2122 = vshrl.u32 %v2121, 7
    %v2123 = vsub.s32 %v2120, %v2122
    %v2124 = vrot.slane %v2103, %v2123
    %v2125 = vcombine.high %v2110, %v2110
    %v2126 = vcombine.high %v2124, %v2124
    %v2127 = vlaneseq
    %v2128 = vshrl.u32 %v2127, 7
    %v2129 = vsub.s32 0, %v2128
    %v2130 = vrot.slane %v2110, %v2129
    %v2131 = vlaneseq
    %v2132 = vshrl.u32 %v2131, 7
    %v2133 = vsub.s32 0, %v2132
    %v2134 = vrot.slane %v2124, %v2133
    %v2135 = vlaneseq
    %v2136 = vshrl.u32 %v2135, 7
    %v2137 = vsub.s32 0, %v2136
    %v2138 = vrot.slane %v2125, %v2137
    %v2139 = vlaneseq
    %v2140 = vshrl.u32 %v2139, 7
    %v2141 = vsub.s32 0, %v2140
    %v2142 = vrot.slane %v2126, %v2141
    %v2143 = vlaneseq
    %v2144 = vshrl.u32 %v2143, 7
    %v2145 = vsub.s32 0, %v2144
    %v2146 = vrot.slane %v2117, %v2145
    %2147 = vrot.lane.b32.xlu0 %v2130, 104
    %v2148 = vpop.permute.xlu0 %2147
    %2149 = vrot.lane.b32.xlu0 %v2134, 104
    %v2150 = vpop.permute.xlu0 %2149
    %2151 = vrot.lane.b32.xlu0 %v2138, 104
    %v2152 = vpop.permute.xlu0 %2151
    %2153 = vrot.lane.b32.xlu0 %v2142, 104
    %v2154 = vpop.permute.xlu0 %2153
    %2155 = vrot.lane.b32.xlu0 %v2146, 104
    %v2156 = vpop.permute.xlu0 %2155
    %2162 = vst.msk [vmem:[#allocation2 + $0x6] sm:$0x1] %vm239, %v2148
    %2163 = vst.msk [vmem:[#allocation2 + $0xe] sm:$0x1] %vm239, %v2150
    %2164 = vst.msk [vmem:[#allocation2 + $0x16] sm:$0x1] %vm239, %v2152
    %2165 = vst.msk [vmem:[#allocation2 + $0x1e] sm:$0x1] %vm239, %v2154
    %2166 = vst.msk [vmem:[#allocation2 + $0x26] sm:$0x1] %vm239, %v2156
    %v2167 = vmul.f32 %v161, %v2085
    %v2169 = vcombine.high %v2167, %v2167
    %v2171 = vunpack.c.l.s4 1966171168
    %v2172 = vunpack.c.0.s8 %v2171
    %v2173 = vlaneseq
    %v2174 = vshrl.u32 %v2173, 7
    %v2175 = vsub.s32 %v2172, %v2174
    %v2176 = vrot.slane %v2167, %v2175
    %v2178 = vunpack.c.l.s4 1966171168
    %v2179 = vunpack.c.0.s8 %v2178
    %v2180 = vlaneseq
    %v2181 = vshrl.u32 %v2180, 7
    %v2182 = vsub.s32 %v2179, %v2181
    %v2183 = vrot.slane %v2169, %v2182
    %v2184 = vcombine.high %v2176, %v2176
    %v2186 = vunpack.c.l.s4 1966171168
    %v2187 = vunpack.c.0.s8 %v2186
    %v2188 = vlaneseq
    %v2189 = vshrl.u32 %v2188, 7
    %v2190 = vsub.s32 %v2187, %v2189
    %v2191 = vrot.slane %v2176, %v2190
    %v2193 = vunpack.c.l.s4 1966171168
    %v2194 = vunpack.c.0.s8 %v2193
    %v2195 = vlaneseq
    %v2196 = vshrl.u32 %v2195, 7
    %v2197 = vsub.s32 %v2194, %v2196
    %v2198 = vrot.slane %v2183, %v2197
    %v2200 = vunpack.c.l.s4 1966171168
    %v2201 = vunpack.c.0.s8 %v2200
    %v2202 = vlaneseq
    %v2203 = vshrl.u32 %v2202, 7
    %v2204 = vsub.s32 %v2201, %v2203
    %v2205 = vrot.slane %v2184, %v2204
    %v2206 = vcombine.high %v2191, %v2191
    %v2207 = vcombine.high %v2205, %v2205
    %v2208 = vlaneseq
    %v2209 = vshrl.u32 %v2208, 7
    %v2210 = vsub.s32 0, %v2209
    %v2211 = vrot.slane %v2191, %v2210
    %v2212 = vlaneseq
    %v2213 = vshrl.u32 %v2212, 7
    %v2214 = vsub.s32 0, %v2213
    %v2215 = vrot.slane %v2205, %v2214
    %v2216 = vlaneseq
    %v2217 = vshrl.u32 %v2216, 7
    %v2218 = vsub.s32 0, %v2217
    %v2219 = vrot.slane %v2206, %v2218
    %v2220 = vlaneseq
    %v2221 = vshrl.u32 %v2220, 7
    %v2222 = vsub.s32 0, %v2221
    %v2223 = vrot.slane %v2207, %v2222
    %v2224 = vlaneseq
    %v2225 = vshrl.u32 %v2224, 7
    %v2226 = vsub.s32 0, %v2225
    %v2227 = vrot.slane %v2198, %v2226
    %2228 = vrot.lane.b32.xlu0 %v2211, 72
    %v2229 = vpop.permute.xlu0 %2228
    %2230 = vrot.lane.b32.xlu0 %v2215, 72
    %v2231 = vpop.permute.xlu0 %2230
    %2232 = vrot.lane.b32.xlu0 %v2219, 72
    %v2233 = vpop.permute.xlu0 %2232
    %2234 = vrot.lane.b32.xlu0 %v2223, 72
    %v2235 = vpop.permute.xlu0 %2234
    %2236 = vrot.lane.b32.xlu0 %v2227, 72
    %v2237 = vpop.permute.xlu0 %2236
    %2243 = vst.msk [vmem:[#allocation3] sm:$0x1] %vm239, %v2229
    %2244 = vst.msk [vmem:[#allocation3 + $0x8] sm:$0x1] %vm239, %v2231
    %2245 = vst.msk [vmem:[#allocation3 + $0x10] sm:$0x1] %vm239, %v2233
    %2246 = vst.msk [vmem:[#allocation3 + $0x18] sm:$0x1] %vm239, %v2235
    %2247 = vst.msk [vmem:[#allocation3 + $0x20] sm:$0x1] %vm239, %v2237
    %v2248 = vld [vmem:[#allocation2] sm:$0x7f]
    %v2249 = vld [vmem:[#allocation2 + $0x8] sm:$0x7f]
    %v2250 = vld [vmem:[#allocation2 + $0x10] sm:$0x7f]
    %v2251 = vld [vmem:[#allocation2 + $0x18] sm:$0x7f]
    %v2252 = vld [vmem:[#allocation2 + $0x20] sm:$0x7f]
    %v2253 = vld [vmem:[#allocation3] sm:$0x7f]
    %v2254 = vld [vmem:[#allocation3 + $0x8] sm:$0x7f]
    %v2255 = vld [vmem:[#allocation3 + $0x10] sm:$0x7f]
    %v2256 = vld [vmem:[#allocation3 + $0x18] sm:$0x7f]
    %v2257 = vld [vmem:[#allocation3 + $0x20] sm:$0x7f]
    %2263 = vrot.lane.b32.xlu0 %v2253, 8
    %v2264 = vpop.permute.xlu0 %2263
    %2265 = vrot.lane.b32.xlu0 %v2254, 8
    %v2266 = vpop.permute.xlu0 %2265
    %2267 = vrot.lane.b32.xlu0 %v2255, 8
    %v2268 = vpop.permute.xlu0 %2267
    %2269 = vrot.lane.b32.xlu0 %v2256, 8
    %v2270 = vpop.permute.xlu0 %2269
    %2271 = vrot.lane.b32.xlu0 %v2257, 8
    %v2272 = vpop.permute.xlu0 %2271
    %v2278 = vsel %vm355, %v2248, %v2264
    %v2279 = vsel %vm355, %v2249, %v2266
    %v2280 = vsel %vm355, %v2250, %v2268
    %v2281 = vsel %vm355, %v2251, %v2270
    %v2282 = vsel %vm355, %v2252, %v2272
    %v2283 = vmul.f32 %v2278, 0.25
    %v2284 = vmul.f32 %v2279, 0.25
    %v2285 = vmul.f32 %v2280, 0.25
    %v2286 = vmul.f32 %v2281, 0.25
    %v2287 = vmul.f32 %v2282, 0.25
    %v2289 = vsel %vm27, %v2283, 0
    %v2292 = vsel %vm27, %v2278, 0
    %2294 = vmatprep.subr.mxu0 0.0
    %2295 = vmatpush1.xpose.msra.mxu0 %v2292
    %2296 = vmatprep.subr.mxu0 0.0
    %2297 = vmatpush1.xpose.msra.mxu0 0.0
    %2298 = vmatprep.subr.mxu0 0.0
    %2299 = vmatpush1.xpose.msra.mxu0 0.0
    %2300 = vmatprep.subr.mxu0 0.0
    %2301 = vmatpush1.xpose.msra.mxu0 0.0
    %2302 = vmatprep.subr.mxu0 0.0
    %2303 = vmatpush1.xpose.msra.mxu0 0.0
    %2304 = vmatprep.subr.mxu0 0.0
    %2305 = vmatpush1.xpose.msra.mxu0 0.0
    %2306 = vmatprep.subr.mxu0 0.0
    %2307 = vmatpush1.xpose.msra.mxu0 0.0
    %2308 = vmatprep.subr.mxu0 0.0
    %2309 = vmatpush1.xpose.msra.mxu0 0.0
    %2310 = vmatprep.subr.mxu0 0.0
    %2311 = vmatpush1.xpose.msra.mxu0 0.0
    %2312 = vmatprep.subr.mxu0 0.0
    %2313 = vmatpush1.xpose.msra.mxu0 0.0
    %2314 = vmatprep.subr.mxu0 0.0
    %2315 = vmatpush1.xpose.msra.mxu0 0.0
    %2316 = vmatprep.subr.mxu0 0.0
    %2317 = vmatpush1.xpose.msra.mxu0 0.0
    %2318 = vmatprep.subr.mxu0 0.0
    %2319 = vmatpush1.xpose.msra.mxu0 0.0
    %2320 = vmatprep.subr.mxu0 0.0
    %2321 = vmatpush1.xpose.msra.mxu0 0.0
    %2322 = vmatprep.subr.mxu0 0.0
    %2323 = vmatpush1.xpose.msra.mxu0 0.0
    %2324 = vmatprep.subr.mxu0 0.0
    %2325 = vmatpush1.xpose.msra.mxu0 0.0
    %2326 = vmatprep.subr.mxu0 0.0
    %2327 = vmatpush1.xpose.msra.mxu0 0.0
    %2328 = vmatprep.subr.mxu0 0.0
    %2329 = vmatpush1.xpose.msra.mxu0 0.0
    %2330 = vmatprep.subr.mxu0 0.0
    %2331 = vmatpush1.xpose.msra.mxu0 0.0
    %2332 = vmatprep.subr.mxu0 0.0
    %2333 = vmatpush1.xpose.msra.mxu0 0.0
    %2334 = vmatprep.subr.mxu0 0.0
    %2335 = vmatpush1.xpose.msra.mxu0 0.0
    %2336 = vmatprep.subr.mxu0 0.0
    %2337 = vmatpush1.xpose.msra.mxu0 0.0
    %2338 = vmatprep.subr.mxu0 0.0
    %2339 = vmatpush1.xpose.msra.mxu0 0.0
    %2340 = vmatprep.subr.mxu0 0.0
    %2341 = vmatpush1.xpose.msra.mxu0 0.0
    %2342 = vmatprep.subr.mxu0 0.0
    %2343 = vmatpush1.xpose.msra.mxu0 0.0
    %2344 = vmatprep.subr.mxu0 0.0
    %2345 = vmatpush1.xpose.msra.mxu0 0.0
    %2346 = vmatprep.subr.mxu0 0.0
    %2347 = vmatpush1.xpose.msra.mxu0 0.0
    %2348 = vmatprep.subr.mxu0 0.0
    %2349 = vmatpush1.xpose.msra.mxu0 0.0
    %2350 = vmatprep.subr.mxu0 0.0
    %2351 = vmatpush1.xpose.msra.mxu0 0.0
    %2352 = vmatprep.subr.mxu0 0.0
    %2353 = vmatpush1.xpose.msra.mxu0 0.0
    %2354 = vmatprep.subr.mxu0 0.0
    %2355 = vmatpush1.xpose.msra.mxu0 0.0
    %2356 = vmatprep.subr.mxu0 0.0
    %2357 = vmatpush1.xpose.msra.mxu0 0.0
    %2358 = vmatprep.mubr.f32.mxu0 0.0
    %2359 = vmatmul.mubr.f32.gmra.mrb[0].mxu0 %v2289
    %v2360 = vpop.f32.mrb[0].mxu0
    %v2361 = vadd.f32 0.0, %v2360
    %v2362 = vpop.f32.mrb[0].mxu0
    %2363 = vdwg.mxu0
    %v2365 = vsel %vm27, %v2284, 0
    %v2368 = vsel %vm27, %v2279, 0
    %2370 = vmatprep.subr.mxu0 0.0
    %2371 = vmatpush1.xpose.msra.mxu0 %v2368
    %2372 = vmatprep.subr.mxu0 0.0
    %2373 = vmatpush1.xpose.msra.mxu0 0.0
    %2374 = vmatprep.subr.mxu0 0.0
    %2375 = vmatpush1.xpose.msra.mxu0 0.0
    %2376 = vmatprep.subr.mxu0 0.0
    %2377 = vmatpush1.xpose.msra.mxu0 0.0
    %2378 = vmatprep.subr.mxu0 0.0
    %2379 = vmatpush1.xpose.msra.mxu0 0.0
    %2380 = vmatprep.subr.mxu0 0.0
    %2381 = vmatpush1.xpose.msra.mxu0 0.0
    %2382 = vmatprep.subr.mxu0 0.0
    %2383 = vmatpush1.xpose.msra.mxu0 0.0
    %2384 = vmatprep.subr.mxu0 0.0
    %2385 = vmatpush1.xpose.msra.mxu0 0.0
    %2386 = vmatprep.subr.mxu0 0.0
    %2387 = vmatpush1.xpose.msra.mxu0 0.0
    %2388 = vmatprep.subr.mxu0 0.0
    %2389 = vmatpush1.xpose.msra.mxu0 0.0
    %2390 = vmatprep.subr.mxu0 0.0
    %2391 = vmatpush1.xpose.msra.mxu0 0.0
    %2392 = vmatprep.subr.mxu0 0.0
    %2393 = vmatpush1.xpose.msra.mxu0 0.0
    %2394 = vmatprep.subr.mxu0 0.0
    %2395 = vmatpush1.xpose.msra.mxu0 0.0
    %2396 = vmatprep.subr.mxu0 0.0
    %2397 = vmatpush1.xpose.msra.mxu0 0.0
    %2398 = vmatprep.subr.mxu0 0.0
    %2399 = vmatpush1.xpose.msra.mxu0 0.0
    %2400 = vmatprep.subr.mxu0 0.0
    %2401 = vmatpush1.xpose.msra.mxu0 0.0
    %2402 = vmatprep.subr.mxu0 0.0
    %2403 = vmatpush1.xpose.msra.mxu0 0.0
    %2404 = vmatprep.subr.mxu0 0.0
    %2405 = vmatpush1.xpose.msra.mxu0 0.0
    %2406 = vmatprep.subr.mxu0 0.0
    %2407 = vmatpush1.xpose.msra.mxu0 0.0
    %2408 = vmatprep.subr.mxu0 0.0
    %2409 = vmatpush1.xpose.msra.mxu0 0.0
    %2410 = vmatprep.subr.mxu0 0.0
    %2411 = vmatpush1.xpose.msra.mxu0 0.0
    %2412 = vmatprep.subr.mxu0 0.0
    %2413 = vmatpush1.xpose.msra.mxu0 0.0
    %2414 = vmatprep.subr.mxu0 0.0
    %2415 = vmatpush1.xpose.msra.mxu0 0.0
    %2416 = vmatprep.subr.mxu0 0.0
    %2417 = vmatpush1.xpose.msra.mxu0 0.0
    %2418 = vmatprep.subr.mxu0 0.0
    %2419 = vmatpush1.xpose.msra.mxu0 0.0
    %2420 = vmatprep.subr.mxu0 0.0
    %2421 = vmatpush1.xpose.msra.mxu0 0.0
    %2422 = vmatprep.subr.mxu0 0.0
    %2423 = vmatpush1.xpose.msra.mxu0 0.0
    %2424 = vmatprep.subr.mxu0 0.0
    %2425 = vmatpush1.xpose.msra.mxu0 0.0
    %2426 = vmatprep.subr.mxu0 0.0
    %2427 = vmatpush1.xpose.msra.mxu0 0.0
    %2428 = vmatprep.subr.mxu0 0.0
    %2429 = vmatpush1.xpose.msra.mxu0 0.0
    %2430 = vmatprep.subr.mxu0 0.0
    %2431 = vmatpush1.xpose.msra.mxu0 0.0
    %2432 = vmatprep.subr.mxu0 0.0
    %2433 = vmatpush1.xpose.msra.mxu0 0.0
    %2434 = vmatprep.mubr.f32.mxu0 0.0
    %2435 = vmatmul.mubr.f32.gmra.mrb[0].mxu0 %v2365
    %v2436 = vpop.f32.mrb[0].mxu0
    %v2437 = vadd.f32 0.0, %v2436
    %v2438 = vpop.f32.mrb[0].mxu0
    %2439 = vdwg.mxu0
    %v2441 = vsel %vm27, %v2285, 0
    %v2444 = vsel %vm27, %v2280, 0
    %2446 = vmatprep.subr.mxu0 0.0
    %2447 = vmatpush1.xpose.msra.mxu0 %v2444
    %2448 = vmatprep.subr.mxu0 0.0
    %2449 = vmatpush1.xpose.msra.mxu0 0.0
    %2450 = vmatprep.subr.mxu0 0.0
    %2451 = vmatpush1.xpose.msra.mxu0 0.0
    %2452 = vmatprep.subr.mxu0 0.0
    %2453 = vmatpush1.xpose.msra.mxu0 0.0
    %2454 = vmatprep.subr.mxu0 0.0
    %2455 = vmatpush1.xpose.msra.mxu0 0.0
    %2456 = vmatprep.subr.mxu0 0.0
    %2457 = vmatpush1.xpose.msra.mxu0 0.0
    %2458 = vmatprep.subr.mxu0 0.0
    %2459 = vmatpush1.xpose.msra.mxu0 0.0
    %2460 = vmatprep.subr.mxu0 0.0
    %2461 = vmatpush1.xpose.msra.mxu0 0.0
    %2462 = vmatprep.subr.mxu0 0.0
    %2463 = vmatpush1.xpose.msra.mxu0 0.0
    %2464 = vmatprep.subr.mxu0 0.0
    %2465 = vmatpush1.xpose.msra.mxu0 0.0
    %2466 = vmatprep.subr.mxu0 0.0
    %2467 = vmatpush1.xpose.msra.mxu0 0.0
    %2468 = vmatprep.subr.mxu0 0.0
    %2469 = vmatpush1.xpose.msra.mxu0 0.0
    %2470 = vmatprep.subr.mxu0 0.0
    %2471 = vmatpush1.xpose.msra.mxu0 0.0
    %2472 = vmatprep.subr.mxu0 0.0
    %2473 = vmatpush1.xpose.msra.mxu0 0.0
    %2474 = vmatprep.subr.mxu0 0.0
    %2475 = vmatpush1.xpose.msra.mxu0 0.0
    %2476 = vmatprep.subr.mxu0 0.0
    %2477 = vmatpush1.xpose.msra.mxu0 0.0
    %2478 = vmatprep.subr.mxu0 0.0
    %2479 = vmatpush1.xpose.msra.mxu0 0.0
    %2480 = vmatprep.subr.mxu0 0.0
    %2481 = vmatpush1.xpose.msra.mxu0 0.0
    %2482 = vmatprep.subr.mxu0 0.0
    %2483 = vmatpush1.xpose.msra.mxu0 0.0
    %2484 = vmatprep.subr.mxu0 0.0
    %2485 = vmatpush1.xpose.msra.mxu0 0.0
    %2486 = vmatprep.subr.mxu0 0.0
    %2487 = vmatpush1.xpose.msra.mxu0 0.0
    %2488 = vmatprep.subr.mxu0 0.0
    %2489 = vmatpush1.xpose.msra.mxu0 0.0
    %2490 = vmatprep.subr.mxu0 0.0
    %2491 = vmatpush1.xpose.msra.mxu0 0.0
    %2492 = vmatprep.subr.mxu0 0.0
    %2493 = vmatpush1.xpose.msra.mxu0 0.0
    %2494 = vmatprep.subr.mxu0 0.0
    %2495 = vmatpush1.xpose.msra.mxu0 0.0
    %2496 = vmatprep.subr.mxu0 0.0
    %2497 = vmatpush1.xpose.msra.mxu0 0.0
    %2498 = vmatprep.subr.mxu0 0.0
    %2499 = vmatpush1.xpose.msra.mxu0 0.0
    %2500 = vmatprep.subr.mxu0 0.0
    %2501 = vmatpush1.xpose.msra.mxu0 0.0
    %2502 = vmatprep.subr.mxu0 0.0
    %2503 = vmatpush1.xpose.msra.mxu0 0.0
    %2504 = vmatprep.subr.mxu0 0.0
    %2505 = vmatpush1.xpose.msra.mxu0 0.0
    %2506 = vmatprep.subr.mxu0 0.0
    %2507 = vmatpush1.xpose.msra.mxu0 0.0
    %2508 = vmatprep.subr.mxu0 0.0
    %2509 = vmatpush1.xpose.msra.mxu0 0.0
    %2510 = vmatprep.mubr.f32.mxu0 0.0
    %2511 = vmatmul.mubr.f32.gmra.mrb[0].mxu0 %v2441
    %v2512 = vpop.f32.mrb[0].mxu0
    %v2513 = vadd.f32 0.0, %v2512
    %v2514 = vpop.f32.mrb[0].mxu0
    %2515 = vdwg.mxu0
    %v2517 = vsel %vm27, %v2286, 0
    %v2520 = vsel %vm27, %v2281, 0
    %2522 = vmatprep.subr.mxu0 0.0
    %2523 = vmatpush1.xpose.msra.mxu0 %v2520
    %2524 = vmatprep.subr.mxu0 0.0
    %2525 = vmatpush1.xpose.msra.mxu0 0.0
    %2526 = vmatprep.subr.mxu0 0.0
    %2527 = vmatpush1.xpose.msra.mxu0 0.0
    %2528 = vmatprep.subr.mxu0 0.0
    %2529 = vmatpush1.xpose.msra.mxu0 0.0
    %2530 = vmatprep.subr.mxu0 0.0
    %2531 = vmatpush1.xpose.msra.mxu0 0.0
    %2532 = vmatprep.subr.mxu0 0.0
    %2533 = vmatpush1.xpose.msra.mxu0 0.0
    %2534 = vmatprep.subr.mxu0 0.0
    %2535 = vmatpush1.xpose.msra.mxu0 0.0
    %2536 = vmatprep.subr.mxu0 0.0
    %2537 = vmatpush1.xpose.msra.mxu0 0.0
    %2538 = vmatprep.subr.mxu0 0.0
    %2539 = vmatpush1.xpose.msra.mxu0 0.0
    %2540 = vmatprep.subr.mxu0 0.0
    %2541 = vmatpush1.xpose.msra.mxu0 0.0
    %2542 = vmatprep.subr.mxu0 0.0
    %2543 = vmatpush1.xpose.msra.mxu0 0.0
    %2544 = vmatprep.subr.mxu0 0.0
    %2545 = vmatpush1.xpose.msra.mxu0 0.0
    %2546 = vmatprep.subr.mxu0 0.0
    %2547 = vmatpush1.xpose.msra.mxu0 0.0
    %2548 = vmatprep.subr.mxu0 0.0
    %2549 = vmatpush1.xpose.msra.mxu0 0.0
    %2550 = vmatprep.subr.mxu0 0.0
    %2551 = vmatpush1.xpose.msra.mxu0 0.0
    %2552 = vmatprep.subr.mxu0 0.0
    %2553 = vmatpush1.xpose.msra.mxu0 0.0
    %2554 = vmatprep.subr.mxu0 0.0
    %2555 = vmatpush1.xpose.msra.mxu0 0.0
    %2556 = vmatprep.subr.mxu0 0.0
    %2557 = vmatpush1.xpose.msra.mxu0 0.0
    %2558 = vmatprep.subr.mxu0 0.0
    %2559 = vmatpush1.xpose.msra.mxu0 0.0
    %2560 = vmatprep.subr.mxu0 0.0
    %2561 = vmatpush1.xpose.msra.mxu0 0.0
    %2562 = vmatprep.subr.mxu0 0.0
    %2563 = vmatpush1.xpose.msra.mxu0 0.0
    %2564 = vmatprep.subr.mxu0 0.0
    %2565 = vmatpush1.xpose.msra.mxu0 0.0
    %2566 = vmatprep.subr.mxu0 0.0
    %2567 = vmatpush1.xpose.msra.mxu0 0.0
    %2568 = vmatprep.subr.mxu0 0.0
    %2569 = vmatpush1.xpose.msra.mxu0 0.0
    %2570 = vmatprep.subr.mxu0 0.0
    %2571 = vmatpush1.xpose.msra.mxu0 0.0
    %2572 = vmatprep.subr.mxu0 0.0
    %2573 = vmatpush1.xpose.msra.mxu0 0.0
    %2574 = vmatprep.subr.mxu0 0.0
    %2575 = vmatpush1.xpose.msra.mxu0 0.0
    %2576 = vmatprep.subr.mxu0 0.0
    %2577 = vmatpush1.xpose.msra.mxu0 0.0
    %2578 = vmatprep.subr.mxu0 0.0
    %2579 = vmatpush1.xpose.msra.mxu0 0.0
    %2580 = vmatprep.subr.mxu0 0.0
    %2581 = vmatpush1.xpose.msra.mxu0 0.0
    %2582 = vmatprep.subr.mxu0 0.0
    %2583 = vmatpush1.xpose.msra.mxu0 0.0
    %2584 = vmatprep.subr.mxu0 0.0
    %2585 = vmatpush1.xpose.msra.mxu0 0.0
    %2586 = vmatprep.mubr.f32.mxu0 0.0
    %2587 = vmatmul.mubr.f32.gmra.mrb[0].mxu0 %v2517
    %v2588 = vpop.f32.mrb[0].mxu0
    %v2589 = vadd.f32 0.0, %v2588
    %v2590 = vpop.f32.mrb[0].mxu0
    %2591 = vdwg.mxu0
    %v2593 = vsel %vm27, %v2287, 0
    %v2596 = vsel %vm27, %v2282, 0
    %2598 = vmatprep.subr.mxu0 0.0
    %2599 = vmatpush1.xpose.msra.mxu0 %v2596
    %2600 = vmatprep.subr.mxu0 0.0
    %2601 = vmatpush1.xpose.msra.mxu0 0.0
    %2602 = vmatprep.subr.mxu0 0.0
    %2603 = vmatpush1.xpose.msra.mxu0 0.0
    %2604 = vmatprep.subr.mxu0 0.0
    %2605 = vmatpush1.xpose.msra.mxu0 0.0
    %2606 = vmatprep.subr.mxu0 0.0
    %2607 = vmatpush1.xpose.msra.mxu0 0.0
    %2608 = vmatprep.subr.mxu0 0.0
    %2609 = vmatpush1.xpose.msra.mxu0 0.0
    %2610 = vmatprep.subr.mxu0 0.0
    %2611 = vmatpush1.xpose.msra.mxu0 0.0
    %2612 = vmatprep.subr.mxu0 0.0
    %2613 = vmatpush1.xpose.msra.mxu0 0.0
    %2614 = vmatprep.subr.mxu0 0.0
    %2615 = vmatpush1.xpose.msra.mxu0 0.0
    %2616 = vmatprep.subr.mxu0 0.0
    %2617 = vmatpush1.xpose.msra.mxu0 0.0
    %2618 = vmatprep.subr.mxu0 0.0
    %2619 = vmatpush1.xpose.msra.mxu0 0.0
    %2620 = vmatprep.subr.mxu0 0.0
    %2621 = vmatpush1.xpose.msra.mxu0 0.0
    %2622 = vmatprep.subr.mxu0 0.0
    %2623 = vmatpush1.xpose.msra.mxu0 0.0
    %2624 = vmatprep.subr.mxu0 0.0
    %2625 = vmatpush1.xpose.msra.mxu0 0.0
    %2626 = vmatprep.subr.mxu0 0.0
    %2627 = vmatpush1.xpose.msra.mxu0 0.0
    %2628 = vmatprep.subr.mxu0 0.0
    %2629 = vmatpush1.xpose.msra.mxu0 0.0
    %2630 = vmatprep.subr.mxu0 0.0
    %2631 = vmatpush1.xpose.msra.mxu0 0.0
    %2632 = vmatprep.subr.mxu0 0.0
    %2633 = vmatpush1.xpose.msra.mxu0 0.0
    %2634 = vmatprep.subr.mxu0 0.0
    %2635 = vmatpush1.xpose.msra.mxu0 0.0
    %2636 = vmatprep.subr.mxu0 0.0
    %2637 = vmatpush1.xpose.msra.mxu0 0.0
    %2638 = vmatprep.subr.mxu0 0.0
    %2639 = vmatpush1.xpose.msra.mxu0 0.0
    %2640 = vmatprep.subr.mxu0 0.0
    %2641 = vmatpush1.xpose.msra.mxu0 0.0
    %2642 = vmatprep.subr.mxu0 0.0
    %2643 = vmatpush1.xpose.msra.mxu0 0.0
    %2644 = vmatprep.subr.mxu0 0.0
    %2645 = vmatpush1.xpose.msra.mxu0 0.0
    %2646 = vmatprep.subr.mxu0 0.0
    %2647 = vmatpush1.xpose.msra.mxu0 0.0
    %2648 = vmatprep.subr.mxu0 0.0
    %2649 = vmatpush1.xpose.msra.mxu0 0.0
    %2650 = vmatprep.subr.mxu0 0.0
    %2651 = vmatpush1.xpose.msra.mxu0 0.0
    %2652 = vmatprep.subr.mxu0 0.0
    %2653 = vmatpush1.xpose.msra.mxu0 0.0
    %2654 = vmatprep.subr.mxu0 0.0
    %2655 = vmatpush1.xpose.msra.mxu0 0.0
    %2656 = vmatprep.subr.mxu0 0.0
    %2657 = vmatpush1.xpose.msra.mxu0 0.0
    %2658 = vmatprep.subr.mxu0 0.0
    %2659 = vmatpush1.xpose.msra.mxu0 0.0
    %2660 = vmatprep.subr.mxu0 0.0
    %2661 = vmatpush1.xpose.msra.mxu0 0.0
    %2662 = vmatprep.mubr.f32.mxu0 0.0
    %2663 = vmatmul.mubr.f32.gmra.mrb[0].mxu0 %v2593
    %v2664 = vpop.f32.mrb[0].mxu0
    %v2665 = vadd.f32 0.0, %v2664
    %v2666 = vpop.f32.mrb[0].mxu0
    %2667 = vdwg.mxu0
    %2668 = vmatprep.subr.mxu0 0.0
    %2669 = vmatpush1.xpose.msra.mxu0 %v2292
    %2670 = vmatprep.subr.mxu0 0.0
    %2671 = vmatpush1.xpose.msra.mxu0 0.0
    %2672 = vmatprep.subr.mxu0 0.0
    %2673 = vmatpush1.xpose.msra.mxu0 0.0
    %2674 = vmatprep.subr.mxu0 0.0
    %2675 = vmatpush1.xpose.msra.mxu0 0.0
    %2676 = vmatprep.subr.mxu0 0.0
    %2677 = vmatpush1.xpose.msra.mxu0 0.0
    %2678 = vmatprep.subr.mxu0 0.0
    %2679 = vmatpush1.xpose.msra.mxu0 0.0
    %2680 = vmatprep.subr.mxu0 0.0
    %2681 = vmatpush1.xpose.msra.mxu0 0.0
    %2682 = vmatprep.subr.mxu0 0.0
    %2683 = vmatpush1.xpose.msra.mxu0 0.0
    %2684 = vmatprep.subr.mxu0 0.0
    %2685 = vmatpush1.xpose.msra.mxu0 0.0
    %2686 = vmatprep.subr.mxu0 0.0
    %2687 = vmatpush1.xpose.msra.mxu0 0.0
    %2688 = vmatprep.subr.mxu0 0.0
    %2689 = vmatpush1.xpose.msra.mxu0 0.0
    %2690 = vmatprep.subr.mxu0 0.0
    %2691 = vmatpush1.xpose.msra.mxu0 0.0
    %2692 = vmatprep.subr.mxu0 0.0
    %2693 = vmatpush1.xpose.msra.mxu0 0.0
    %2694 = vmatprep.subr.mxu0 0.0
    %2695 = vmatpush1.xpose.msra.mxu0 0.0
    %2696 = vmatprep.subr.mxu0 0.0
    %2697 = vmatpush1.xpose.msra.mxu0 0.0
    %2698 = vmatprep.subr.mxu0 0.0
    %2699 = vmatpush1.xpose.msra.mxu0 0.0
    %2700 = vmatprep.subr.mxu0 0.0
    %2701 = vmatpush1.xpose.msra.mxu0 0.0
    %2702 = vmatprep.subr.mxu0 0.0
    %2703 = vmatpush1.xpose.msra.mxu0 0.0
    %2704 = vmatprep.subr.mxu0 0.0
    %2705 = vmatpush1.xpose.msra.mxu0 0.0
    %2706 = vmatprep.subr.mxu0 0.0
    %2707 = vmatpush1.xpose.msra.mxu0 0.0
    %2708 = vmatprep.subr.mxu0 0.0
    %2709 = vmatpush1.xpose.msra.mxu0 0.0
    %2710 = vmatprep.subr.mxu0 0.0
    %2711 = vmatpush1.xpose.msra.mxu0 0.0
    %2712 = vmatprep.subr.mxu0 0.0
    %2713 = vmatpush1.xpose.msra.mxu0 0.0
    %2714 = vmatprep.subr.mxu0 0.0
    %2715 = vmatpush1.xpose.msra.mxu0 0.0
    %2716 = vmatprep.subr.mxu0 0.0
    %2717 = vmatpush1.xpose.msra.mxu0 0.0
    %2718 = vmatprep.subr.mxu0 0.0
    %2719 = vmatpush1.xpose.msra.mxu0 0.0
    %2720 = vmatprep.subr.mxu0 0.0
    %2721 = vmatpush1.xpose.msra.mxu0 0.0
    %2722 = vmatprep.subr.mxu0 0.0
    %2723 = vmatpush1.xpose.msra.mxu0 0.0
    %2724 = vmatprep.subr.mxu0 0.0
    %2725 = vmatpush1.xpose.msra.mxu0 0.0
    %2726 = vmatprep.subr.mxu0 0.0
    %2727 = vmatpush1.xpose.msra.mxu0 0.0
    %2728 = vmatprep.subr.mxu0 0.0
    %2729 = vmatpush1.xpose.msra.mxu0 0.0
    %2730 = vmatprep.subr.mxu0 0.0
    %2731 = vmatpush1.xpose.msra.mxu0 0.0
    %2732 = vmatprep.mubr.f32.mxu0 0.0
    %2733 = vmatmul.mubr.f32.gmra.mrb[0].mxu0 %v2365
    %v2734 = vpop.f32.mrb[0].mxu0
    %v2735 = vadd.f32 0.0, %v2734
    %v2736 = vpop.f32.mrb[0].mxu0
    %2737 = vdwg.mxu0
    %2738 = vmatprep.subr.mxu0 0.0
    %2739 = vmatpush1.xpose.msra.mxu0 %v2368
    %2740 = vmatprep.subr.mxu0 0.0
    %2741 = vmatpush1.xpose.msra.mxu0 0.0
    %2742 = vmatprep.subr.mxu0 0.0
    %2743 = vmatpush1.xpose.msra.mxu0 0.0
    %2744 = vmatprep.subr.mxu0 0.0
    %2745 = vmatpush1.xpose.msra.mxu0 0.0
    %2746 = vmatprep.subr.mxu0 0.0
    %2747 = vmatpush1.xpose.msra.mxu0 0.0
    %2748 = vmatprep.subr.mxu0 0.0
    %2749 = vmatpush1.xpose.msra.mxu0 0.0
    %2750 = vmatprep.subr.mxu0 0.0
    %2751 = vmatpush1.xpose.msra.mxu0 0.0
    %2752 = vmatprep.subr.mxu0 0.0
    %2753 = vmatpush1.xpose.msra.mxu0 0.0
    %2754 = vmatprep.subr.mxu0 0.0
    %2755 = vmatpush1.xpose.msra.mxu0 0.0
    %2756 = vmatprep.subr.mxu0 0.0
    %2757 = vmatpush1.xpose.msra.mxu0 0.0
    %2758 = vmatprep.subr.mxu0 0.0
    %2759 = vmatpush1.xpose.msra.mxu0 0.0
    %2760 = vmatprep.subr.mxu0 0.0
    %2761 = vmatpush1.xpose.msra.mxu0 0.0
    %2762 = vmatprep.subr.mxu0 0.0
    %2763 = vmatpush1.xpose.msra.mxu0 0.0
    %2764 = vmatprep.subr.mxu0 0.0
    %2765 = vmatpush1.xpose.msra.mxu0 0.0
    %2766 = vmatprep.subr.mxu0 0.0
    %2767 = vmatpush1.xpose.msra.mxu0 0.0
    %2768 = vmatprep.subr.mxu0 0.0
    %2769 = vmatpush1.xpose.msra.mxu0 0.0
    %2770 = vmatprep.subr.mxu0 0.0
    %2771 = vmatpush1.xpose.msra.mxu0 0.0
    %2772 = vmatprep.subr.mxu0 0.0
    %2773 = vmatpush1.xpose.msra.mxu0 0.0
    %2774 = vmatprep.subr.mxu0 0.0
    %2775 = vmatpush1.xpose.msra.mxu0 0.0
    %2776 = vmatprep.subr.mxu0 0.0
    %2777 = vmatpush1.xpose.msra.mxu0 0.0
    %2778 = vmatprep.subr.mxu0 0.0
    %2779 = vmatpush1.xpose.msra.mxu0 0.0
    %2780 = vmatprep.subr.mxu0 0.0
    %2781 = vmatpush1.xpose.msra.mxu0 0.0
    %2782 = vmatprep.subr.mxu0 0.0
    %2783 = vmatpush1.xpose.msra.mxu0 0.0
    %2784 = vmatprep.subr.mxu0 0.0
    %2785 = vmatpush1.xpose.msra.mxu0 0.0
    %2786 = vmatprep.subr.mxu0 0.0
    %2787 = vmatpush1.xpose.msra.mxu0 0.0
    %2788 = vmatprep.subr.mxu0 0.0
    %2789 = vmatpush1.xpose.msra.mxu0 0.0
    %2790 = vmatprep.subr.mxu0 0.0
    %2791 = vmatpush1.xpose.msra.mxu0 0.0
    %2792 = vmatprep.subr.mxu0 0.0
    %2793 = vmatpush1.xpose.msra.mxu0 0.0
    %2794 = vmatprep.subr.mxu0 0.0
    %2795 = vmatpush1.xpose.msra.mxu0 0.0
    %2796 = vmatprep.subr.mxu0 0.0
    %2797 = vmatpush1.xpose.msra.mxu0 0.0
    %2798 = vmatprep.subr.mxu0 0.0
    %2799 = vmatpush1.xpose.msra.mxu0 0.0
    %2800 = vmatprep.subr.mxu0 0.0
    %2801 = vmatpush1.xpose.msra.mxu0 0.0
    %2802 = vmatprep.mubr.f32.mxu0 0.0
    %2803 = vmatmul.mubr.f32.gmra.mrb[0].mxu0 %v2441
    %v2804 = vpop.f32.mrb[0].mxu0
    %v2805 = vadd.f32 0.0, %v2804
    %v2806 = vpop.f32.mrb[0].mxu0
    %2807 = vdwg.mxu0
    %2808 = vmatprep.subr.mxu0 0.0
    %2809 = vmatpush1.xpose.msra.mxu0 %v2444
    %2810 = vmatprep.subr.mxu0 0.0
    %2811 = vmatpush1.xpose.msra.mxu0 0.0
    %2812 = vmatprep.subr.mxu0 0.0
    %2813 = vmatpush1.xpose.msra.mxu0 0.0
    %2814 = vmatprep.subr.mxu0 0.0
    %2815 = vmatpush1.xpose.msra.mxu0 0.0
    %2816 = vmatprep.subr.mxu0 0.0
    %2817 = vmatpush1.xpose.msra.mxu0 0.0
    %2818 = vmatprep.subr.mxu0 0.0
    %2819 = vmatpush1.xpose.msra.mxu0 0.0
    %2820 = vmatprep.subr.mxu0 0.0
    %2821 = vmatpush1.xpose.msra.mxu0 0.0
    %2822 = vmatprep.subr.mxu0 0.0
    %2823 = vmatpush1.xpose.msra.mxu0 0.0
    %2824 = vmatprep.subr.mxu0 0.0
    %2825 = vmatpush1.xpose.msra.mxu0 0.0
    %2826 = vmatprep.subr.mxu0 0.0
    %2827 = vmatpush1.xpose.msra.mxu0 0.0
    %2828 = vmatprep.subr.mxu0 0.0
    %2829 = vmatpush1.xpose.msra.mxu0 0.0
    %2830 = vmatprep.subr.mxu0 0.0
    %2831 = vmatpush1.xpose.msra.mxu0 0.0
    %2832 = vmatprep.subr.mxu0 0.0
    %2833 = vmatpush1.xpose.msra.mxu0 0.0
    %2834 = vmatprep.subr.mxu0 0.0
    %2835 = vmatpush1.xpose.msra.mxu0 0.0
    %2836 = vmatprep.subr.mxu0 0.0
    %2837 = vmatpush1.xpose.msra.mxu0 0.0
    %2838 = vmatprep.subr.mxu0 0.0
    %2839 = vmatpush1.xpose.msra.mxu0 0.0
    %2840 = vmatprep.subr.mxu0 0.0
    %2841 = vmatpush1.xpose.msra.mxu0 0.0
    %2842 = vmatprep.subr.mxu0 0.0
    %2843 = vmatpush1.xpose.msra.mxu0 0.0
    %2844 = vmatprep.subr.mxu0 0.0
    %2845 = vmatpush1.xpose.msra.mxu0 0.0
    %2846 = vmatprep.subr.mxu0 0.0
    %2847 = vmatpush1.xpose.msra.mxu0 0.0
    %2848 = vmatprep.subr.mxu0 0.0
    %2849 = vmatpush1.xpose.msra.mxu0 0.0
    %2850 = vmatprep.subr.mxu0 0.0
    %2851 = vmatpush1.xpose.msra.mxu0 0.0
    %2852 = vmatprep.subr.mxu0 0.0
    %2853 = vmatpush1.xpose.msra.mxu0 0.0
    %2854 = vmatprep.subr.mxu0 0.0
    %2855 = vmatpush1.xpose.msra.mxu0 0.0
    %2856 = vmatprep.subr.mxu0 0.0
    %2857 = vmatpush1.xpose.msra.mxu0 0.0
    %2858 = vmatprep.subr.mxu0 0.0
    %2859 = vmatpush1.xpose.msra.mxu0 0.0
    %2860 = vmatprep.subr.mxu0 0.0
    %2861 = vmatpush1.xpose.msra.mxu0 0.0
    %2862 = vmatprep.subr.mxu0 0.0
    %2863 = vmatpush1.xpose.msra.mxu0 0.0
    %2864 = vmatprep.subr.mxu0 0.0
    %2865 = vmatpush1.xpose.msra.mxu0 0.0
    %2866 = vmatprep.subr.mxu0 0.0
    %2867 = vmatpush1.xpose.msra.mxu0 0.0
    %2868 = vmatprep.subr.mxu0 0.0
    %2869 = vmatpush1.xpose.msra.mxu0 0.0
    %2870 = vmatprep.subr.mxu0 0.0
    %2871 = vmatpush1.xpose.msra.mxu0 0.0
    %2872 = vmatprep.mubr.f32.mxu0 0.0
    %2873 = vmatmul.mubr.f32.gmra.mrb[0].mxu0 %v2517
    %v2874 = vpop.f32.mrb[0].mxu0
    %v2875 = vadd.f32 0.0, %v2874
    %v2876 = vpop.f32.mrb[0].mxu0
    %2877 = vdwg.mxu0
    %2878 = vmatprep.subr.mxu0 0.0
    %2879 = vmatpush1.xpose.msra.mxu0 %v2520
    %2880 = vmatprep.subr.mxu0 0.0
    %2881 = vmatpush1.xpose.msra.mxu0 0.0
    %2882 = vmatprep.subr.mxu0 0.0
    %2883 = vmatpush1.xpose.msra.mxu0 0.0
    %2884 = vmatprep.subr.mxu0 0.0
    %2885 = vmatpush1.xpose.msra.mxu0 0.0
    %2886 = vmatprep.subr.mxu0 0.0
    %2887 = vmatpush1.xpose.msra.mxu0 0.0
    %2888 = vmatprep.subr.mxu0 0.0
    %2889 = vmatpush1.xpose.msra.mxu0 0.0
    %2890 = vmatprep.subr.mxu0 0.0
    %2891 = vmatpush1.xpose.msra.mxu0 0.0
    %2892 = vmatprep.subr.mxu0 0.0
    %2893 = vmatpush1.xpose.msra.mxu0 0.0
    %2894 = vmatprep.subr.mxu0 0.0
    %2895 = vmatpush1.xpose.msra.mxu0 0.0
    %2896 = vmatprep.subr.mxu0 0.0
    %2897 = vmatpush1.xpose.msra.mxu0 0.0
    %2898 = vmatprep.subr.mxu0 0.0
    %2899 = vmatpush1.xpose.msra.mxu0 0.0
    %2900 = vmatprep.subr.mxu0 0.0
    %2901 = vmatpush1.xpose.msra.mxu0 0.0
    %2902 = vmatprep.subr.mxu0 0.0
    %2903 = vmatpush1.xpose.msra.mxu0 0.0
    %2904 = vmatprep.subr.mxu0 0.0
    %2905 = vmatpush1.xpose.msra.mxu0 0.0
    %2906 = vmatprep.subr.mxu0 0.0
    %2907 = vmatpush1.xpose.msra.mxu0 0.0
    %2908 = vmatprep.subr.mxu0 0.0
    %2909 = vmatpush1.xpose.msra.mxu0 0.0
    %2910 = vmatprep.subr.mxu0 0.0
    %2911 = vmatpush1.xpose.msra.mxu0 0.0
    %2912 = vmatprep.subr.mxu0 0.0
    %2913 = vmatpush1.xpose.msra.mxu0 0.0
    %2914 = vmatprep.subr.mxu0 0.0
    %2915 = vmatpush1.xpose.msra.mxu0 0.0
    %2916 = vmatprep.subr.mxu0 0.0
    %2917 = vmatpush1.xpose.msra.mxu0 0.0
    %2918 = vmatprep.subr.mxu0 0.0
    %2919 = vmatpush1.xpose.msra.mxu0 0.0
    %2920 = vmatprep.subr.mxu0 0.0
    %2921 = vmatpush1.xpose.msra.mxu0 0.0
    %2922 = vmatprep.subr.mxu0 0.0
    %2923 = vmatpush1.xpose.msra.mxu0 0.0
    %2924 = vmatprep.subr.mxu0 0.0
    %2925 = vmatpush1.xpose.msra.mxu0 0.0
    %2926 = vmatprep.subr.mxu0 0.0
    %2927 = vmatpush1.xpose.msra.mxu0 0.0
    %2928 = vmatprep.subr.mxu0 0.0
    %2929 = vmatpush1.xpose.msra.mxu0 0.0
    %2930 = vmatprep.subr.mxu0 0.0
    %2931 = vmatpush1.xpose.msra.mxu0 0.0
    %2932 = vmatprep.subr.mxu0 0.0
    %2933 = vmatpush1.xpose.msra.mxu0 0.0
    %2934 = vmatprep.subr.mxu0 0.0
    %2935 = vmatpush1.xpose.msra.mxu0 0.0
    %2936 = vmatprep.subr.mxu0 0.0
    %2937 = vmatpush1.xpose.msra.mxu0 0.0
    %2938 = vmatprep.subr.mxu0 0.0
    %2939 = vmatpush1.xpose.msra.mxu0 0.0
    %2940 = vmatprep.subr.mxu0 0.0
    %2941 = vmatpush1.xpose.msra.mxu0 0.0
    %2942 = vmatprep.mubr.f32.mxu0 0.0
    %2943 = vmatmul.mubr.f32.gmra.mrb[0].mxu0 %v2593
    %v2944 = vpop.f32.mrb[0].mxu0
    %v2945 = vadd.f32 0.0, %v2944
    %v2946 = vpop.f32.mrb[0].mxu0
    %2947 = vdwg.mxu0
    %2948 = vmatprep.subr.mxu0 0.0
    %2949 = vmatpush1.xpose.msra.mxu0 %v2596
    %2950 = vmatprep.subr.mxu0 0.0
    %2951 = vmatpush1.xpose.msra.mxu0 0.0
    %2952 = vmatprep.subr.mxu0 0.0
    %2953 = vmatpush1.xpose.msra.mxu0 0.0
    %2954 = vmatprep.subr.mxu0 0.0
    %2955 = vmatpush1.xpose.msra.mxu0 0.0
    %2956 = vmatprep.subr.mxu0 0.0
    %2957 = vmatpush1.xpose.msra.mxu0 0.0
    %2958 = vmatprep.subr.mxu0 0.0
    %2959 = vmatpush1.xpose.msra.mxu0 0.0
    %2960 = vmatprep.subr.mxu0 0.0
    %2961 = vmatpush1.xpose.msra.mxu0 0.0
    %2962 = vmatprep.subr.mxu0 0.0
    %2963 = vmatpush1.xpose.msra.mxu0 0.0
    %2964 = vmatprep.subr.mxu0 0.0
    %2965 = vmatpush1.xpose.msra.mxu0 0.0
    %2966 = vmatprep.subr.mxu0 0.0
    %2967 = vmatpush1.xpose.msra.mxu0 0.0
    %2968 = vmatprep.subr.mxu0 0.0
    %2969 = vmatpush1.xpose.msra.mxu0 0.0
    %2970 = vmatprep.subr.mxu0 0.0
    %2971 = vmatpush1.xpose.msra.mxu0 0.0
    %2972 = vmatprep.subr.mxu0 0.0
    %2973 = vmatpush1.xpose.msra.mxu0 0.0
    %2974 = vmatprep.subr.mxu0 0.0
    %2975 = vmatpush1.xpose.msra.mxu0 0.0
    %2976 = vmatprep.subr.mxu0 0.0
    %2977 = vmatpush1.xpose.msra.mxu0 0.0
    %2978 = vmatprep.subr.mxu0 0.0
    %2979 = vmatpush1.xpose.msra.mxu0 0.0
    %2980 = vmatprep.subr.mxu0 0.0
    %2981 = vmatpush1.xpose.msra.mxu0 0.0
    %2982 = vmatprep.subr.mxu0 0.0
    %2983 = vmatpush1.xpose.msra.mxu0 0.0
    %2984 = vmatprep.subr.mxu0 0.0
    %2985 = vmatpush1.xpose.msra.mxu0 0.0
    %2986 = vmatprep.subr.mxu0 0.0
    %2987 = vmatpush1.xpose.msra.mxu0 0.0
    %2988 = vmatprep.subr.mxu0 0.0
    %2989 = vmatpush1.xpose.msra.mxu0 0.0
    %2990 = vmatprep.subr.mxu0 0.0
    %2991 = vmatpush1.xpose.msra.mxu0 0.0
    %2992 = vmatprep.subr.mxu0 0.0
    %2993 = vmatpush1.xpose.msra.mxu0 0.0
    %2994 = vmatprep.subr.mxu0 0.0
    %2995 = vmatpush1.xpose.msra.mxu0 0.0
    %2996 = vmatprep.subr.mxu0 0.0
    %2997 = vmatpush1.xpose.msra.mxu0 0.0
    %2998 = vmatprep.subr.mxu0 0.0
    %2999 = vmatpush1.xpose.msra.mxu0 0.0
    %3000 = vmatprep.subr.mxu0 0.0
    %3001 = vmatpush1.xpose.msra.mxu0 0.0
    %3002 = vmatprep.subr.mxu0 0.0
    %3003 = vmatpush1.xpose.msra.mxu0 0.0
    %3004 = vmatprep.subr.mxu0 0.0
    %3005 = vmatpush1.xpose.msra.mxu0 0.0
    %3006 = vmatprep.subr.mxu0 0.0
    %3007 = vmatpush1.xpose.msra.mxu0 0.0
    %3008 = vmatprep.subr.mxu0 0.0
    %3009 = vmatpush1.xpose.msra.mxu0 0.0
    %3010 = vmatprep.subr.mxu0 0.0
    %3011 = vmatpush1.xpose.msra.mxu0 0.0
    %3012 = vmatprep.mubr.f32.mxu0 0.0
    %3013 = vmatmul.mubr.f32.gmra.mrb[0].mxu0 %v29
    %v3014 = vpop.f32.mrb[0].mxu0
    %v3015 = vadd.f32 0.0, %v3014
    %v3016 = vpop.f32.mrb[0].mxu0
    %3017 = vdwg.mxu0
    %vm3018 = vcmask 55296
    %v3019 = vsel %vm3018, %v2361, -inf
    %3020 = vmax.xlane.f32.xlu0 %v3019
    %v3021 = vpop.xlane.xlu0 %3020
    %v3022 = vsel %vm3018, %v2437, -inf
    %3023 = vmax.xlane.f32.xlu0 %v3022
    %v3024 = vpop.xlane.xlu0 %3023
    %v3025 = vsel %vm3018, %v2513, -inf
    %3026 = vmax.xlane.f32.xlu0 %v3025
    %v3027 = vpop.xlane.xlu0 %3026
    %v3028 = vsel %vm3018, %v2589, -inf
    %3029 = vmax.xlane.f32.xlu0 %v3028
    %v3030 = vpop.xlane.xlu0 %3029
    %v3031 = vsel %vm3018, %v2665, -inf
    %3032 = vmax.xlane.f32.xlu0 %v3031
    %v3033 = vpop.xlane.xlu0 %3032
    %v3034 = vsel %vm3018, %v2735, -inf
    %3035 = vmax.xlane.f32.xlu0 %v3034
    %v3036 = vpop.xlane.xlu0 %3035
    %v3037 = vsel %vm3018, %v2805, -inf
    %3038 = vmax.xlane.f32.xlu0 %v3037
    %v3039 = vpop.xlane.xlu0 %3038
    %v3040 = vsel %vm3018, %v2875, -inf
    %3041 = vmax.xlane.f32.xlu0 %v3040
    %v3042 = vpop.xlane.xlu0 %3041
    %v3043 = vsel %vm3018, %v2945, -inf
    %3044 = vmax.xlane.f32.xlu0 %v3043
    %v3045 = vpop.xlane.xlu0 %3044
    %v3046 = vsel %vm3018, %v3015, -inf
    %3047 = vmax.xlane.f32.xlu0 %v3046
    %v3048 = vpop.xlane.xlu0 %3047
    %v3049 = vsub.f32 %v2361, %v3021
    %v3050 = vsub.f32 %v2437, %v3024
    %v3051 = vsub.f32 %v2513, %v3027
    %v3052 = vsub.f32 %v2589, %v3030
    %v3053 = vsub.f32 %v2665, %v3033
    %v3054 = vsub.f32 %v2735, %v3036
    %v3055 = vsub.f32 %v2805, %v3039
    %v3056 = vsub.f32 %v2875, %v3042
    %v3057 = vsub.f32 %v2945, %v3045
    %v3058 = vsub.f32 %v3015, %v3048
    %v3059 = vmul.f32 %v3049, 1.442695
    %v3060 = vpow.pop %v3059
    %v3061 = vmul.f32 %v3050, 1.442695
    %v3062 = vpow.pop %v3061
    %v3063 = vmul.f32 %v3051, 1.442695
    %v3064 = vpow.pop %v3063
    %v3065 = vmul.f32 %v3052, 1.442695
    %v3066 = vpow.pop %v3065
    %v3067 = vmul.f32 %v3053, 1.442695
    %v3068 = vpow.pop %v3067
    %v3069 = vmul.f32 %v3054, 1.442695
    %v3070 = vpow.pop %v3069
    %v3071 = vmul.f32 %v3055, 1.442695
    %v3072 = vpow.pop %v3071
    %v3073 = vmul.f32 %v3056, 1.442695
    %v3074 = vpow.pop %v3073
    %v3075 = vmul.f32 %v3057, 1.442695
    %v3076 = vpow.pop %v3075
    %v3077 = vmul.f32 %v3058, 1.442695
    %v3078 = vpow.pop %v3077
    %v3079 = vsel %vm3018, %v3060, 0.0
    %3080 = vadd.xlane.f32.xlu0 %v3079
    %v3081 = vpop.xlane.xlu0 %3080
    %v3082 = vsel %vm3018, %v3062, 0.0
    %3083 = vadd.xlane.f32.xlu0 %v3082
    %v3084 = vpop.xlane.xlu0 %3083
    %v3085 = vsel %vm3018, %v3064, 0.0
    %3086 = vadd.xlane.f32.xlu0 %v3085
    %v3087 = vpop.xlane.xlu0 %3086
    %v3088 = vsel %vm3018, %v3066, 0.0
    %3089 = vadd.xlane.f32.xlu0 %v3088
    %v3090 = vpop.xlane.xlu0 %3089
    %v3091 = vsel %vm3018, %v3068, 0.0
    %3092 = vadd.xlane.f32.xlu0 %v3091
    %v3093 = vpop.xlane.xlu0 %3092
    %v3094 = vsel %vm3018, %v3070, 0.0
    %3095 = vadd.xlane.f32.xlu0 %v3094
    %v3096 = vpop.xlane.xlu0 %3095
    %v3097 = vsel %vm3018, %v3072, 0.0
    %3098 = vadd.xlane.f32.xlu0 %v3097
    %v3099 = vpop.xlane.xlu0 %3098
    %v3100 = vsel %vm3018, %v3074, 0.0
    %3101 = vadd.xlane.f32.xlu0 %v3100
    %v3102 = vpop.xlane.xlu0 %3101
    %v3103 = vsel %vm3018, %v3076, 0.0
    %3104 = vadd.xlane.f32.xlu0 %v3103
    %v3105 = vpop.xlane.xlu0 %3104
    %v3106 = vsel %vm3018, %v3078, 0.0
    %3107 = vadd.xlane.f32.xlu0 %v3106
    %v3108 = vpop.xlane.xlu0 %3107
    %v3109 = vrcp.pop %v3081
    %v3110 = vrcp.pop %v3084
    %v3111 = vrcp.pop %v3087
    %v3112 = vrcp.pop %v3090
    %v3113 = vrcp.pop %v3093
    %v3114 = vrcp.pop %v3096
    %v3115 = vrcp.pop %v3099
    %v3116 = vrcp.pop %v3102
    %v3117 = vrcp.pop %v3105
    %v3118 = vrcp.pop %v3108
    %v3119 = vmul.f32 %v3060, %v3109
    %v3120 = vmul.f32 %v3062, %v3110
    %v3121 = vmul.f32 %v3064, %v3111
    %v3122 = vmul.f32 %v3066, %v3112
    %v3123 = vmul.f32 %v3068, %v3113
    %v3124 = vmul.f32 %v3070, %v3114
    %v3125 = vmul.f32 %v3072, %v3115
    %v3126 = vmul.f32 %v3074, %v3116
    %v3127 = vmul.f32 %v3076, %v3117
    %v3128 = vmul.f32 %v3078, %v3118
    %vm3129 = vcmask 56320
    %v3131 = vsel %vm3129, %v3119, 0
    %vm3133 = vcmask 1046528
    %v3134 = vsel %vm3133, %v2278, 0
    %3136 = vmatprep.subr.mxu0 0.0
    %3137 = vmatpush1.msra.mxu0 %v3134
    %3138 = vmatprep.subr.mxu0 0.0
    %3139 = vmatpush1.msra.mxu0 0.0
    %3140 = vmatprep.subr.mxu0 0.0
    %3141 = vmatpush1.msra.mxu0 0.0
    %3142 = vmatprep.subr.mxu0 0.0
    %3143 = vmatpush1.msra.mxu0 0.0
    %3144 = vmatprep.subr.mxu0 0.0
    %3145 = vmatpush1.msra.mxu0 0.0
    %3146 = vmatprep.subr.mxu0 0.0
    %3147 = vmatpush1.msra.mxu0 0.0
    %3148 = vmatprep.subr.mxu0 0.0
    %3149 = vmatpush1.msra.mxu0 0.0
    %3150 = vmatprep.subr.mxu0 0.0
    %3151 = vmatpush1.msra.mxu0 0.0
    %3152 = vmatprep.subr.mxu0 0.0
    %3153 = vmatpush1.msra.mxu0 0.0
    %3154 = vmatprep.subr.mxu0 0.0
    %3155 = vmatpush1.msra.mxu0 0.0
    %3156 = vmatprep.subr.mxu0 0.0
    %3157 = vmatpush1.msra.mxu0 0.0
    %3158 = vmatprep.subr.mxu0 0.0
    %3159 = vmatpush1.msra.mxu0 0.0
    %3160 = vmatprep.subr.mxu0 0.0
    %3161 = vmatpush1.msra.mxu0 0.0
    %3162 = vmatprep.subr.mxu0 0.0
    %3163 = vmatpush1.msra.mxu0 0.0
    %3164 = vmatprep.subr.mxu0 0.0
    %3165 = vmatpush1.msra.mxu0 0.0
    %3166 = vmatprep.subr.mxu0 0.0
    %3167 = vmatpush1.msra.mxu0 0.0
    %3168 = vmatprep.subr.mxu0 0.0
    %3169 = vmatpush1.msra.mxu0 0.0
    %3170 = vmatprep.subr.mxu0 0.0
    %3171 = vmatpush1.msra.mxu0 0.0
    %3172 = vmatprep.subr.mxu0 0.0
    %3173 = vmatpush1.msra.mxu0 0.0
    %3174 = vmatprep.subr.mxu0 0.0
    %3175 = vmatpush1.msra.mxu0 0.0
    %3176 = vmatprep.subr.mxu0 0.0
    %3177 = vmatpush1.msra.mxu0 0.0
    %3178 = vmatprep.subr.mxu0 0.0
    %3179 = vmatpush1.msra.mxu0 0.0
    %3180 = vmatprep.subr.mxu0 0.0
    %3181 = vmatpush1.msra.mxu0 0.0
    %3182 = vmatprep.subr.mxu0 0.0
    %3183 = vmatpush1.msra.mxu0 0.0
    %3184 = vmatprep.subr.mxu0 0.0
    %3185 = vmatpush1.msra.mxu0 0.0
    %3186 = vmatprep.subr.mxu0 0.0
    %3187 = vmatpush1.msra.mxu0 0.0
    %3188 = vmatprep.subr.mxu0 0.0
    %3189 = vmatpush1.msra.mxu0 0.0
    %3190 = vmatprep.subr.mxu0 0.0
    %3191 = vmatpush1.msra.mxu0 0.0
    %3192 = vmatprep.subr.mxu0 0.0
    %3193 = vmatpush1.msra.mxu0 0.0
    %3194 = vmatprep.subr.mxu0 0.0
    %3195 = vmatpush1.msra.mxu0 0.0
    %3196 = vmatprep.subr.mxu0 0.0
    %3197 = vmatpush1.msra.mxu0 0.0
    %3198 = vmatprep.subr.mxu0 0.0
    %3199 = vmatpush1.msra.mxu0 0.0
    %3200 = vmatprep.mubr.f32.mxu0 0.0
    %3201 = vmatmul.mubr.f32.gmra.mrb[0].mxu0 %v3131
    %v3202 = vpop.f32.mrb[0].mxu0
    %v3203 = vadd.f32 0.0, %v3202
    %v3204 = vpop.f32.mrb[0].mxu0
    %3205 = vdwg.mxu0
    %v3207 = vsel %vm3129, %v3120, 0
    %v3209 = vsel %vm3133, %v2279, 0
    %3211 = vmatprep.subr.mxu0 0.0
    %3212 = vmatpush1.msra.mxu0 %v3209
    %3213 = vmatprep.subr.mxu0 0.0
    %3214 = vmatpush1.msra.mxu0 0.0
    %3215 = vmatprep.subr.mxu0 0.0
    %3216 = vmatpush1.msra.mxu0 0.0
    %3217 = vmatprep.subr.mxu0 0.0
    %3218 = vmatpush1.msra.mxu0 0.0
    %3219 = vmatprep.subr.mxu0 0.0
    %3220 = vmatpush1.msra.mxu0 0.0
    %3221 = vmatprep.subr.mxu0 0.0
    %3222 = vmatpush1.msra.mxu0 0.0
    %3223 = vmatprep.subr.mxu0 0.0
    %3224 = vmatpush1.msra.mxu0 0.0
    %3225 = vmatprep.subr.mxu0 0.0
    %3226 = vmatpush1.msra.mxu0 0.0
    %3227 = vmatprep.subr.mxu0 0.0
    %3228 = vmatpush1.msra.mxu0 0.0
    %3229 = vmatprep.subr.mxu0 0.0
    %3230 = vmatpush1.msra.mxu0 0.0
    %3231 = vmatprep.subr.mxu0 0.0
    %3232 = vmatpush1.msra.mxu0 0.0
    %3233 = vmatprep.subr.mxu0 0.0
    %3234 = vmatpush1.msra.mxu0 0.0
    %3235 = vmatprep.subr.mxu0 0.0
    %3236 = vmatpush1.msra.mxu0 0.0
    %3237 = vmatprep.subr.mxu0 0.0
    %3238 = vmatpush1.msra.mxu0 0.0
    %3239 = vmatprep.subr.mxu0 0.0
    %3240 = vmatpush1.msra.mxu0 0.0
    %3241 = vmatprep.subr.mxu0 0.0
    %3242 = vmatpush1.msra.mxu0 0.0
    %3243 = vmatprep.subr.mxu0 0.0
    %3244 = vmatpush1.msra.mxu0 0.0
    %3245 = vmatprep.subr.mxu0 0.0
    %3246 = vmatpush1.msra.mxu0 0.0
    %3247 = vmatprep.subr.mxu0 0.0
    %3248 = vmatpush1.msra.mxu0 0.0
    %3249 = vmatprep.subr.mxu0 0.0
    %3250 = vmatpush1.msra.mxu0 0.0
    %3251 = vmatprep.subr.mxu0 0.0
    %3252 = vmatpush1.msra.mxu0 0.0
    %3253 = vmatprep.subr.mxu0 0.0
    %3254 = vmatpush1.msra.mxu0 0.0
    %3255 = vmatprep.subr.mxu0 0.0
    %3256 = vmatpush1.msra.mxu0 0.0
    %3257 = vmatprep.subr.mxu0 0.0
    %3258 = vmatpush1.msra.mxu0 0.0
    %3259 = vmatprep.subr.mxu0 0.0
    %3260 = vmatpush1.msra.mxu0 0.0
    %3261 = vmatprep.subr.mxu0 0.0
    %3262 = vmatpush1.msra.mxu0 0.0
    %3263 = vmatprep.subr.mxu0 0.0
    %3264 = vmatpush1.msra.mxu0 0.0
    %3265 = vmatprep.subr.mxu0 0.0
    %3266 = vmatpush1.msra.mxu0 0.0
    %3267 = vmatprep.subr.mxu0 0.0
    %3268 = vmatpush1.msra.mxu0 0.0
    %3269 = vmatprep.subr.mxu0 0.0
    %3270 = vmatpush1.msra.mxu0 0.0
    %3271 = vmatprep.subr.mxu0 0.0
    %3272 = vmatpush1.msra.mxu0 0.0
    %3273 = vmatprep.subr.mxu0 0.0
    %3274 = vmatpush1.msra.mxu0 0.0
    %3275 = vmatprep.mubr.f32.mxu0 0.0
    %3276 = vmatmul.mubr.f32.gmra.mrb[0].mxu0 %v3207
    %v3277 = vpop.f32.mrb[0].mxu0
    %v3278 = vadd.f32 0.0, %v3277
    %v3279 = vpop.f32.mrb[0].mxu0
    %3280 = vdwg.mxu0
    %v3282 = vsel %vm3129, %v3121, 0
    %v3284 = vsel %vm3133, %v2280, 0
    %3286 = vmatprep.subr.mxu0 0.0
    %3287 = vmatpush1.msra.mxu0 %v3284
    %3288 = vmatprep.subr.mxu0 0.0
    %3289 = vmatpush1.msra.mxu0 0.0
    %3290 = vmatprep.subr.mxu0 0.0
    %3291 = vmatpush1.msra.mxu0 0.0
    %3292 = vmatprep.subr.mxu0 0.0
    %3293 = vmatpush1.msra.mxu0 0.0
    %3294 = vmatprep.subr.mxu0 0.0
    %3295 = vmatpush1.msra.mxu0 0.0
    %3296 = vmatprep.subr.mxu0 0.0
    %3297 = vmatpush1.msra.mxu0 0.0
    %3298 = vmatprep.subr.mxu0 0.0
    %3299 = vmatpush1.msra.mxu0 0.0
    %3300 = vmatprep.subr.mxu0 0.0
    %3301 = vmatpush1.msra.mxu0 0.0
    %3302 = vmatprep.subr.mxu0 0.0
    %3303 = vmatpush1.msra.mxu0 0.0
    %3304 = vmatprep.subr.mxu0 0.0
    %3305 = vmatpush1.msra.mxu0 0.0
    %3306 = vmatprep.subr.mxu0 0.0
    %3307 = vmatpush1.msra.mxu0 0.0
    %3308 = vmatprep.subr.mxu0 0.0
    %3309 = vmatpush1.msra.mxu0 0.0
    %3310 = vmatprep.subr.mxu0 0.0
    %3311 = vmatpush1.msra.mxu0 0.0
    %3312 = vmatprep.subr.mxu0 0.0
    %3313 = vmatpush1.msra.mxu0 0.0
    %3314 = vmatprep.subr.mxu0 0.0
    %3315 = vmatpush1.msra.mxu0 0.0
    %3316 = vmatprep.subr.mxu0 0.0
    %3317 = vmatpush1.msra.mxu0 0.0
    %3318 = vmatprep.subr.mxu0 0.0
    %3319 = vmatpush1.msra.mxu0 0.0
    %3320 = vmatprep.subr.mxu0 0.0
    %3321 = vmatpush1.msra.mxu0 0.0
    %3322 = vmatprep.subr.mxu0 0.0
    %3323 = vmatpush1.msra.mxu0 0.0
    %3324 = vmatprep.subr.mxu0 0.0
    %3325 = vmatpush1.msra.mxu0 0.0
    %3326 = vmatprep.subr.mxu0 0.0
    %3327 = vmatpush1.msra.mxu0 0.0
    %3328 = vmatprep.subr.mxu0 0.0
    %3329 = vmatpush1.msra.mxu0 0.0
    %3330 = vmatprep.subr.mxu0 0.0
    %3331 = vmatpush1.msra.mxu0 0.0
    %3332 = vmatprep.subr.mxu0 0.0
    %3333 = vmatpush1.msra.mxu0 0.0
    %3334 = vmatprep.subr.mxu0 0.0
    %3335 = vmatpush1.msra.mxu0 0.0
    %3336 = vmatprep.subr.mxu0 0.0
    %3337 = vmatpush1.msra.mxu0 0.0
    %3338 = vmatprep.subr.mxu0 0.0
    %3339 = vmatpush1.msra.mxu0 0.0
    %3340 = vmatprep.subr.mxu0 0.0
    %3341 = vmatpush1.msra.mxu0 0.0
    %3342 = vmatprep.subr.mxu0 0.0
    %3343 = vmatpush1.msra.mxu0 0.0
    %3344 = vmatprep.subr.mxu0 0.0
    %3345 = vmatpush1.msra.mxu0 0.0
    %3346 = vmatprep.subr.mxu0 0.0
    %3347 = vmatpush1.msra.mxu0 0.0
    %3348 = vmatprep.subr.mxu0 0.0
    %3349 = vmatpush1.msra.mxu0 0.0
    %3350 = vmatprep.mubr.f32.mxu0 0.0
    %3351 = vmatmul.mubr.f32.gmra.mrb[0].mxu0 %v3282
    %v3352 = vpop.f32.mrb[0].mxu0
    %v3353 = vadd.f32 0.0, %v3352
    %v3354 = vpop.f32.mrb[0].mxu0
    %3355 = vdwg.mxu0
    %v3357 = vsel %vm3129, %v3122, 0
    %v3359 = vsel %vm3133, %v2281, 0
    %3361 = vmatprep.subr.mxu0 0.0
    %3362 = vmatpush1.msra.mxu0 %v3359
    %3363 = vmatprep.subr.mxu0 0.0
    %3364 = vmatpush1.msra.mxu0 0.0
    %3365 = vmatprep.subr.mxu0 0.0
    %3366 = vmatpush1.msra.mxu0 0.0
    %3367 = vmatprep.subr.mxu0 0.0
    %3368 = vmatpush1.msra.mxu0 0.0
    %3369 = vmatprep.subr.mxu0 0.0
    %3370 = vmatpush1.msra.mxu0 0.0
    %3371 = vmatprep.subr.mxu0 0.0
    %3372 = vmatpush1.msra.mxu0 0.0
    %3373 = vmatprep.subr.mxu0 0.0
    %3374 = vmatpush1.msra.mxu0 0.0
    %3375 = vmatprep.subr.mxu0 0.0
    %3376 = vmatpush1.msra.mxu0 0.0
    %3377 = vmatprep.subr.mxu0 0.0
    %3378 = vmatpush1.msra.mxu0 0.0
    %3379 = vmatprep.subr.mxu0 0.0
    %3380 = vmatpush1.msra.mxu0 0.0
    %3381 = vmatprep.subr.mxu0 0.0
    %3382 = vmatpush1.msra.mxu0 0.0
    %3383 = vmatprep.subr.mxu0 0.0
    %3384 = vmatpush1.msra.mxu0 0.0
    %3385 = vmatprep.subr.mxu0 0.0
    %3386 = vmatpush1.msra.mxu0 0.0
    %3387 = vmatprep.subr.mxu0 0.0
    %3388 = vmatpush1.msra.mxu0 0.0
    %3389 = vmatprep.subr.mxu0 0.0
    %3390 = vmatpush1.msra.mxu0 0.0
    %3391 = vmatprep.subr.mxu0 0.0
    %3392 = vmatpush1.msra.mxu0 0.0
    %3393 = vmatprep.subr.mxu0 0.0
    %3394 = vmatpush1.msra.mxu0 0.0
    %3395 = vmatprep.subr.mxu0 0.0
    %3396 = vmatpush1.msra.mxu0 0.0
    %3397 = vmatprep.subr.mxu0 0.0
    %3398 = vmatpush1.msra.mxu0 0.0
    %3399 = vmatprep.subr.mxu0 0.0
    %3400 = vmatpush1.msra.mxu0 0.0
    %3401 = vmatprep.subr.mxu0 0.0
    %3402 = vmatpush1.msra.mxu0 0.0
    %3403 = vmatprep.subr.mxu0 0.0
    %3404 = vmatpush1.msra.mxu0 0.0
    %3405 = vmatprep.subr.mxu0 0.0
    %3406 = vmatpush1.msra.mxu0 0.0
    %3407 = vmatprep.subr.mxu0 0.0
    %3408 = vmatpush1.msra.mxu0 0.0
    %3409 = vmatprep.subr.mxu0 0.0
    %3410 = vmatpush1.msra.mxu0 0.0
    %3411 = vmatprep.subr.mxu0 0.0
    %3412 = vmatpush1.msra.mxu0 0.0
    %3413 = vmatprep.subr.mxu0 0.0
    %3414 = vmatpush1.msra.mxu0 0.0
    %3415 = vmatprep.subr.mxu0 0.0
    %3416 = vmatpush1.msra.mxu0 0.0
    %3417 = vmatprep.subr.mxu0 0.0
    %3418 = vmatpush1.msra.mxu0 0.0
    %3419 = vmatprep.subr.mxu0 0.0
    %3420 = vmatpush1.msra.mxu0 0.0
    %3421 = vmatprep.subr.mxu0 0.0
    %3422 = vmatpush1.msra.mxu0 0.0
    %3423 = vmatprep.subr.mxu0 0.0
    %3424 = vmatpush1.msra.mxu0 0.0
    %3425 = vmatprep.mubr.f32.mxu0 0.0
    %3426 = vmatmul.mubr.f32.gmra.mrb[0].mxu0 %v3357
    %v3427 = vpop.f32.mrb[0].mxu0
    %v3428 = vadd.f32 0.0, %v3427
    %v3429 = vpop.f32.mrb[0].mxu0
    %3430 = vdwg.mxu0
    %v3432 = vsel %vm3129, %v3123, 0
    %v3434 = vsel %vm3133, %v2282, 0
    %3436 = vmatprep.subr.mxu0 0.0
    %3437 = vmatpush1.msra.mxu0 %v3434
    %3438 = vmatprep.subr.mxu0 0.0
    %3439 = vmatpush1.msra.mxu0 0.0
    %3440 = vmatprep.subr.mxu0 0.0
    %3441 = vmatpush1.msra.mxu0 0.0
    %3442 = vmatprep.subr.mxu0 0.0
    %3443 = vmatpush1.msra.mxu0 0.0
    %3444 = vmatprep.subr.mxu0 0.0
    %3445 = vmatpush1.msra.mxu0 0.0
    %3446 = vmatprep.subr.mxu0 0.0
    %3447 = vmatpush1.msra.mxu0 0.0
    %3448 = vmatprep.subr.mxu0 0.0
    %3449 = vmatpush1.msra.mxu0 0.0
    %3450 = vmatprep.subr.mxu0 0.0
    %3451 = vmatpush1.msra.mxu0 0.0
    %3452 = vmatprep.subr.mxu0 0.0
    %3453 = vmatpush1.msra.mxu0 0.0
    %3454 = vmatprep.subr.mxu0 0.0
    %3455 = vmatpush1.msra.mxu0 0.0
    %3456 = vmatprep.subr.mxu0 0.0
    %3457 = vmatpush1.msra.mxu0 0.0
    %3458 = vmatprep.subr.mxu0 0.0
    %3459 = vmatpush1.msra.mxu0 0.0
    %3460 = vmatprep.subr.mxu0 0.0
    %3461 = vmatpush1.msra.mxu0 0.0
    %3462 = vmatprep.subr.mxu0 0.0
    %3463 = vmatpush1.msra.mxu0 0.0
    %3464 = vmatprep.subr.mxu0 0.0
    %3465 = vmatpush1.msra.mxu0 0.0
    %3466 = vmatprep.subr.mxu0 0.0
    %3467 = vmatpush1.msra.mxu0 0.0
    %3468 = vmatprep.subr.mxu0 0.0
    %3469 = vmatpush1.msra.mxu0 0.0
    %3470 = vmatprep.subr.mxu0 0.0
    %3471 = vmatpush1.msra.mxu0 0.0
    %3472 = vmatprep.subr.mxu0 0.0
    %3473 = vmatpush1.msra.mxu0 0.0
    %3474 = vmatprep.subr.mxu0 0.0
    %3475 = vmatpush1.msra.mxu0 0.0
    %3476 = vmatprep.subr.mxu0 0.0
    %3477 = vmatpush1.msra.mxu0 0.0
    %3478 = vmatprep.subr.mxu0 0.0
    %3479 = vmatpush1.msra.mxu0 0.0
    %3480 = vmatprep.subr.mxu0 0.0
    %3481 = vmatpush1.msra.mxu0 0.0
    %3482 = vmatprep.subr.mxu0 0.0
    %3483 = vmatpush1.msra.mxu0 0.0
    %3484 = vmatprep.subr.mxu0 0.0
    %3485 = vmatpush1.msra.mxu0 0.0
    %3486 = vmatprep.subr.mxu0 0.0
    %3487 = vmatpush1.msra.mxu0 0.0
    %3488 = vmatprep.subr.mxu0 0.0
    %3489 = vmatpush1.msra.mxu0 0.0
    %3490 = vmatprep.subr.mxu0 0.0
    %3491 = vmatpush1.msra.mxu0 0.0
    %3492 = vmatprep.subr.mxu0 0.0
    %3493 = vmatpush1.msra.mxu0 0.0
    %3494 = vmatprep.subr.mxu0 0.0
    %3495 = vmatpush1.msra.mxu0 0.0
    %3496 = vmatprep.subr.mxu0 0.0
    %3497 = vmatpush1.msra.mxu0 0.0
    %3498 = vmatprep.subr.mxu0 0.0
    %3499 = vmatpush1.msra.mxu0 0.0
    %3500 = vmatprep.mubr.f32.mxu0 0.0
    %3501 = vmatmul.mubr.f32.gmra.mrb[0].mxu0 %v3432
    %v3502 = vpop.f32.mrb[0].mxu0
    %v3503 = vadd.f32 0.0, %v3502
    %v3504 = vpop.f32.mrb[0].mxu0
    %3505 = vdwg.mxu0
    %v3507 = vsel %vm3129, %v3124, 0
    %3509 = vmatprep.subr.mxu0 0.0
    %3510 = vmatpush1.msra.mxu0 %v3134
    %3511 = vmatprep.subr.mxu0 0.0
    %3512 = vmatpush1.msra.mxu0 0.0
    %3513 = vmatprep.subr.mxu0 0.0
    %3514 = vmatpush1.msra.mxu0 0.0
    %3515 = vmatprep.subr.mxu0 0.0
    %3516 = vmatpush1.msra.mxu0 0.0
    %3517 = vmatprep.subr.mxu0 0.0
    %3518 = vmatpush1.msra.mxu0 0.0
    %3519 = vmatprep.subr.mxu0 0.0
    %3520 = vmatpush1.msra.mxu0 0.0
    %3521 = vmatprep.subr.mxu0 0.0
    %3522 = vmatpush1.msra.mxu0 0.0
    %3523 = vmatprep.subr.mxu0 0.0
    %3524 = vmatpush1.msra.mxu0 0.0
    %3525 = vmatprep.subr.mxu0 0.0
    %3526 = vmatpush1.msra.mxu0 0.0
    %3527 = vmatprep.subr.mxu0 0.0
    %3528 = vmatpush1.msra.mxu0 0.0
    %3529 = vmatprep.subr.mxu0 0.0
    %3530 = vmatpush1.msra.mxu0 0.0
    %3531 = vmatprep.subr.mxu0 0.0
    %3532 = vmatpush1.msra.mxu0 0.0
    %3533 = vmatprep.subr.mxu0 0.0
    %3534 = vmatpush1.msra.mxu0 0.0
    %3535 = vmatprep.subr.mxu0 0.0
    %3536 = vmatpush1.msra.mxu0 0.0
    %3537 = vmatprep.subr.mxu0 0.0
    %3538 = vmatpush1.msra.mxu0 0.0
    %3539 = vmatprep.subr.mxu0 0.0
    %3540 = vmatpush1.msra.mxu0 0.0
    %3541 = vmatprep.subr.mxu0 0.0
    %3542 = vmatpush1.msra.mxu0 0.0
    %3543 = vmatprep.subr.mxu0 0.0
    %3544 = vmatpush1.msra.mxu0 0.0
    %3545 = vmatprep.subr.mxu0 0.0
    %3546 = vmatpush1.msra.mxu0 0.0
    %3547 = vmatprep.subr.mxu0 0.0
    %3548 = vmatpush1.msra.mxu0 0.0
    %3549 = vmatprep.subr.mxu0 0.0
    %3550 = vmatpush1.msra.mxu0 0.0
    %3551 = vmatprep.subr.mxu0 0.0
    %3552 = vmatpush1.msra.mxu0 0.0
    %3553 = vmatprep.subr.mxu0 0.0
    %3554 = vmatpush1.msra.mxu0 0.0
    %3555 = vmatprep.subr.mxu0 0.0
    %3556 = vmatpush1.msra.mxu0 0.0
    %3557 = vmatprep.subr.mxu0 0.0
    %3558 = vmatpush1.msra.mxu0 0.0
    %3559 = vmatprep.subr.mxu0 0.0
    %3560 = vmatpush1.msra.mxu0 0.0
    %3561 = vmatprep.subr.mxu0 0.0
    %3562 = vmatpush1.msra.mxu0 0.0
    %3563 = vmatprep.subr.mxu0 0.0
    %3564 = vmatpush1.msra.mxu0 0.0
    %3565 = vmatprep.subr.mxu0 0.0
    %3566 = vmatpush1.msra.mxu0 0.0
    %3567 = vmatprep.subr.mxu0 0.0
    %3568 = vmatpush1.msra.mxu0 0.0
    %3569 = vmatprep.subr.mxu0 0.0
    %3570 = vmatpush1.msra.mxu0 0.0
    %3571 = vmatprep.subr.mxu0 0.0
    %3572 = vmatpush1.msra.mxu0 0.0
    %3573 = vmatprep.mubr.f32.mxu0 0.0
    %3574 = vmatmul.mubr.f32.gmra.mrb[0].mxu0 %v3507
    %v3575 = vpop.f32.mrb[0].mxu0
    %v3576 = vadd.f32 0.0, %v3575
    %v3577 = vpop.f32.mrb[0].mxu0
    %3578 = vdwg.mxu0
    %v3580 = vsel %vm3129, %v3125, 0
    %3582 = vmatprep.subr.mxu0 0.0
    %3583 = vmatpush1.msra.mxu0 %v3209
    %3584 = vmatprep.subr.mxu0 0.0
    %3585 = vmatpush1.msra.mxu0 0.0
    %3586 = vmatprep.subr.mxu0 0.0
    %3587 = vmatpush1.msra.mxu0 0.0
    %3588 = vmatprep.subr.mxu0 0.0
    %3589 = vmatpush1.msra.mxu0 0.0
    %3590 = vmatprep.subr.mxu0 0.0
    %3591 = vmatpush1.msra.mxu0 0.0
    %3592 = vmatprep.subr.mxu0 0.0
    %3593 = vmatpush1.msra.mxu0 0.0
    %3594 = vmatprep.subr.mxu0 0.0
    %3595 = vmatpush1.msra.mxu0 0.0
    %3596 = vmatprep.subr.mxu0 0.0
    %3597 = vmatpush1.msra.mxu0 0.0
    %3598 = vmatprep.subr.mxu0 0.0
    %3599 = vmatpush1.msra.mxu0 0.0
    %3600 = vmatprep.subr.mxu0 0.0
    %3601 = vmatpush1.msra.mxu0 0.0
    %3602 = vmatprep.subr.mxu0 0.0
    %3603 = vmatpush1.msra.mxu0 0.0
    %3604 = vmatprep.subr.mxu0 0.0
    %3605 = vmatpush1.msra.mxu0 0.0
    %3606 = vmatprep.subr.mxu0 0.0
    %3607 = vmatpush1.msra.mxu0 0.0
    %3608 = vmatprep.subr.mxu0 0.0
    %3609 = vmatpush1.msra.mxu0 0.0
    %3610 = vmatprep.subr.mxu0 0.0
    %3611 = vmatpush1.msra.mxu0 0.0
    %3612 = vmatprep.subr.mxu0 0.0
    %3613 = vmatpush1.msra.mxu0 0.0
    %3614 = vmatprep.subr.mxu0 0.0
    %3615 = vmatpush1.msra.mxu0 0.0
    %3616 = vmatprep.subr.mxu0 0.0
    %3617 = vmatpush1.msra.mxu0 0.0
    %3618 = vmatprep.subr.mxu0 0.0
    %3619 = vmatpush1.msra.mxu0 0.0
    %3620 = vmatprep.subr.mxu0 0.0
    %3621 = vmatpush1.msra.mxu0 0.0
    %3622 = vmatprep.subr.mxu0 0.0
    %3623 = vmatpush1.msra.mxu0 0.0
    %3624 = vmatprep.subr.mxu0 0.0
    %3625 = vmatpush1.msra.mxu0 0.0
    %3626 = vmatprep.subr.mxu0 0.0
    %3627 = vmatpush1.msra.mxu0 0.0
    %3628 = vmatprep.subr.mxu0 0.0
    %3629 = vmatpush1.msra.mxu0 0.0
    %3630 = vmatprep.subr.mxu0 0.0
    %3631 = vmatpush1.msra.mxu0 0.0
    %3632 = vmatprep.subr.mxu0 0.0
    %3633 = vmatpush1.msra.mxu0 0.0
    %3634 = vmatprep.subr.mxu0 0.0
    %3635 = vmatpush1.msra.mxu0 0.0
    %3636 = vmatprep.subr.mxu0 0.0
    %3637 = vmatpush1.msra.mxu0 0.0
    %3638 = vmatprep.subr.mxu0 0.0
    %3639 = vmatpush1.msra.mxu0 0.0
    %3640 = vmatprep.subr.mxu0 0.0
    %3641 = vmatpush1.msra.mxu0 0.0
    %3642 = vmatprep.subr.mxu0 0.0
    %3643 = vmatpush1.msra.mxu0 0.0
    %3644 = vmatprep.subr.mxu0 0.0
    %3645 = vmatpush1.msra.mxu0 0.0
    %3646 = vmatprep.mubr.f32.mxu0 0.0
    %3647 = vmatmul.mubr.f32.gmra.mrb[0].mxu0 %v3580
    %v3648 = vpop.f32.mrb[0].mxu0
    %v3649 = vadd.f32 0.0, %v3648
    %v3650 = vpop.f32.mrb[0].mxu0
    %3651 = vdwg.mxu0
    %v3653 = vsel %vm3129, %v3126, 0
    %3655 = vmatprep.subr.mxu0 0.0
    %3656 = vmatpush1.msra.mxu0 %v3284
    %3657 = vmatprep.subr.mxu0 0.0
    %3658 = vmatpush1.msra.mxu0 0.0
    %3659 = vmatprep.subr.mxu0 0.0
    %3660 = vmatpush1.msra.mxu0 0.0
    %3661 = vmatprep.subr.mxu0 0.0
    %3662 = vmatpush1.msra.mxu0 0.0
    %3663 = vmatprep.subr.mxu0 0.0
    %3664 = vmatpush1.msra.mxu0 0.0
    %3665 = vmatprep.subr.mxu0 0.0
    %3666 = vmatpush1.msra.mxu0 0.0
    %3667 = vmatprep.subr.mxu0 0.0
    %3668 = vmatpush1.msra.mxu0 0.0
    %3669 = vmatprep.subr.mxu0 0.0
    %3670 = vmatpush1.msra.mxu0 0.0
    %3671 = vmatprep.subr.mxu0 0.0
    %3672 = vmatpush1.msra.mxu0 0.0
    %3673 = vmatprep.subr.mxu0 0.0
    %3674 = vmatpush1.msra.mxu0 0.0
    %3675 = vmatprep.subr.mxu0 0.0
    %3676 = vmatpush1.msra.mxu0 0.0
    %3677 = vmatprep.subr.mxu0 0.0
    %3678 = vmatpush1.msra.mxu0 0.0
    %3679 = vmatprep.subr.mxu0 0.0
    %3680 = vmatpush1.msra.mxu0 0.0
    %3681 = vmatprep.subr.mxu0 0.0
    %3682 = vmatpush1.msra.mxu0 0.0
    %3683 = vmatprep.subr.mxu0 0.0
    %3684 = vmatpush1.msra.mxu0 0.0
    %3685 = vmatprep.subr.mxu0 0.0
    %3686 = vmatpush1.msra.mxu0 0.0
    %3687 = vmatprep.subr.mxu0 0.0
    %3688 = vmatpush1.msra.mxu0 0.0
    %3689 = vmatprep.subr.mxu0 0.0
    %3690 = vmatpush1.msra.mxu0 0.0
    %3691 = vmatprep.subr.mxu0 0.0
    %3692 = vmatpush1.msra.mxu0 0.0
    %3693 = vmatprep.subr.mxu0 0.0
    %3694 = vmatpush1.msra.mxu0 0.0
    %3695 = vmatprep.subr.mxu0 0.0
    %3696 = vmatpush1.msra.mxu0 0.0
    %3697 = vmatprep.subr.mxu0 0.0
    %3698 = vmatpush1.msra.mxu0 0.0
    %3699 = vmatprep.subr.mxu0 0.0
    %3700 = vmatpush1.msra.mxu0 0.0
    %3701 = vmatprep.subr.mxu0 0.0
    %3702 = vmatpush1.msra.mxu0 0.0
    %3703 = vmatprep.subr.mxu0 0.0
    %3704 = vmatpush1.msra.mxu0 0.0
    %3705 = vmatprep.subr.mxu0 0.0
    %3706 = vmatpush1.msra.mxu0 0.0
    %3707 = vmatprep.subr.mxu0 0.0
    %3708 = vmatpush1.msra.mxu0 0.0
    %3709 = vmatprep.subr.mxu0 0.0
    %3710 = vmatpush1.msra.mxu0 0.0
    %3711 = vmatprep.subr.mxu0 0.0
    %3712 = vmatpush1.msra.mxu0 0.0
    %3713 = vmatprep.subr.mxu0 0.0
    %3714 = vmatpush1.msra.mxu0 0.0
    %3715 = vmatprep.subr.mxu0 0.0
    %3716 = vmatpush1.msra.mxu0 0.0
    %3717 = vmatprep.subr.mxu0 0.0
    %3718 = vmatpush1.msra.mxu0 0.0
    %3719 = vmatprep.mubr.f32.mxu0 0.0
    %3720 = vmatmul.mubr.f32.gmra.mrb[0].mxu0 %v3653
    %v3721 = vpop.f32.mrb[0].mxu0
    %v3722 = vadd.f32 0.0, %v3721
    %v3723 = vpop.f32.mrb[0].mxu0
    %3724 = vdwg.mxu0
    %v3726 = vsel %vm3129, %v3127, 0
    %3728 = vmatprep.subr.mxu0 0.0
    %3729 = vmatpush1.msra.mxu0 %v3359
    %3730 = vmatprep.subr.mxu0 0.0
    %3731 = vmatpush1.msra.mxu0 0.0
    %3732 = vmatprep.subr.mxu0 0.0
    %3733 = vmatpush1.msra.mxu0 0.0
    %3734 = vmatprep.subr.mxu0 0.0
    %3735 = vmatpush1.msra.mxu0 0.0
    %3736 = vmatprep.subr.mxu0 0.0
    %3737 = vmatpush1.msra.mxu0 0.0
    %3738 = vmatprep.subr.mxu0 0.0
    %3739 = vmatpush1.msra.mxu0 0.0
    %3740 = vmatprep.subr.mxu0 0.0
    %3741 = vmatpush1.msra.mxu0 0.0
    %3742 = vmatprep.subr.mxu0 0.0
    %3743 = vmatpush1.msra.mxu0 0.0
    %3744 = vmatprep.subr.mxu0 0.0
    %3745 = vmatpush1.msra.mxu0 0.0
    %3746 = vmatprep.subr.mxu0 0.0
    %3747 = vmatpush1.msra.mxu0 0.0
    %3748 = vmatprep.subr.mxu0 0.0
    %3749 = vmatpush1.msra.mxu0 0.0
    %3750 = vmatprep.subr.mxu0 0.0
    %3751 = vmatpush1.msra.mxu0 0.0
    %3752 = vmatprep.subr.mxu0 0.0
    %3753 = vmatpush1.msra.mxu0 0.0
    %3754 = vmatprep.subr.mxu0 0.0
    %3755 = vmatpush1.msra.mxu0 0.0
    %3756 = vmatprep.subr.mxu0 0.0
    %3757 = vmatpush1.msra.mxu0 0.0
    %3758 = vmatprep.subr.mxu0 0.0
    %3759 = vmatpush1.msra.mxu0 0.0
    %3760 = vmatprep.subr.mxu0 0.0
    %3761 = vmatpush1.msra.mxu0 0.0
    %3762 = vmatprep.subr.mxu0 0.0
    %3763 = vmatpush1.msra.mxu0 0.0
    %3764 = vmatprep.subr.mxu0 0.0
    %3765 = vmatpush1.msra.mxu0 0.0
    %3766 = vmatprep.subr.mxu0 0.0
    %3767 = vmatpush1.msra.mxu0 0.0
    %3768 = vmatprep.subr.mxu0 0.0
    %3769 = vmatpush1.msra.mxu0 0.0
    %3770 = vmatprep.subr.mxu0 0.0
    %3771 = vmatpush1.msra.mxu0 0.0
    %3772 = vmatprep.subr.mxu0 0.0
    %3773 = vmatpush1.msra.mxu0 0.0
    %3774 = vmatprep.subr.mxu0 0.0
    %3775 = vmatpush1.msra.mxu0 0.0
    %3776 = vmatprep.subr.mxu0 0.0
    %3777 = vmatpush1.msra.mxu0 0.0
    %3778 = vmatprep.subr.mxu0 0.0
    %3779 = vmatpush1.msra.mxu0 0.0
    %3780 = vmatprep.subr.mxu0 0.0
    %3781 = vmatpush1.msra.mxu0 0.0
    %3782 = vmatprep.subr.mxu0 0.0
    %3783 = vmatpush1.msra.mxu0 0.0
    %3784 = vmatprep.subr.mxu0 0.0
    %3785 = vmatpush1.msra.mxu0 0.0
    %3786 = vmatprep.subr.mxu0 0.0
    %3787 = vmatpush1.msra.mxu0 0.0
    %3788 = vmatprep.subr.mxu0 0.0
    %3789 = vmatpush1.msra.mxu0 0.0
    %3790 = vmatprep.subr.mxu0 0.0
    %3791 = vmatpush1.msra.mxu0 0.0
    %3792 = vmatprep.mubr.f32.mxu0 0.0
    %3793 = vmatmul.mubr.f32.gmra.mrb[0].mxu0 %v3726
    %v3794 = vpop.f32.mrb[0].mxu0
    %v3795 = vadd.f32 0.0, %v3794
    %v3796 = vpop.f32.mrb[0].mxu0
    %3797 = vdwg.mxu0
    %v3799 = vsel %vm3129, %v3128, 0
    %3801 = vmatprep.subr.mxu0 0.0
    %3802 = vmatpush1.msra.mxu0 %v3434
    %3803 = vmatprep.subr.mxu0 0.0
    %3804 = vmatpush1.msra.mxu0 0.0
    %3805 = vmatprep.subr.mxu0 0.0
    %3806 = vmatpush1.msra.mxu0 0.0
    %3807 = vmatprep.subr.mxu0 0.0
    %3808 = vmatpush1.msra.mxu0 0.0
    %3809 = vmatprep.subr.mxu0 0.0
    %3810 = vmatpush1.msra.mxu0 0.0
    %3811 = vmatprep.subr.mxu0 0.0
    %3812 = vmatpush1.msra.mxu0 0.0
    %3813 = vmatprep.subr.mxu0 0.0
    %3814 = vmatpush1.msra.mxu0 0.0
    %3815 = vmatprep.subr.mxu0 0.0
    %3816 = vmatpush1.msra.mxu0 0.0
    %3817 = vmatprep.subr.mxu0 0.0
    %3818 = vmatpush1.msra.mxu0 0.0
    %3819 = vmatprep.subr.mxu0 0.0
    %3820 = vmatpush1.msra.mxu0 0.0
    %3821 = vmatprep.subr.mxu0 0.0
    %3822 = vmatpush1.msra.mxu0 0.0
    %3823 = vmatprep.subr.mxu0 0.0
    %3824 = vmatpush1.msra.mxu0 0.0
    %3825 = vmatprep.subr.mxu0 0.0
    %3826 = vmatpush1.msra.mxu0 0.0
    %3827 = vmatprep.subr.mxu0 0.0
    %3828 = vmatpush1.msra.mxu0 0.0
    %3829 = vmatprep.subr.mxu0 0.0
    %3830 = vmatpush1.msra.mxu0 0.0
    %3831 = vmatprep.subr.mxu0 0.0
    %3832 = vmatpush1.msra.mxu0 0.0
    %3833 = vmatprep.subr.mxu0 0.0
    %3834 = vmatpush1.msra.mxu0 0.0
    %3835 = vmatprep.subr.mxu0 0.0
    %3836 = vmatpush1.msra.mxu0 0.0
    %3837 = vmatprep.subr.mxu0 0.0
    %3838 = vmatpush1.msra.mxu0 0.0
    %3839 = vmatprep.subr.mxu0 0.0
    %3840 = vmatpush1.msra.mxu0 0.0
    %3841 = vmatprep.subr.mxu0 0.0
    %3842 = vmatpush1.msra.mxu0 0.0
    %3843 = vmatprep.subr.mxu0 0.0
    %3844 = vmatpush1.msra.mxu0 0.0
    %3845 = vmatprep.subr.mxu0 0.0
    %3846 = vmatpush1.msra.mxu0 0.0
    %3847 = vmatprep.subr.mxu0 0.0
    %3848 = vmatpush1.msra.mxu0 0.0
    %3849 = vmatprep.subr.mxu0 0.0
    %3850 = vmatpush1.msra.mxu0 0.0
    %3851 = vmatprep.subr.mxu0 0.0
    %3852 = vmatpush1.msra.mxu0 0.0
    %3853 = vmatprep.subr.mxu0 0.0
    %3854 = vmatpush1.msra.mxu0 0.0
    %3855 = vmatprep.subr.mxu0 0.0
    %3856 = vmatpush1.msra.mxu0 0.0
    %3857 = vmatprep.subr.mxu0 0.0
    %3858 = vmatpush1.msra.mxu0 0.0
    %3859 = vmatprep.subr.mxu0 0.0
    %3860 = vmatpush1.msra.mxu0 0.0
    %3861 = vmatprep.subr.mxu0 0.0
    %3862 = vmatpush1.msra.mxu0 0.0
    %3863 = vmatprep.subr.mxu0 0.0
    %3864 = vmatpush1.msra.mxu0 0.0
    %3865 = vmatprep.mubr.f32.mxu0 0.0
    %3866 = vmatmul.mubr.f32.gmra.mrb[0].mxu0 %v3799
    %v3867 = vpop.f32.mrb[0].mxu0
    %v3868 = vadd.f32 0.0, %v3867
    %v3869 = vpop.f32.mrb[0].mxu0
    %3870 = vdwg.mxu0
    %vm3871 = vcmask 129024
    %v3872 = vsel %vm3871, %v3203, -inf
    %v3873 = vrot.slane %v3872, 4
    %v3874 = vmax.f32 %v3872, %v3873
    %v3875 = vrot.slane %v3874, 2
    %v3876 = vmax.f32 %v3874, %v3875
    %v3877 = vrot.slane %v3876, 1
    %v3878 = vmax.f32 %v3876, %v3877
    %v3879 = vsel %vm3871, %v3278, -inf
    %v3880 = vrot.slane %v3879, 4
    %v3881 = vmax.f32 %v3879, %v3880
    %v3882 = vrot.slane %v3881, 2
    %v3883 = vmax.f32 %v3881, %v3882
    %v3884 = vrot.slane %v3883, 1
    %v3885 = vmax.f32 %v3883, %v3884
    %v3886 = vsel %vm3871, %v3353, -inf
    %v3887 = vrot.slane %v3886, 4
    %v3888 = vmax.f32 %v3886, %v3887
    %v3889 = vrot.slane %v3888, 2
    %v3890 = vmax.f32 %v3888, %v3889
    %v3891 = vrot.slane %v3890, 1
    %v3892 = vmax.f32 %v3890, %v3891
    %v3893 = vsel %vm3871, %v3428, -inf
    %v3894 = vrot.slane %v3893, 4
    %v3895 = vmax.f32 %v3893, %v3894
    %v3896 = vrot.slane %v3895, 2
    %v3897 = vmax.f32 %v3895, %v3896
    %v3898 = vrot.slane %v3897, 1
    %v3899 = vmax.f32 %v3897, %v3898
    %v3900 = vsel %vm3871, %v3503, -inf
    %v3901 = vrot.slane %v3900, 4
    %v3902 = vmax.f32 %v3900, %v3901
    %v3903 = vrot.slane %v3902, 2
    %v3904 = vmax.f32 %v3902, %v3903
    %v3905 = vrot.slane %v3904, 1
    %v3906 = vmax.f32 %v3904, %v3905
    %v3907 = vsel %vm3871, %v3576, -inf
    %v3908 = vrot.slane %v3907, 4
    %v3909 = vmax.f32 %v3907, %v3908
    %v3910 = vrot.slane %v3909, 2
    %v3911 = vmax.f32 %v3909, %v3910
    %v3912 = vrot.slane %v3911, 1
    %v3913 = vmax.f32 %v3911, %v3912
    %v3914 = vsel %vm3871, %v3649, -inf
    %v3915 = vrot.slane %v3914, 4
    %v3916 = vmax.f32 %v3914, %v3915
    %v3917 = vrot.slane %v3916, 2
    %v3918 = vmax.f32 %v3916, %v3917
    %v3919 = vrot.slane %v3918, 1
    %v3920 = vmax.f32 %v3918, %v3919
    %v3921 = vsel %vm3871, %v3722, -inf
    %v3922 = vrot.slane %v3921, 4
    %v3923 = vmax.f32 %v3921, %v3922
    %v3924 = vrot.slane %v3923, 2
    %v3925 = vmax.f32 %v3923, %v3924
    %v3926 = vrot.slane %v3925, 1
    %v3927 = vmax.f32 %v3925, %v3926
    %v3928 = vsel %vm3871, %v3795, -inf
    %v3929 = vrot.slane %v3928, 4
    %v3930 = vmax.f32 %v3928, %v3929
    %v3931 = vrot.slane %v3930, 2
    %v3932 = vmax.f32 %v3930, %v3931
    %v3933 = vrot.slane %v3932, 1
    %v3934 = vmax.f32 %v3932, %v3933
    %v3935 = vsel %vm3871, %v3868, -inf
    %v3936 = vrot.slane %v3935, 4
    %v3937 = vmax.f32 %v3935, %v3936
    %v3938 = vrot.slane %v3937, 2
    %v3939 = vmax.f32 %v3937, %v3938
    %v3940 = vrot.slane %v3939, 1
    %v3941 = vmax.f32 %v3939, %v3940
    %v3942 = vlaneseq
    %v3943 = vshrl.u32 %v3942, 7
    %vm3944 = vcmp.lt.s32.totalorder %v3943, 4
    %v3945 = vsel %vm3944, 1, 0
    %vm3946 = vcmp.eq.s32.totalorder %v3945, 1
    %vm3952 = vcmask 1041409
    %v3953 = vsel %vm3952, %v3920, %v3913
    %vm3954 = vcmask 1042434
    %v3955 = vsel %vm3954, %v3927, %v3953
    %vm3956 = vcmask 1043459
    %v3957 = vsel %vm3956, %v3934, %v3955
    %vm3958 = vcmask 1044484
    %v3959 = vsel %vm3958, %v3941, %v3957
    %v3961 = vsel %vm3946, %v3959, 0.0
    %v3967 = vsel %vm3952, %v3885, %v3878
    %v3968 = vsel %vm3954, %v3892, %v3967
    %v3969 = vsel %vm3956, %v3899, %v3968
    %v3970 = vsel %vm3958, %v3906, %v3969
    %3971 = vrot.lane.b32.xlu0 %v3970, 16
    %v3972 = vpop.permute.xlu0 %3971
    %v3974 = vsel %vm27, %v3961, %v3972
    %vm3975 = vcmask 258048
    %3976 = vst.msk [vmem:[#allocation4] sm:$0x1f] %vm3975, %v3974
    // Predicated region
    $region18: #{multi_attention_encoder.1} parent=1 // pred_check
      _
    $region19: #{multi_attention_encoder.1} parent=1 // pred_check_branch
      %3978 = sbr.rel (0) target = $region21
    $region20: #{multi_attention_encoder.1} parent=1 // pred_region
      %s3980 = ssub.s32 128, 128
      %3981 = vsyncadd [#allocation5], %s3980
      %s3983 = sshll.u32 [#allocation4], 4
      %s3984 = int_to_ptr.vmem [resolvable:$true] %s3983
      %3986 = dma.vmem_to_hbm [thread:$0]  %s3984, 128, %s4, [#allocation5]
    $region21: #{multi_attention_encoder.1} parent=1 // pred_fallthru
      _
    // Predicated region
    $region22: #{multi_attention_encoder.1} parent=1 // pred_check
      _
    $region23: #{multi_attention_encoder.1} parent=1 // pred_check_branch
      %3988 = sbr.rel (0) target = $region25
    $region24: #{multi_attention_encoder.1} parent=1 // pred_region
      %3989 = dma.done [#allocation5], 128
    $region25: #{multi_attention_encoder.1} parent=1 // pred_fallthru
      _
    %3990 = vsyncpa [#allocation5], 1

</llo_original>
